<compile_context>
chip_gen: v7x
topology: tpu7x:2x2x1
jax: 0.10.0
libtpu: 0.0.40
codegen_flags: <defaults>
</compile_context>

<pallas_src>
import functools
import math

import numpy as np
import jax
import jax.numpy as jnp
from jax.experimental import pallas as pl
from jax.experimental.pallas import tpu as pltpu

T_VIEWS = 26


def build_angle_select():
    """Exact reproduction of the angle_select construction in the PyTorch module."""
    angles = [(0, 90), (0, -90)]
    for i in range(1, 4):
        angles += [(0 + 45 * j, -90 + 45 * i) for j in range(8)]
    angles = np.array(angles)
    angle_delta = np.abs(angles.reshape(26, 1, 2) - angles.reshape(1, 26, 2))
    angle_delta = np.sum(np.minimum(angle_delta, 360 - angle_delta), axis=2)
    angle_bool = angle_delta == 45
    angle_bool[0, -8::2] = True
    angle_bool[-8::2, 0] = True
    angle_bool[1, 2:10:2] = True
    angle_bool[2:10:2, 1] = True
    return [list(np.argwhere(angle_bool[i]).reshape(-1)) for i in range(26)]


def _cross_attn_head_kernel(T, HW, D, x_ref, wqkv_ref, bqkv_ref, wo_ref, bo_ref,
                            mask_ref, o_ref):
    """One (outer-batch, head) pair per grid step.

    x_ref    : (1, T, HW, C)  bf16  tokens of all T=26 views (token-major)
    wqkv_ref : (1, C, 3D)     bf16  [Wq_h^T*scale | Wk_h^T | Wv_h^T] for head h
    bqkv_ref : (1, 1, 3D)     f32   [bq_h*scale   | bk_h   | bv_h  ]
    wo_ref   : (1, D, C)      bf16  rows h*D:(h+1)*D of Wo^T
    bo_ref   : (1, C)         f32   output-projection bias (added once, at h == 0)
    mask_ref : (T*HW, T*HW)   f32   0 for neighbour views, -1e9 otherwise
    o_ref    : (1, T, HW, C)  f32   accumulated across the head grid axis
    """
    h = pl.program_id(1)
    C = x_ref.shape[-1]
    S = T * HW

    x2d = x_ref[0].reshape(S, C)                          # bf16, free major-dim merge

    # Per-head fused Q/K/V projection (softmax scale already folded into Wq/bq).
    qkv = jnp.dot(x2d, wqkv_ref[0],
                  preferred_element_type=jnp.float32) + bqkv_ref[0]       # (S, 3D) f32
    q = qkv[:, :D]
    k = qkv[:, D:2 * D]
    v = qkv[:, 2 * D:]

    # Dense scores over all 26 views; the sparse neighbour structure is applied as
    # an additive mask (exp underflows to exactly 0 for masked keys), so the result
    # equals softmax over the gathered neighbours only.
    s = jax.lax.dot_general(q, k, (((1,), (1,)), ((), ())),
                            preferred_element_type=jnp.float32)           # (S, S)
    s = s + mask_ref[...]
    m = jnp.max(s, axis=-1, keepdims=True)
    p = jnp.exp(s - m)
    a = p * pl.reciprocal(jnp.sum(p, axis=-1, keepdims=True), approx=False)

    ctx = jnp.dot(a.astype(jnp.bfloat16), v.astype(jnp.bfloat16),
                  preferred_element_type=jnp.float32)                     # (S, D)

    # Head h's exact share of the output projection: ctx_h @ Wo^T[hD:(h+1)D, :].
    part = jnp.dot(ctx.astype(jnp.bfloat16), wo_ref[0],
                   preferred_element_type=jnp.float32)                    # (S, C)

    @pl.when(h == 0)
    def _():
        o_ref[0] = (part + bo_ref[...]).reshape(T, HW, C)

    @pl.when(h != 0)
    def _():
        o_ref[0] = o_ref[0] + part.reshape(T, HW, C)


def cross_attention_pallas(x_nchw, params, angle_select, n_head):
    Wq, Wk, Wv, bq, bk, bv, Wo, bo = params
    B26, C, Hh, Ww = x_nchw.shape
    assert B26 % T_VIEWS == 0
    B = B26 // T_VIEWS
    HW = Hh * Ww
    assert C % n_head == 0
    D = C // n_head
    S = T_VIEWS * HW
    # Keeps the in-kernel (T, HW, C) -> (T*HW, C) reshape a free major-dim merge
    # (bf16 sublane tile is 16 rows).
    assert HW % 16 == 0, "HW must be a multiple of 16"
    scale = 1.0 / math.sqrt(D)

    # (b t) c h w -> b t (h w) c, bf16 across the HBM boundary (halves x traffic).
    # TODO(synk): fold this transpose into the kernel (in-VMEM relayout) to remove
    # one full HBM round trip of the activations.
    x = (x_nchw.reshape(B, T_VIEWS, C, HW)
         .transpose(0, 1, 3, 2)
         .astype(jnp.bfloat16))

    # Per-head, pre-transposed projection weights; scale folded into Wq/bq
    # (nn.MultiheadAttention scales q after the in-projection bias, so this is exact).
    def per_head_cols(mat_t):                 # (C, C) -> (H, C, D)
        return mat_t.reshape(C, n_head, D).transpose(1, 0, 2)

    w_qkv = jnp.concatenate(
        [per_head_cols(Wq.T * scale), per_head_cols(Wk.T), per_head_cols(Wv.T)],
        axis=-1).astype(jnp.bfloat16)                                     # (H, C, 3D)
    b_qkv = jnp.concatenate(
        [(bq * scale).reshape(n_head, D), bk.reshape(n_head, D), bv.reshape(n_head, D)],
        axis=-1).reshape(n_head, 1, 3 * D).astype(jnp.float32)            # (H, 1, 3D)
    w_o = Wo.T.reshape(n_head, D, C).astype(jnp.bfloat16)                 # (H, D, C)
    b_o = bo.reshape(1, C).astype(jnp.float32)                            # (1, C)

    # Compile-time neighbour structure -> token-resolution additive mask (host side).
    nbr = np.zeros((T_VIEWS, T_VIEWS), dtype=bool)
    for i, sel in enumerate(angle_select):
        nbr[i, np.asarray(sel, dtype=np.int64)] = True
    mask_small = np.where(nbr, 0.0, -1e9).astype(np.float32)
    mask = jnp.asarray(np.repeat(np.repeat(mask_small, HW, axis=0), HW, axis=1))

    kernel = functools.partial(_cross_attn_head_kernel, T_VIEWS, HW, D)

    flops_step = 2 * S * C * 3 * D + 4 * S * S * D + 2 * S * D * C
    cost = pl.CostEstimate(
        flops=int(B * n_head * flops_step),
        transcendentals=int(B * n_head * S * S),
        bytes_accessed=int(2 * B * S * C + 4 * B * S * C + 4 * S * S
                           + 2 * n_head * C * 3 * D + 2 * n_head * D * C + 4 * C))

    out = pl.pallas_call(
        kernel,
        out_shape=jax.ShapeDtypeStruct((B, T_VIEWS, HW, C), jnp.float32),
        grid=(B, n_head),
        in_specs=[
            pl.BlockSpec((1, T_VIEWS, HW, C), lambda b, h: (b, 0, 0, 0)),  # x
            pl.BlockSpec((1, C, 3 * D),       lambda b, h: (h, 0, 0)),     # Wqkv head
            pl.BlockSpec((1, 1, 3 * D),       lambda b, h: (h, 0, 0)),     # bqkv head
            pl.BlockSpec((1, D, C),           lambda b, h: (h, 0, 0)),     # Wo head
            pl.BlockSpec((1, C),              lambda b, h: (0, 0)),        # bo
            pl.BlockSpec((S, S),              lambda b, h: (0, 0)),        # mask
        ],
        out_specs=pl.BlockSpec((1, T_VIEWS, HW, C), lambda b, h: (b, 0, 0, 0)),
        compiler_params=pltpu.CompilerParams(
            dimension_semantics=("parallel", "arbitrary")),
        cost_estimate=cost,
    )(x, w_qkv, b_qkv, w_o, b_o, mask)

    # b t (h w) c -> (b t) c h w
    return out.transpose(0, 1, 3, 2).reshape(B26, C, Hh, Ww)


def cross_attention_ref(x_nchw, params, angle_select, n_head):
    """Pure-JAX reference mirroring torch.nn.MultiheadAttention math."""
    Wq, Wk, Wv, bq, bk, bv, Wo, bo = params
    B26, C, Hh, Ww = x_nchw.shape
    B = B26 // T_VIEWS
    HW = Hh * Ww
    D = C // n_head
    x = x_nchw.reshape(B, T_VIEWS, C, HW).transpose(0, 1, 3, 2)

    outs = []
    for i in range(T_VIEWS):
        qin = x[:, i]                                                    # (B, HW, C)
        kvin = x[:, np.asarray(angle_select[i])].reshape(B, -1, C)       # (B, L, C)
        q = qin @ Wq.T + bq
        k = kvin @ Wk.T + bk
        v = kvin @ Wv.T + bv
        L = k.shape[1]
        qh = q.reshape(B, HW, n_head, D).transpose(0, 2, 1, 3) * (D ** -0.5)
        kh = k.reshape(B, L, n_head, D).transpose(0, 2, 1, 3)
        vh = v.reshape(B, L, n_head, D).transpose(0, 2, 1, 3)
        s = qh @ kh.transpose(0, 1, 3, 2)
        a = jax.nn.softmax(s, axis=-1)
        o = (a @ vh).transpose(0, 2, 1, 3).reshape(B, HW, C)
        outs.append(o @ Wo.T + bo)
    out = jnp.stack(outs, axis=1)                                        # (B, 26, HW, C)
    return out.transpose(0, 1, 3, 2).reshape(B26, C, Hh, Ww)


if __name__ == "__main__":
    C = 128       # in_channel (= TPU lane width -> lane-dense HBM blocks)
    N_HEAD = 4    # head_dim = 32
    B = 2         # outer batch; the module's batch dim is B * 26
    Hh = Ww = 4   # spatial -> HW = 16 tokens per view

    angle_select = build_angle_select()

    key = jax.random.PRNGKey(0)
    kx, kw, kb, kwo, kbo = jax.random.split(key, 5)
    x = jax.random.normal(kx, (B * T_VIEWS, C, Hh, Ww), dtype=jnp.float32)

    # nn.MultiheadAttention parameters: in_proj (3C, C)+(3C,), out_proj (C, C)+(C,)
    in_proj_w = jax.random.normal(kw, (3 * C, C), dtype=jnp.float32) * 0.1
    in_proj_b = jax.random.normal(kb, (3 * C,), dtype=jnp.float32) * 0.1
    Wo = jax.random.normal(kwo, (C, C), dtype=jnp.float32) * 0.1
    bo = jax.random.normal(kbo, (C,), dtype=jnp.float32) * 0.1
    Wq, Wk, Wv = in_proj_w[:C], in_proj_w[C:2 * C], in_proj_w[2 * C:]
    bq, bk, bv = in_proj_b[:C], in_proj_b[C:2 * C], in_proj_b[2 * C:]
    params = (Wq, Wk, Wv, bq, bk, bv, Wo, bo)

    out = cross_attention_pallas(x, params, angle_select, N_HEAD)
    out = jax.block_until_ready(out)

    ref = cross_attention_ref(x, params, angle_select, N_HEAD)
    # Tolerance accounts for bf16 MXU operands (projections, attn@V) and bf16
    # activations across the HBM boundary; scores/softmax/accumulation stay f32.
    # Any structural bug (wrong mask, head split, transpose) would exceed this by
    # orders of magnitude.
    np.testing.assert_allclose(np.asarray(out), np.asarray(ref), rtol=3e-2, atol=3e-2)

    print("KERNEL_OK")
</pallas_src>

<mosaic_0001>
module attributes {stable_mosaic.version = 11 : i64} {
  func.func @_cross_attn_head_kernel(%arg0: i32, %arg1: i32, %arg2: memref<1x26x16x128xbf16, #tpu.memory_space<vmem>>, %arg3: memref<1x128x96xbf16, #tpu.memory_space<vmem>>, %arg4: memref<1x1x96xf32, #tpu.memory_space<vmem>>, %arg5: memref<1x32x128xbf16, #tpu.memory_space<vmem>>, %arg6: memref<1x128xf32, #tpu.memory_space<vmem>>, %arg7: memref<416x416xf32, #tpu.memory_space<vmem>>, %arg8: memref<1x26x16x128xf32, #tpu.memory_space<vmem>>) attributes {dimension_semantics = [#tpu.dimension_semantics<parallel>, #tpu.dimension_semantics<arbitrary>], iteration_bounds = array<i64: 2, 4>, scalar_prefetch = 0 : i64, scratch_operands = 0 : i64, tpu.core_type = #tpu.core_type<tc>, window_params = [{transform_indices = @transform_0, window_bounds = array<i64: 1, 26, 16, 128>}, {transform_indices = @transform_1, window_bounds = array<i64: 1, 128, 96>}, {transform_indices = @transform_2, window_bounds = array<i64: 1, 1, 96>}, {transform_indices = @transform_3, window_bounds = array<i64: 1, 32, 128>}, {pipeline_mode = #tpu.pipeline_mode<synchronous>, transform_indices = @transform_4, window_bounds = array<i64: 1, 128>}, {pipeline_mode = #tpu.pipeline_mode<synchronous>, transform_indices = @transform_5, window_bounds = array<i64: 416, 416>}, {transform_indices = @transform_6, window_bounds = array<i64: 1, 26, 16, 128>}]} {
    %c0 = arith.constant 0 : index
    %c0_0 = arith.constant 0 : index
    %c0_1 = arith.constant 0 : index
    %c0_2 = arith.constant 0 : index
    %0 = vector.load %arg2[%c0, %c0_0, %c0_1, %c0_2] : memref<1x26x16x128xbf16, #tpu.memory_space<vmem>>, vector<1x26x16x128xbf16>
    %1 = vector.shape_cast %0 : vector<1x26x16x128xbf16> to vector<26x16x128xbf16>
    %2 = vector.shape_cast %1 : vector<26x16x128xbf16> to vector<416x128xbf16>
    %c0_3 = arith.constant 0 : index
    %c0_4 = arith.constant 0 : index
    %c0_5 = arith.constant 0 : index
    %3 = vector.load %arg3[%c0_3, %c0_4, %c0_5] : memref<1x128x96xbf16, #tpu.memory_space<vmem>>, vector<1x128x96xbf16>
    %4 = vector.shape_cast %3 : vector<1x128x96xbf16> to vector<128x96xbf16>
    %cst = arith.constant dense<0.000000e+00> : vector<416x96xf32>
    %5 = tpu.matmul %2, %4, %cst {dimension_numbers = #tpu.dot_dimension_numbers<[1], [0], [0], [1], [0, 0, 1, 1], [], []>} : vector<416x128xbf16>, vector<128x96xbf16>, vector<416x96xf32> -> vector<416x96xf32>
    %c0_6 = arith.constant 0 : index
    %c0_7 = arith.constant 0 : index
    %c0_8 = arith.constant 0 : index
    %6 = vector.load %arg4[%c0_6, %c0_7, %c0_8] : memref<1x1x96xf32, #tpu.memory_space<vmem>>, vector<1x1x96xf32>
    %7 = vector.shape_cast %6 : vector<1x1x96xf32> to vector<1x96xf32>
    %8 = vector.broadcast %7 : vector<1x96xf32> to vector<416x96xf32>
    %9 = arith.addf %5, %8 : vector<416x96xf32>
    %10 = vector.extract_strided_slice %9 {offsets = [0, 0], sizes = [416, 32], strides = [1, 1]} : vector<416x96xf32> to vector<416x32xf32>
    %11 = vector.extract_strided_slice %9 {offsets = [0, 32], sizes = [416, 32], strides = [1, 1]} : vector<416x96xf32> to vector<416x32xf32>
    %12 = vector.extract_strided_slice %9 {offsets = [0, 64], sizes = [416, 32], strides = [1, 1]} : vector<416x96xf32> to vector<416x32xf32>
    %cst_9 = arith.constant dense<0.000000e+00> : vector<416x416xf32>
    %13 = tpu.matmul %10, %11, %cst_9 {dimension_numbers = #tpu.dot_dimension_numbers<[1], [1], [0], [0], [0, 0, 1, 0], [], []>} : vector<416x32xf32>, vector<416x32xf32>, vector<416x416xf32> -> vector<416x416xf32>
    %c0_10 = arith.constant 0 : index
    %c0_11 = arith.constant 0 : index
    %14 = vector.load %arg7[%c0_10, %c0_11] : memref<416x416xf32, #tpu.memory_space<vmem>>, vector<416x416xf32>
    %15 = arith.addf %13, %14 : vector<416x416xf32>
    %cst_12 = arith.constant dense<0xFF800000> : vector<416xf32>
    %16 = vector.multi_reduction <maximumf>, %15, %cst_12 [1] : vector<416x416xf32> to vector<416xf32>
    %17 = vector.shape_cast %16 : vector<416xf32> to vector<416x1xf32>
    %18 = vector.broadcast %17 : vector<416x1xf32> to vector<416x416xf32>
    %19 = arith.subf %15, %18 : vector<416x416xf32>
    %20 = math.exp %19 : vector<416x416xf32>
    %cst_13 = arith.constant dense<0.000000e+00> : vector<416xf32>
    %21 = vector.multi_reduction <add>, %20, %cst_13 [1] : vector<416x416xf32> to vector<416xf32>
    %22 = vector.shape_cast %21 : vector<416xf32> to vector<416x1xf32>
    %23 = tpu.reciprocal %22 : vector<416x1xf32> -> vector<416x1xf32>
    %24 = vector.broadcast %23 : vector<416x1xf32> to vector<416x416xf32>
    %25 = arith.mulf %20, %24 : vector<416x416xf32>
    %26 = arith.truncf %25 : vector<416x416xf32> to vector<416x416xbf16>
    %27 = arith.truncf %12 : vector<416x32xf32> to vector<416x32xbf16>
    %cst_14 = arith.constant dense<0.000000e+00> : vector<416x32xf32>
    %28 = tpu.matmul %26, %27, %cst_14 {dimension_numbers = #tpu.dot_dimension_numbers<[1], [0], [0], [1], [0, 0, 1, 1], [], []>} : vector<416x416xbf16>, vector<416x32xbf16>, vector<416x32xf32> -> vector<416x32xf32>
    %29 = arith.truncf %28 : vector<416x32xf32> to vector<416x32xbf16>
    %c0_15 = arith.constant 0 : index
    %c0_16 = arith.constant 0 : index
    %c0_17 = arith.constant 0 : index
    %30 = vector.load %arg5[%c0_15, %c0_16, %c0_17] : memref<1x32x128xbf16, #tpu.memory_space<vmem>>, vector<1x32x128xbf16>
    %31 = vector.shape_cast %30 : vector<1x32x128xbf16> to vector<32x128xbf16>
    %cst_18 = arith.constant dense<0.000000e+00> : vector<416x128xf32>
    %32 = tpu.matmul %29, %31, %cst_18 {dimension_numbers = #tpu.dot_dimension_numbers<[1], [0], [0], [1], [0, 0, 1, 1], [], []>} : vector<416x32xbf16>, vector<32x128xbf16>, vector<416x128xf32> -> vector<416x128xf32>
    %c0_i32 = arith.constant 0 : i32
    %33 = arith.cmpi eq, %arg1, %c0_i32 : i32
    %34 = arith.extui %33 : i1 to i32
    %c0_i32_19 = arith.constant 0 : i32
    %35 = arith.cmpi ne, %34, %c0_i32_19 : i32
    scf.if %35 {
      %c0_22 = arith.constant 0 : index
      %c0_23 = arith.constant 0 : index
      %39 = vector.load %arg6[%c0_22, %c0_23] : memref<1x128xf32, #tpu.memory_space<vmem>>, vector<1x128xf32>
      %40 = vector.broadcast %39 : vector<1x128xf32> to vector<416x128xf32>
      %41 = arith.addf %32, %40 : vector<416x128xf32>
      %42 = vector.shape_cast %41 : vector<416x128xf32> to vector<26x16x128xf32>
      %c0_24 = arith.constant 0 : index
      %c0_25 = arith.constant 0 : index
      %c0_26 = arith.constant 0 : index
      %c0_27 = arith.constant 0 : index
      %43 = vector.load %arg8[%c0_24, %c0_25, %c0_26, %c0_27] : memref<1x26x16x128xf32, #tpu.memory_space<vmem>>, vector<1x26x16x128xf32>
      %44 = vector.shape_cast %43 : vector<1x26x16x128xf32> to vector<26x16x128xf32>
      %45 = vector.shape_cast %42 : vector<26x16x128xf32> to vector<1x26x16x128xf32>
      tpu.vector_store %arg8[%c0_24, %c0_25, %c0_26, %c0_27], %45 {strides = array<i32>} : memref<1x26x16x128xf32, #tpu.memory_space<vmem>>, vector<1x26x16x128xf32>,
    } else {
    }
    %c0_i32_20 = arith.constant 0 : i32
    %36 = arith.cmpi ne, %arg1, %c0_i32_20 : i32
    %37 = arith.extui %36 : i1 to i32
    %c0_i32_21 = arith.constant 0 : i32
    %38 = arith.cmpi ne, %37, %c0_i32_21 : i32
    scf.if %38 {
      %c0_22 = arith.constant 0 : index
      %c0_23 = arith.constant 0 : index
      %c0_24 = arith.constant 0 : index
      %c0_25 = arith.constant 0 : index
      %39 = vector.load %arg8[%c0_22, %c0_23, %c0_24, %c0_25] : memref<1x26x16x128xf32, #tpu.memory_space<vmem>>, vector<1x26x16x128xf32>
      %40 = vector.shape_cast %39 : vector<1x26x16x128xf32> to vector<26x16x128xf32>
      %41 = vector.shape_cast %32 : vector<416x128xf32> to vector<26x16x128xf32>
      %42 = arith.addf %40, %41 : vector<26x16x128xf32>
      %c0_26 = arith.constant 0 : index
      %c0_27 = arith.constant 0 : index
      %c0_28 = arith.constant 0 : index
      %c0_29 = arith.constant 0 : index
      %43 = vector.load %arg8[%c0_26, %c0_27, %c0_28, %c0_29] : memref<1x26x16x128xf32, #tpu.memory_space<vmem>>, vector<1x26x16x128xf32>
      %44 = vector.shape_cast %43 : vector<1x26x16x128xf32> to vector<26x16x128xf32>
      %45 = vector.shape_cast %42 : vector<26x16x128xf32> to vector<1x26x16x128xf32>
      tpu.vector_store %arg8[%c0_26, %c0_27, %c0_28, %c0_29], %45 {strides = array<i32>} : memref<1x26x16x128xf32, #tpu.memory_space<vmem>>, vector<1x26x16x128xf32>,
    } else {
    }
    return
  }
  func.func @transform_0(%arg0: i32, %arg1: i32) -> (i32, i32, i32, i32) {
    %c0_i32 = arith.constant 0 : i32
    %c0_i32_0 = arith.constant 0 : i32
    %c0_i32_1 = arith.constant 0 : i32
    %c0_i32_2 = arith.constant 0 : i32
    return %arg0, %c0_i32, %c0_i32_0, %c0_i32_1 : i32, i32, i32, i32
  }
  func.func @transform_1(%arg0: i32, %arg1: i32) -> (i32, i32, i32) {
    %c0_i32 = arith.constant 0 : i32
    %c0_i32_0 = arith.constant 0 : i32
    %c0_i32_1 = arith.constant 0 : i32
    return %arg1, %c0_i32, %c0_i32_0 : i32, i32, i32
  }
  func.func @transform_2(%arg0: i32, %arg1: i32) -> (i32, i32, i32) {
    %c0_i32 = arith.constant 0 : i32
    %c0_i32_0 = arith.constant 0 : i32
    %c0_i32_1 = arith.constant 0 : i32
    return %arg1, %c0_i32, %c0_i32_0 : i32, i32, i32
  }
  func.func @transform_3(%arg0: i32, %arg1: i32) -> (i32, i32, i32) {
    %c0_i32 = arith.constant 0 : i32
    %c0_i32_0 = arith.constant 0 : i32
    %c0_i32_1 = arith.constant 0 : i32
    return %arg1, %c0_i32, %c0_i32_0 : i32, i32, i32
  }
  func.func @transform_4(%arg0: i32, %arg1: i32) -> (i32, i32) {
    %c0_i32 = arith.constant 0 : i32
    %c0_i32_0 = arith.constant 0 : i32
    %c0_i32_1 = arith.constant 0 : i32
    return %c0_i32, %c0_i32_0 : i32, i32
  }
  func.func @transform_5(%arg0: i32, %arg1: i32) -> (i32, i32) {
    %c0_i32 = arith.constant 0 : i32
    %c0_i32_0 = arith.constant 0 : i32
    %c0_i32_1 = arith.constant 0 : i32
    return %c0_i32, %c0_i32_0 : i32, i32
  }
  func.func @transform_6(%arg0: i32, %arg1: i32) -> (i32, i32, i32, i32) {
    %c0_i32 = arith.constant 0 : i32
    %c0_i32_0 = arith.constant 0 : i32
    %c0_i32_1 = arith.constant 0 : i32
    %c0_i32_2 = arith.constant 0 : i32
    return %arg0, %c0_i32, %c0_i32_0, %c0_i32_1 : i32, i32, i32, i32
  }
}

</mosaic_0001>

<llo_original>
// kernel: tpu_custom_call.1
$region0: #{tpu_custom_call.1}
  #allocation0 [shape = 'u32[]', space=smem, size = 0x4, offset = 0x4, fixed_abs, tag = 'smem constant byte address 0x4 - core index']
  #allocation1 [shape = 'u32[144,128]{1,0:T(1,128)}', space=vmem, size = 0x12000, scoped, tag = 'internal scratch']
  %s0 = inlined_call_operand.vmem [shape: bf16[2,26,16,128], index: 0, kind: input, shape index: {}]
  %s1 = inlined_call_operand.vmem [shape: bf16[4,128,96], index: 1, kind: input, shape index: {}]
  %s2 = inlined_call_operand.vmem [shape: f32[4,1,96], index: 2, kind: input, shape index: {}]
  %s3 = inlined_call_operand.hbm [shape: bf16[4,32,128], index: 3, kind: input, shape index: {}]
  %s4 = inlined_call_operand.vmem [shape: f32[1,128], index: 4, kind: input, shape index: {}]
  %s5 = inlined_call_operand.hbm [shape: f32[416,416], index: 5, kind: input, shape index: {}]
  %s6 = inlined_call_operand.hbm [shape: f32[2,26,16,128], index: 6, kind: output, shape index: {}]
  %s7 = sld [smem:[#allocation0]]
  $region73: #{tpu_custom_call.1} parent=0
    _
  %s9 = ssub.s32 1, %s7
  %s10 = scalar_select 0, %s9, %s7
  $region1: #{tpu_custom_call.1} parent=0
    #allocation2 [shape = 'u8[16384]{0}', space=vmem, size = 0x4000, scoped, tag = 'input window, operand 3']
    #allocation3 [shape = 's32[2]{0}', space=sflag, size = 0x8, scoped, tag = 'scoped memory for tpu_custom_call.1']
    #allocation4 [shape = 's32[2]{0}', space=sflag, size = 0x8, scoped, tag = 'scoped memory for tpu_custom_call.1']
    #allocation5 [shape = 'u8[851968]{0}', space=vmem, size = 0xd0000, scoped, tag = 'input window, operand 5, single buffered']
    #allocation6 [shape = 's32[1]{0}', space=sflag, size = 0x4, scoped, tag = 'scoped memory for tpu_custom_call.1']
    #allocation7 [shape = 'u8[425984]{0}', space=vmem, size = 0x68000, scoped, tag = 'output window, operand 0']
    %11 = vsyncpa [#allocation3], 0
    %s12 = scalar_lea.sflag [#allocation3], 1
    %13 = vsyncpa %s12, 0
    %14 = vsyncpa [#allocation6], 0
    %15 = vsyncpa [#allocation4], 0
    %s16 = scalar_lea.sflag [#allocation4], 1
    %17 = vsyncpa %s16, 0
    loop: start=0, step=1, limit=10
    $region2: #{tpu_custom_call.1} parent=1 // loop_pre_header
      _
    $region3: #{tpu_custom_call.1} parent=1 // loop_header
      %s19 = sphi 0, %s23
      %p20 = scmp.ge.s32.totalorder %s19, 10
      %s26 = sphi 0, %s38
      %s27 = sphi 0, %s34
      %s28 = sphi 0, %s26
      %s29 = sphi 0, %s27
      %s30 = sphi 0, %s28
      %s31 = sphi 0, %s29
      %s41 = sphi 0, %s43
      %s44 = sphi 0, %s41
      %s45 = sphi 0, %s44
      %s61 = sphi 0, %s45
      %s67 = sphi 0, %s69
      %s70 = sphi 0, %s67
      %s71 = sphi 0, %s70
      %s87 = sphi 0, %s71
      %s93 = sphi 0, %s95
      %s96 = sphi 0, %s93
      %s97 = sphi 0, %s96
      %s113 = sphi 0, %s97
      %s119 = sphi 0, %s121
      %s122 = sphi 0, %s119
      %s123 = sphi 0, %s122
      %s139 = sphi 0, %s123
      %s143 = sphi 0, %s143
      %s145 = sphi 0, %s143
      %s146 = sphi 0, %s145
      %s160 = sphi 0, %s146
      %s164 = sphi 0, %s164
      %s166 = sphi 0, %s164
      %s167 = sphi 0, %s166
      %s181 = sphi 0, %s167
      %s187 = sphi 0, %s189
      %s190 = sphi 0, %s187
      %s191 = sphi 0, %s190
      %s207 = sphi 0, %s191
    $region4: #{tpu_custom_call.1} parent=1 // loop_header_branch
      %22 = sbr.rel (%p20) target = $region8
    $region5: #{tpu_custom_call.1} parent=1 // loop_body
      %s24 = ssub.s32 %s19, 1
      %s25 = ssub.s32 %s19, 2
      %s32 = sadd.s32 1, %s27
      %p33 = scmp.ge.s32.totalorder %s32, 4
      %s34 = scalar_select %p33, 0, %s32
      %s35 = sadd.s32 1, %s26
      %s36 = scalar_select %p33, %s35, %s26
      %p37 = scmp.ge.s32.totalorder %s36, 2
      %s38 = scalar_select %p37, 0, %s36
      %s39 = ssub.s32 %s26, %s38
      %p40 = scmp.eq.s32.totalorder %s39, 0
      %s42 = sadd.s32 %s41, 1
      %s43 = scalar_select %p40, %s41, %s42
      %p46 = pneg %p40
      %p47 = scmp.eq.s32.totalorder %s19, 7
      %p48 = por %p46, %p47
      %p49 = scmp.ne.s32.totalorder %s41, %s44
      %p50 = scmp.eq.s32.totalorder %s19, 0
      %p51 = por %p49, %p50
      %p52 = scmp.ne.s32.totalorder %s41, %s44
      %p53 = scmp.eq.s32.totalorder %s24, 7
      %p54 = por %p52, %p53
      %p55 = scmp.ne.s32.totalorder %s44, %s45
      %p56 = scmp.eq.s32.totalorder %s24, 0
      %p57 = por %p55, %p56
      %p58 = scmp.ne.s32.totalorder %s44, %s45
      %p59 = scmp.eq.s32.totalorder %s25, 7
      %p60 = por %p58, %p59
      %p62 = scmp.ne.s32.totalorder %s45, %s61
      %p63 = scmp.eq.s32.totalorder %s25, 0
      %p64 = por %p62, %p63
      %s65 = ssub.s32 %s27, %s34
      %p66 = scmp.eq.s32.totalorder %s65, 0
      %s68 = sadd.s32 %s67, 1
      %s69 = scalar_select %p66, %s67, %s68
      %p72 = pneg %p66
      %p73 = scmp.eq.s32.totalorder %s19, 7
      %p74 = por %p72, %p73
      %p75 = scmp.ne.s32.totalorder %s67, %s70
      %p76 = scmp.eq.s32.totalorder %s19, 0
      %p77 = por %p75, %p76
      %p78 = scmp.ne.s32.totalorder %s67, %s70
      %p79 = scmp.eq.s32.totalorder %s24, 7
      %p80 = por %p78, %p79
      %p81 = scmp.ne.s32.totalorder %s70, %s71
      %p82 = scmp.eq.s32.totalorder %s24, 0
      %p83 = por %p81, %p82
      %p84 = scmp.ne.s32.totalorder %s70, %s71
      %p85 = scmp.eq.s32.totalorder %s25, 7
      %p86 = por %p84, %p85
      %p88 = scmp.ne.s32.totalorder %s71, %s87
      %p89 = scmp.eq.s32.totalorder %s25, 0
      %p90 = por %p88, %p89
      %s91 = ssub.s32 %s27, %s34
      %p92 = scmp.eq.s32.totalorder %s91, 0
      %s94 = sadd.s32 %s93, 1
      %s95 = scalar_select %p92, %s93, %s94
      %p98 = pneg %p92
      %p99 = scmp.eq.s32.totalorder %s19, 7
      %p100 = por %p98, %p99
      %p101 = scmp.ne.s32.totalorder %s93, %s96
      %p102 = scmp.eq.s32.totalorder %s19, 0
      %p103 = por %p101, %p102
      %p104 = scmp.ne.s32.totalorder %s93, %s96
      %p105 = scmp.eq.s32.totalorder %s24, 7
      %p106 = por %p104, %p105
      %p107 = scmp.ne.s32.totalorder %s96, %s97
      %p108 = scmp.eq.s32.totalorder %s24, 0
      %p109 = por %p107, %p108
      %p110 = scmp.ne.s32.totalorder %s96, %s97
      %p111 = scmp.eq.s32.totalorder %s25, 7
      %p112 = por %p110, %p111
      %p114 = scmp.ne.s32.totalorder %s97, %s113
      %p115 = scmp.eq.s32.totalorder %s25, 0
      %p116 = por %p114, %p115
      %s117 = ssub.s32 %s27, %s34
      %p118 = scmp.eq.s32.totalorder %s117, 0
      %s120 = sadd.s32 %s119, 1
      %s121 = scalar_select %p118, %s119, %s120
      %p124 = pneg %p118
      %p125 = scmp.eq.s32.totalorder %s19, 7
      %p126 = por %p124, %p125
      %p127 = scmp.ne.s32.totalorder %s119, %s122
      %p128 = scmp.eq.s32.totalorder %s19, 0
      %p129 = por %p127, %p128
      %p130 = scmp.ne.s32.totalorder %s119, %s122
      %p131 = scmp.eq.s32.totalorder %s24, 7
      %p132 = por %p130, %p131
      %p133 = scmp.ne.s32.totalorder %s122, %s123
      %p134 = scmp.eq.s32.totalorder %s24, 0
      %p135 = por %p133, %p134
      %p136 = scmp.ne.s32.totalorder %s122, %s123
      %p137 = scmp.eq.s32.totalorder %s25, 7
      %p138 = por %p136, %p137
      %p140 = scmp.ne.s32.totalorder %s123, %s139
      %p141 = scmp.eq.s32.totalorder %s25, 0
      %p142 = por %p140, %p141
      %s144 = sadd.s32 %s143, 1
      %p147 = scmp.eq.s32.totalorder %s19, 7
      %p148 = scmp.ne.s32.totalorder %s143, %s145
      %p149 = scmp.eq.s32.totalorder %s19, 0
      %p150 = por %p148, %p149
      %p151 = scmp.ne.s32.totalorder %s143, %s145
      %p152 = scmp.eq.s32.totalorder %s24, 7
      %p153 = por %p151, %p152
      %p154 = scmp.ne.s32.totalorder %s145, %s146
      %p155 = scmp.eq.s32.totalorder %s24, 0
      %p156 = por %p154, %p155
      %p157 = scmp.ne.s32.totalorder %s145, %s146
      %p158 = scmp.eq.s32.totalorder %s25, 7
      %p159 = por %p157, %p158
      %p161 = scmp.ne.s32.totalorder %s146, %s160
      %p162 = scmp.eq.s32.totalorder %s25, 0
      %p163 = por %p161, %p162
      %s165 = sadd.s32 %s164, 1
      %p168 = scmp.eq.s32.totalorder %s19, 7
      %p169 = scmp.ne.s32.totalorder %s164, %s166
      %p170 = scmp.eq.s32.totalorder %s19, 0
      %p171 = por %p169, %p170
      %p172 = scmp.ne.s32.totalorder %s164, %s166
      %p173 = scmp.eq.s32.totalorder %s24, 7
      %p174 = por %p172, %p173
      %p175 = scmp.ne.s32.totalorder %s166, %s167
      %p176 = scmp.eq.s32.totalorder %s24, 0
      %p177 = por %p175, %p176
      %p178 = scmp.ne.s32.totalorder %s166, %s167
      %p179 = scmp.eq.s32.totalorder %s25, 7
      %p180 = por %p178, %p179
      %p182 = scmp.ne.s32.totalorder %s167, %s181
      %p183 = scmp.eq.s32.totalorder %s25, 0
      %p184 = por %p182, %p183
      %s185 = ssub.s32 %s26, %s38
      %p186 = scmp.eq.s32.totalorder %s185, 0
      %s188 = sadd.s32 %s187, 1
      %s189 = scalar_select %p186, %s187, %s188
      %p192 = pneg %p186
      %p193 = scmp.eq.s32.totalorder %s19, 7
      %p194 = por %p192, %p193
      %p195 = scmp.ne.s32.totalorder %s187, %s190
      %p196 = scmp.eq.s32.totalorder %s19, 0
      %p197 = por %p195, %p196
      %p198 = scmp.ne.s32.totalorder %s187, %s190
      %p199 = scmp.eq.s32.totalorder %s24, 7
      %p200 = por %p198, %p199
      %p201 = scmp.ne.s32.totalorder %s190, %s191
      %p202 = scmp.eq.s32.totalorder %s24, 0
      %p203 = por %p201, %p202
      %p204 = scmp.ne.s32.totalorder %s190, %s191
      %p205 = scmp.eq.s32.totalorder %s25, 7
      %p206 = por %p204, %p205
      %p208 = scmp.ne.s32.totalorder %s191, %s207
      %p209 = scmp.eq.s32.totalorder %s25, 0
      %p210 = por %p208, %p209
      %p211 = scmp.le.s32.totalorder 1, %s19
      %p212 = scmp.lt.s32.totalorder %s19, 9
      %p213 = pnand %p211, %p212
      %p214 = pneg %p213
      // Predicated region
      $region9: #{tpu_custom_call.1} parent=5 // pred_check
        _
      $region10: #{tpu_custom_call.1} parent=5 // pred_check_branch
        %216 = sbr.rel (%p213) target = $region12
      $region11: #{tpu_custom_call.1} parent=5 // pred_region
        %s217 = ssub.s32 %s19, 1
        // Predicated region
        $region13: #{tpu_custom_call.1} parent=11 // pred_check
          %p218 = pneg %p156
        $region14: #{tpu_custom_call.1} parent=11 // pred_check_branch
          %220 = sbr.rel (%p218) target = $region16
        $region15: #{tpu_custom_call.1} parent=11 // pred_region
          _
        $region16: #{tpu_custom_call.1} parent=11 // pred_fallthru
          _
        // Predicated region
        $region17: #{tpu_custom_call.1} parent=11 // pred_check
          %p221 = pneg %p177
        $region18: #{tpu_custom_call.1} parent=11 // pred_check_branch
          %223 = sbr.rel (%p221) target = $region20
        $region19: #{tpu_custom_call.1} parent=11 // pred_region
          %s225 = ssub.s32 26624, 26624
          %226 = vsyncadd [#allocation6], %s225
          %s227 = sshll.u32 [#allocation5], 4
          %s228 = int_to_ptr.vmem [resolvable:$true] %s227
          %233 = dma.hbm_to_vmem [thread:$0]  %s5, 26624, %s228, [#allocation6], 512, 512, 32
        $region20: #{tpu_custom_call.1} parent=11 // pred_fallthru
          _
      $region12: #{tpu_custom_call.1} parent=5 // pred_fallthru
        _
      %p234 = scmp.lt.s32.totalorder %s19, 8
      // Predicated region
      $region21: #{tpu_custom_call.1} parent=5 // pred_check
        %p235 = pneg %p234
      $region22: #{tpu_custom_call.1} parent=5 // pred_check_branch
        %237 = sbr.rel (%p235) target = $region24
      $region23: #{tpu_custom_call.1} parent=5 // pred_region
        // Predicated region
        $region25: #{tpu_custom_call.1} parent=23 // pred_check
          %p238 = pneg %p51
        $region26: #{tpu_custom_call.1} parent=23 // pred_check_branch
          %240 = sbr.rel (%p238) target = $region28
        $region27: #{tpu_custom_call.1} parent=23 // pred_region
          %p241 = scmp.lt.s32.totalorder %s26, 1
          %s242 = scalar_select %p241, %s26, 1
          %s243 = smul.addr %s242, 52
          %s244 = smul.addr %s243, 4
          %s245 = scalar_lea.vmem %s0, %s244
        $region28: #{tpu_custom_call.1} parent=23 // pred_fallthru
          _
        // Predicated region
        $region29: #{tpu_custom_call.1} parent=23 // pred_check
          %p246 = pneg %p77
        $region30: #{tpu_custom_call.1} parent=23 // pred_check_branch
          %248 = sbr.rel (%p246) target = $region32
        $region31: #{tpu_custom_call.1} parent=23 // pred_region
          %p249 = scmp.lt.s32.totalorder %s27, 3
          %s250 = scalar_select %p249, %s27, 3
          %s251 = smul.addr %s250, 16
          %s252 = smul.addr %s251, 4
          %s253 = scalar_lea.vmem %s1, %s252
        $region32: #{tpu_custom_call.1} parent=23 // pred_fallthru
          _
        // Predicated region
        $region33: #{tpu_custom_call.1} parent=23 // pred_check
          %p254 = pneg %p103
        $region34: #{tpu_custom_call.1} parent=23 // pred_check_branch
          %256 = sbr.rel (%p254) target = $region36
        $region35: #{tpu_custom_call.1} parent=23 // pred_region
          %p257 = scmp.lt.s32.totalorder %s27, 3
          %s258 = scalar_select %p257, %s27, 3
          %s259 = scalar_lea.vmem %s2, %s258
        $region36: #{tpu_custom_call.1} parent=23 // pred_fallthru
          _
        // Predicated region
        $region37: #{tpu_custom_call.1} parent=23 // pred_check
          %p260 = pneg %p129
        $region38: #{tpu_custom_call.1} parent=23 // pred_check_branch
          %262 = sbr.rel (%p260) target = $region40
        $region39: #{tpu_custom_call.1} parent=23 // pred_region
          %s263 = sand.u32 %s119, 1
          %s264 = scalar_lea.sflag [#allocation3], %s263
          %s265 = sand.u32 %s119, 1
          %s266 = smul.addr %s265, 16
          %s267 = scalar_lea.vmem [#allocation2], %s266
          %s269 = ssub.s32 256, 256
          %270 = vsyncadd %s264, %s269
          %s271 = smul.addr %s27, 4
          %s272 = smul.addr %s271, 64
          %s273 = scalar_lea.hbm %s3, %s272
          %s274 = sshll.u32 %s267, 4
          %s275 = int_to_ptr.vmem [resolvable:$true] %s274
          %280 = dma.hbm_to_vmem [thread:$0]  %s273, 256, %s275, %s264, 64, 64, 4
        $region40: #{tpu_custom_call.1} parent=23 // pred_fallthru
          _
      $region24: #{tpu_custom_call.1} parent=5 // pred_fallthru
        _
      %p281 = scmp.le.s32.totalorder 1, %s19
      %p282 = scmp.lt.s32.totalorder %s19, 9
      %p283 = pnand %p281, %p282
      %p284 = pneg %p283
      // Predicated region
      $region41: #{tpu_custom_call.1} parent=5 // pred_check
        _
      $region42: #{tpu_custom_call.1} parent=5 // pred_check_branch
        %286 = sbr.rel (%p283) target = $region44
      $region43: #{tpu_custom_call.1} parent=5 // pred_region
        %s287 = ssub.s32 %s19, 1
        %s288 = sand.u32 %s122, 1
        %s289 = scalar_lea.sflag [#allocation3], %s288
        %s290 = sand.u32 %s122, 1
        %s291 = smul.addr %s290, 16
        %s292 = scalar_lea.vmem [#allocation2], %s291
        // Predicated region
        $region45: #{tpu_custom_call.1} parent=43 // pred_check
          %p293 = pneg %p135
        $region46: #{tpu_custom_call.1} parent=43 // pred_check_branch
          %295 = sbr.rel (%p293) target = $region48
        $region47: #{tpu_custom_call.1} parent=43 // pred_region
          %296 = dma.done %s289, 256
        $region48: #{tpu_custom_call.1} parent=43 // pred_fallthru
          _
        // Predicated region
        $region49: #{tpu_custom_call.1} parent=43 // pred_check
          %p297 = pneg %p177
        $region50: #{tpu_custom_call.1} parent=43 // pred_check_branch
          %299 = sbr.rel (%p297) target = $region52
        $region51: #{tpu_custom_call.1} parent=43 // pred_region
          %300 = dma.done [#allocation6], 26624
        $region52: #{tpu_custom_call.1} parent=43 // pred_fallthru
          _
        %p301 = scmp.lt.s32.totalorder %s28, 1
        %s302 = scalar_select %p301, %s28, 1
        %s303 = smul.addr %s302, 52
        %s304 = smul.addr %s303, 4
        %s305 = scalar_lea.vmem %s0, %s304
        %p306 = pneg %p57
        %p307 = pneg %p54
        %p308 = scmp.lt.s32.totalorder %s29, 3
        %s309 = scalar_select %p308, %s29, 3
        %s310 = smul.addr %s309, 16
        %s311 = smul.addr %s310, 4
        %s312 = scalar_lea.vmem %s1, %s311
        %p313 = pneg %p83
        %p314 = pneg %p80
        %p315 = scmp.lt.s32.totalorder %s29, 3
        %s316 = scalar_select %p315, %s29, 3
        %s317 = scalar_lea.vmem %s2, %s316
        %p318 = pneg %p109
        %p319 = pneg %p106
        %s320 = sand.u32 %s122, 1
        %s321 = scalar_lea.sflag [#allocation3], %s320
        %s322 = sand.u32 %s122, 1
        %s323 = smul.addr %s322, 16
        %s324 = scalar_lea.vmem [#allocation2], %s323
        %p325 = pneg %p135
        %p326 = pneg %p132
        %p327 = pneg %p156
        %p328 = pneg %p153
        %p329 = pneg %p177
        %p330 = pneg %p174
        %p331 = pneg %p203
        %p332 = pneg %p200
        %s333 = sand.u32 %s190, 1
        %s334 = scalar_lea.sflag [#allocation4], %s333
        %s335 = sand.u32 %s190, 1
        %s336 = smul.addr %s335, 416
        %s337 = scalar_lea.vmem [#allocation7], %s336
        %p338 = scmp.lt.s32.totalorder %s28, 1
        %s339 = scalar_select %p338, %s28, 1
        %s340 = smul.addr %s339, 52
        %s341 = smul.addr %s340, 4
        %s342 = scalar_lea.vmem %s0, %s341
        %p343 = scmp.lt.s32.totalorder %s29, 3
        %s344 = scalar_select %p343, %s29, 3
        %s345 = smul.addr %s344, 16
        %s346 = smul.addr %s345, 4
        %s347 = scalar_lea.vmem %s1, %s346
        %p348 = scmp.lt.s32.totalorder %s29, 3
        %s349 = scalar_select %p348, %s29, 3
        %s350 = scalar_lea.vmem %s2, %s349
        %v352 = vld [vmem:[%s342] sm:$0xf]
        %v353 = vld [vmem:[%s342 + $0x4] sm:$0xf]
        %v354 = vld [vmem:[%s342 + $0x8] sm:$0xf]
        %v355 = vld [vmem:[%s342 + $0xc] sm:$0xf]
        %v356 = vld [vmem:[%s342 + $0x10] sm:$0xf]
        %v357 = vld [vmem:[%s342 + $0x14] sm:$0xf]
        %v358 = vld [vmem:[%s342 + $0x18] sm:$0xf]
        %v359 = vld [vmem:[%s342 + $0x1c] sm:$0xf]
        %v360 = vld [vmem:[%s342 + $0x20] sm:$0xf]
        %v361 = vld [vmem:[%s342 + $0x24] sm:$0xf]
        %v362 = vld [vmem:[%s342 + $0x28] sm:$0xf]
        %v363 = vld [vmem:[%s342 + $0x2c] sm:$0xf]
        %v364 = vld [vmem:[%s342 + $0x30] sm:$0xf]
        %v365 = vld [vmem:[%s342 + $0x34] sm:$0xf]
        %v366 = vld [vmem:[%s342 + $0x38] sm:$0xf]
        %v367 = vld [vmem:[%s342 + $0x3c] sm:$0xf]
        %v368 = vld [vmem:[%s342 + $0x40] sm:$0xf]
        %v369 = vld [vmem:[%s342 + $0x44] sm:$0xf]
        %v370 = vld [vmem:[%s342 + $0x48] sm:$0xf]
        %v371 = vld [vmem:[%s342 + $0x4c] sm:$0xf]
        %v372 = vld [vmem:[%s342 + $0x50] sm:$0xf]
        %v373 = vld [vmem:[%s342 + $0x54] sm:$0xf]
        %v374 = vld [vmem:[%s342 + $0x58] sm:$0xf]
        %v375 = vld [vmem:[%s342 + $0x5c] sm:$0xf]
        %v376 = vld [vmem:[%s342 + $0x60] sm:$0xf]
        %v377 = vld [vmem:[%s342 + $0x64] sm:$0xf]
        %v378 = vld [vmem:[%s342 + $0x68] sm:$0xf]
        %v379 = vld [vmem:[%s342 + $0x6c] sm:$0xf]
        %v380 = vld [vmem:[%s342 + $0x70] sm:$0xf]
        %v381 = vld [vmem:[%s342 + $0x74] sm:$0xf]
        %v382 = vld [vmem:[%s342 + $0x78] sm:$0xf]
        %v383 = vld [vmem:[%s342 + $0x7c] sm:$0xf]
        %v384 = vld [vmem:[%s342 + $0x80] sm:$0xf]
        %v385 = vld [vmem:[%s342 + $0x84] sm:$0xf]
        %v386 = vld [vmem:[%s342 + $0x88] sm:$0xf]
        %v387 = vld [vmem:[%s342 + $0x8c] sm:$0xf]
        %v388 = vld [vmem:[%s342 + $0x90] sm:$0xf]
        %v389 = vld [vmem:[%s342 + $0x94] sm:$0xf]
        %v390 = vld [vmem:[%s342 + $0x98] sm:$0xf]
        %v391 = vld [vmem:[%s342 + $0x9c] sm:$0xf]
        %v392 = vld [vmem:[%s342 + $0xa0] sm:$0xf]
        %v393 = vld [vmem:[%s342 + $0xa4] sm:$0xf]
        %v394 = vld [vmem:[%s342 + $0xa8] sm:$0xf]
        %v395 = vld [vmem:[%s342 + $0xac] sm:$0xf]
        %v396 = vld [vmem:[%s342 + $0xb0] sm:$0xf]
        %v397 = vld [vmem:[%s342 + $0xb4] sm:$0xf]
        %v398 = vld [vmem:[%s342 + $0xb8] sm:$0xf]
        %v399 = vld [vmem:[%s342 + $0xbc] sm:$0xf]
        %v400 = vld [vmem:[%s342 + $0xc0] sm:$0xf]
        %v401 = vld [vmem:[%s342 + $0xc4] sm:$0xf]
        %v402 = vld [vmem:[%s342 + $0xc8] sm:$0xf]
        %v403 = vld [vmem:[%s342 + $0xcc] sm:$0xf]
        %v404 = vld [vmem:[%s347] sm:$0xf]
        %v405 = vld [vmem:[%s347 + $0x4] sm:$0xf]
        %v406 = vld [vmem:[%s347 + $0x8] sm:$0xf]
        %v407 = vld [vmem:[%s347 + $0xc] sm:$0xf]
        %v408 = vld [vmem:[%s347 + $0x10] sm:$0xf]
        %v409 = vld [vmem:[%s347 + $0x14] sm:$0xf]
        %v410 = vld [vmem:[%s347 + $0x18] sm:$0xf]
        %v411 = vld [vmem:[%s347 + $0x1c] sm:$0xf]
        %v412 = vld [vmem:[%s347 + $0x20] sm:$0xf]
        %v413 = vld [vmem:[%s347 + $0x24] sm:$0xf]
        %v414 = vld [vmem:[%s347 + $0x28] sm:$0xf]
        %v415 = vld [vmem:[%s347 + $0x2c] sm:$0xf]
        %v416 = vld [vmem:[%s347 + $0x30] sm:$0xf]
        %v417 = vld [vmem:[%s347 + $0x34] sm:$0xf]
        %v418 = vld [vmem:[%s347 + $0x38] sm:$0xf]
        %v419 = vld [vmem:[%s347 + $0x3c] sm:$0xf]
        %v420 = vld [vmem:[%s350] sm:$0x1]
        %v422 = vlaneseq
        %v423 = vshrl.u32 %v422, 7
        %v424 = vsub.s32 0, %v423
        %v425 = vrot.slane %v420, %v424
        %v479 = vunpack.c.l.b16 %v352
        %v480 = vunpack.c.l.b16 %v353
        %v481 = vunpack.c.l.b16 %v354
        %v482 = vunpack.c.l.b16 %v355
        %v483 = vunpack.c.l.b16 %v356
        %v484 = vunpack.c.l.b16 %v357
        %v485 = vunpack.c.l.b16 %v358
        %v486 = vunpack.c.l.b16 %v359
        %v487 = vunpack.c.l.b16 %v360
        %v488 = vunpack.c.l.b16 %v361
        %v489 = vunpack.c.l.b16 %v362
        %v490 = vunpack.c.l.b16 %v363
        %v491 = vunpack.c.l.b16 %v364
        %v492 = vunpack.c.l.b16 %v365
        %v493 = vunpack.c.l.b16 %v366
        %v494 = vunpack.c.l.b16 %v367
        %v495 = vunpack.c.l.b16 %v368
        %v496 = vunpack.c.l.b16 %v369
        %v497 = vunpack.c.l.b16 %v370
        %v498 = vunpack.c.l.b16 %v371
        %v499 = vunpack.c.l.b16 %v372
        %v500 = vunpack.c.l.b16 %v373
        %v501 = vunpack.c.l.b16 %v374
        %v502 = vunpack.c.l.b16 %v375
        %v503 = vunpack.c.l.b16 %v376
        %v504 = vunpack.c.l.b16 %v377
        %v505 = vunpack.c.l.b16 %v378
        %v506 = vunpack.c.l.b16 %v379
        %v507 = vunpack.c.l.b16 %v380
        %v508 = vunpack.c.l.b16 %v381
        %v509 = vunpack.c.l.b16 %v382
        %v510 = vunpack.c.l.b16 %v383
        %v511 = vunpack.c.l.b16 %v384
        %v512 = vunpack.c.l.b16 %v385
        %v513 = vunpack.c.l.b16 %v386
        %v514 = vunpack.c.l.b16 %v387
        %v515 = vunpack.c.l.b16 %v388
        %v516 = vunpack.c.l.b16 %v389
        %v517 = vunpack.c.l.b16 %v390
        %v518 = vunpack.c.l.b16 %v391
        %v519 = vunpack.c.l.b16 %v392
        %v520 = vunpack.c.l.b16 %v393
        %v521 = vunpack.c.l.b16 %v394
        %v522 = vunpack.c.l.b16 %v395
        %v523 = vunpack.c.l.b16 %v396
        %v524 = vunpack.c.l.b16 %v397
        %v525 = vunpack.c.l.b16 %v398
        %v526 = vunpack.c.l.b16 %v399
        %v527 = vunpack.c.l.b16 %v400
        %v528 = vunpack.c.l.b16 %v401
        %v529 = vunpack.c.l.b16 %v402
        %v530 = vunpack.c.l.b16 %v403
        %v531 = vpack.c.b16 %v480, %v479
        %v532 = vpack.c.b16 %v482, %v481
        %v533 = vpack.c.b16 %v484, %v483
        %v534 = vpack.c.b16 %v486, %v485
        %v535 = vpack.c.b16 %v488, %v487
        %v536 = vpack.c.b16 %v490, %v489
        %v537 = vpack.c.b16 %v492, %v491
        %v538 = vpack.c.b16 %v494, %v493
        %v539 = vpack.c.b16 %v496, %v495
        %v540 = vpack.c.b16 %v498, %v497
        %v541 = vpack.c.b16 %v500, %v499
        %v542 = vpack.c.b16 %v502, %v501
        %v543 = vpack.c.b16 %v504, %v503
        %v544 = vpack.c.b16 %v506, %v505
        %v545 = vpack.c.b16 %v508, %v507
        %v546 = vpack.c.b16 %v510, %v509
        %v547 = vpack.c.b16 %v512, %v511
        %v548 = vpack.c.b16 %v514, %v513
        %v549 = vpack.c.b16 %v516, %v515
        %v550 = vpack.c.b16 %v518, %v517
        %v551 = vpack.c.b16 %v520, %v519
        %v552 = vpack.c.b16 %v522, %v521
        %v553 = vpack.c.b16 %v524, %v523
        %v554 = vpack.c.b16 %v526, %v525
        %v555 = vpack.c.b16 %v528, %v527
        %v556 = vpack.c.b16 %v530, %v529
        %v599 = vunpack.c.l.b16 %v404
        %v600 = vunpack.c.l.b16 %v405
        %v601 = vunpack.c.l.b16 %v406
        %v602 = vunpack.c.l.b16 %v407
        %v603 = vunpack.c.l.b16 %v408
        %v604 = vunpack.c.l.b16 %v409
        %v605 = vunpack.c.l.b16 %v410
        %v606 = vunpack.c.l.b16 %v411
        %v607 = vunpack.c.l.b16 %v412
        %v608 = vunpack.c.l.b16 %v413
        %v609 = vunpack.c.l.b16 %v414
        %v610 = vunpack.c.l.b16 %v415
        %v611 = vunpack.c.l.b16 %v416
        %v612 = vunpack.c.l.b16 %v417
        %v613 = vunpack.c.l.b16 %v418
        %v614 = vunpack.c.l.b16 %v419
        %v615 = vpack.c.b16 %v600, %v599
        %v616 = vpack.c.b16 %v602, %v601
        %v617 = vpack.c.b16 %v604, %v603
        %v618 = vpack.c.b16 %v606, %v605
        %v619 = vpack.c.b16 %v608, %v607
        %v620 = vpack.c.b16 %v610, %v609
        %v621 = vpack.c.b16 %v612, %v611
        %v622 = vpack.c.b16 %v614, %v613
        %631 = vmatprep.subr.bf16.mxu0 0
        %632 = vmatpush1.bf16.msra.mxu0 %v615
        %633 = vmatprep.subr.bf16.mxu0 0
        %634 = vmatpush1.bf16.msra.mxu0 %v616
        %635 = vmatprep.subr.bf16.mxu0 0
        %636 = vmatpush1.bf16.msra.mxu0 %v617
        %637 = vmatprep.subr.bf16.mxu0 0
        %638 = vmatpush1.bf16.msra.mxu0 %v618
        %639 = vmatprep.subr.bf16.mxu0 0
        %640 = vmatpush1.bf16.msra.mxu0 %v619
        %641 = vmatprep.subr.bf16.mxu0 0
        %642 = vmatpush1.bf16.msra.mxu0 %v620
        %643 = vmatprep.subr.bf16.mxu0 0
        %644 = vmatpush1.bf16.msra.mxu0 %v621
        %645 = vmatprep.subr.bf16.mxu0 0
        %646 = vmatpush1.bf16.msra.mxu0 %v622
        %647 = vmatprep.subr.bf16.mxu0 0
        %648 = vmatpush1.bf16.msra.mxu0 0
        %649 = vmatprep.subr.bf16.mxu0 0
        %650 = vmatpush1.bf16.msra.mxu0 0
        %651 = vmatprep.subr.bf16.mxu0 0
        %652 = vmatpush1.bf16.msra.mxu0 0
        %653 = vmatprep.subr.bf16.mxu0 0
        %654 = vmatpush1.bf16.msra.mxu0 0
        %655 = vmatprep.subr.bf16.mxu0 0
        %656 = vmatpush1.bf16.msra.mxu0 0
        %657 = vmatprep.subr.bf16.mxu0 0
        %658 = vmatpush1.bf16.msra.mxu0 0
        %659 = vmatprep.subr.bf16.mxu0 0
        %660 = vmatpush1.bf16.msra.mxu0 0
        %661 = vmatprep.subr.bf16.mxu0 0
        %662 = vmatpush1.bf16.msra.mxu0 0
        %663 = vmatprep.mubr.bf16.mxu0 0
        %664 = vmatmul.mubr.bf16.gmra.mrb[0].mxu0 %v531
        %v665 = vpop.f32.mrb[0].mxu0
        %v666 = vadd.f32 %v425, %v665
        %v667 = vpop.f32.mrb[0].mxu0
        %v668 = vpop.f32.mrb[0].mxu0
        %v669 = vadd.f32 %v425, %v668
        %v670 = vpop.f32.mrb[0].mxu0
        %671 = vmatprep.mubr.bf16.mxu0 0
        %672 = vmatmul.mubr.bf16.gmra.mrb[0].mxu0 %v532
        %v673 = vpop.f32.mrb[0].mxu0
        %v674 = vadd.f32 %v425, %v673
        %v675 = vpop.f32.mrb[0].mxu0
        %v676 = vpop.f32.mrb[0].mxu0
        %v677 = vadd.f32 %v425, %v676
        %v678 = vpop.f32.mrb[0].mxu0
        %679 = vmatprep.mubr.bf16.mxu0 0
        %680 = vmatmul.mubr.bf16.gmra.mrb[0].mxu0 %v533
        %v681 = vpop.f32.mrb[0].mxu0
        %v682 = vadd.f32 %v425, %v681
        %v683 = vpop.f32.mrb[0].mxu0
        %v684 = vpop.f32.mrb[0].mxu0
        %v685 = vadd.f32 %v425, %v684
        %v686 = vpop.f32.mrb[0].mxu0
        %687 = vmatprep.mubr.bf16.mxu0 0
        %688 = vmatmul.mubr.bf16.gmra.mrb[0].mxu0 %v534
        %v689 = vpop.f32.mrb[0].mxu0
        %v690 = vadd.f32 %v425, %v689
        %v691 = vpop.f32.mrb[0].mxu0
        %v692 = vpop.f32.mrb[0].mxu0
        %v693 = vadd.f32 %v425, %v692
        %v694 = vpop.f32.mrb[0].mxu0
        %695 = vmatprep.mubr.bf16.mxu0 0
        %696 = vmatmul.mubr.bf16.gmra.mrb[0].mxu0 %v535
        %v697 = vpop.f32.mrb[0].mxu0
        %v698 = vadd.f32 %v425, %v697
        %v699 = vpop.f32.mrb[0].mxu0
        %v700 = vpop.f32.mrb[0].mxu0
        %v701 = vadd.f32 %v425, %v700
        %v702 = vpop.f32.mrb[0].mxu0
        %703 = vmatprep.mubr.bf16.mxu0 0
        %704 = vmatmul.mubr.bf16.gmra.mrb[0].mxu0 %v536
        %v705 = vpop.f32.mrb[0].mxu0
        %v706 = vadd.f32 %v425, %v705
        %v707 = vpop.f32.mrb[0].mxu0
        %v708 = vpop.f32.mrb[0].mxu0
        %v709 = vadd.f32 %v425, %v708
        %v710 = vpop.f32.mrb[0].mxu0
        %711 = vmatprep.mubr.bf16.mxu0 0
        %712 = vmatmul.mubr.bf16.gmra.mrb[0].mxu0 %v537
        %v713 = vpop.f32.mrb[0].mxu0
        %v714 = vadd.f32 %v425, %v713
        %v715 = vpop.f32.mrb[0].mxu0
        %v716 = vpop.f32.mrb[0].mxu0
        %v717 = vadd.f32 %v425, %v716
        %v718 = vpop.f32.mrb[0].mxu0
        %719 = vmatprep.mubr.bf16.mxu0 0
        %720 = vmatmul.mubr.bf16.gmra.mrb[0].mxu0 %v538
        %v721 = vpop.f32.mrb[0].mxu0
        %v722 = vadd.f32 %v425, %v721
        %v723 = vpop.f32.mrb[0].mxu0
        %v724 = vpop.f32.mrb[0].mxu0
        %v725 = vadd.f32 %v425, %v724
        %v726 = vpop.f32.mrb[0].mxu0
        %727 = vmatprep.mubr.bf16.mxu0 0
        %728 = vmatmul.mubr.bf16.gmra.mrb[0].mxu0 %v539
        %v729 = vpop.f32.mrb[0].mxu0
        %v730 = vadd.f32 %v425, %v729
        %v731 = vpop.f32.mrb[0].mxu0
        %v732 = vpop.f32.mrb[0].mxu0
        %v733 = vadd.f32 %v425, %v732
        %v734 = vpop.f32.mrb[0].mxu0
        %735 = vmatprep.mubr.bf16.mxu0 0
        %736 = vmatmul.mubr.bf16.gmra.mrb[0].mxu0 %v540
        %v737 = vpop.f32.mrb[0].mxu0
        %v738 = vadd.f32 %v425, %v737
        %v739 = vpop.f32.mrb[0].mxu0
        %v740 = vpop.f32.mrb[0].mxu0
        %v741 = vadd.f32 %v425, %v740
        %v742 = vpop.f32.mrb[0].mxu0
        %743 = vmatprep.mubr.bf16.mxu0 0
        %744 = vmatmul.mubr.bf16.gmra.mrb[0].mxu0 %v541
        %v745 = vpop.f32.mrb[0].mxu0
        %v746 = vadd.f32 %v425, %v745
        %v747 = vpop.f32.mrb[0].mxu0
        %v748 = vpop.f32.mrb[0].mxu0
        %v749 = vadd.f32 %v425, %v748
        %v750 = vpop.f32.mrb[0].mxu0
        %751 = vmatprep.mubr.bf16.mxu0 0
        %752 = vmatmul.mubr.bf16.gmra.mrb[0].mxu0 %v542
        %v753 = vpop.f32.mrb[0].mxu0
        %v754 = vadd.f32 %v425, %v753
        %v755 = vpop.f32.mrb[0].mxu0
        %v756 = vpop.f32.mrb[0].mxu0
        %v757 = vadd.f32 %v425, %v756
        %v758 = vpop.f32.mrb[0].mxu0
        %759 = vmatprep.mubr.bf16.mxu0 0
        %760 = vmatmul.mubr.bf16.gmra.mrb[0].mxu0 %v543
        %v761 = vpop.f32.mrb[0].mxu0
        %v762 = vadd.f32 %v425, %v761
        %v763 = vpop.f32.mrb[0].mxu0
        %v764 = vpop.f32.mrb[0].mxu0
        %v765 = vadd.f32 %v425, %v764
        %v766 = vpop.f32.mrb[0].mxu0
        %767 = vmatprep.mubr.bf16.mxu0 0
        %768 = vmatmul.mubr.bf16.gmra.mrb[0].mxu0 %v544
        %v769 = vpop.f32.mrb[0].mxu0
        %v770 = vadd.f32 %v425, %v769
        %v771 = vpop.f32.mrb[0].mxu0
        %v772 = vpop.f32.mrb[0].mxu0
        %v773 = vadd.f32 %v425, %v772
        %v774 = vpop.f32.mrb[0].mxu0
        %775 = vmatprep.mubr.bf16.mxu0 0
        %776 = vmatmul.mubr.bf16.gmra.mrb[0].mxu0 %v545
        %v777 = vpop.f32.mrb[0].mxu0
        %v778 = vadd.f32 %v425, %v777
        %v779 = vpop.f32.mrb[0].mxu0
        %v780 = vpop.f32.mrb[0].mxu0
        %v781 = vadd.f32 %v425, %v780
        %v782 = vpop.f32.mrb[0].mxu0
        %783 = vmatprep.mubr.bf16.mxu0 0
        %784 = vmatmul.mubr.bf16.gmra.mrb[0].mxu0 %v546
        %v785 = vpop.f32.mrb[0].mxu0
        %v786 = vadd.f32 %v425, %v785
        %v787 = vpop.f32.mrb[0].mxu0
        %v788 = vpop.f32.mrb[0].mxu0
        %v789 = vadd.f32 %v425, %v788
        %v790 = vpop.f32.mrb[0].mxu0
        %791 = vmatprep.mubr.bf16.mxu0 0
        %792 = vmatmul.mubr.bf16.gmra.mrb[0].mxu0 %v547
        %v793 = vpop.f32.mrb[0].mxu0
        %v794 = vadd.f32 %v425, %v793
        %v795 = vpop.f32.mrb[0].mxu0
        %v796 = vpop.f32.mrb[0].mxu0
        %v797 = vadd.f32 %v425, %v796
        %v798 = vpop.f32.mrb[0].mxu0
        %799 = vmatprep.mubr.bf16.mxu0 0
        %800 = vmatmul.mubr.bf16.gmra.mrb[0].mxu0 %v548
        %v801 = vpop.f32.mrb[0].mxu0
        %v802 = vadd.f32 %v425, %v801
        %v803 = vpop.f32.mrb[0].mxu0
        %v804 = vpop.f32.mrb[0].mxu0
        %v805 = vadd.f32 %v425, %v804
        %v806 = vpop.f32.mrb[0].mxu0
        %807 = vmatprep.mubr.bf16.mxu0 0
        %808 = vmatmul.mubr.bf16.gmra.mrb[0].mxu0 %v549
        %v809 = vpop.f32.mrb[0].mxu0
        %v810 = vadd.f32 %v425, %v809
        %v811 = vpop.f32.mrb[0].mxu0
        %v812 = vpop.f32.mrb[0].mxu0
        %v813 = vadd.f32 %v425, %v812
        %v814 = vpop.f32.mrb[0].mxu0
        %815 = vmatprep.mubr.bf16.mxu0 0
        %816 = vmatmul.mubr.bf16.gmra.mrb[0].mxu0 %v550
        %v817 = vpop.f32.mrb[0].mxu0
        %v818 = vadd.f32 %v425, %v817
        %v819 = vpop.f32.mrb[0].mxu0
        %v820 = vpop.f32.mrb[0].mxu0
        %v821 = vadd.f32 %v425, %v820
        %v822 = vpop.f32.mrb[0].mxu0
        %823 = vmatprep.mubr.bf16.mxu0 0
        %824 = vmatmul.mubr.bf16.gmra.mrb[0].mxu0 %v551
        %v825 = vpop.f32.mrb[0].mxu0
        %v826 = vadd.f32 %v425, %v825
        %v827 = vpop.f32.mrb[0].mxu0
        %v828 = vpop.f32.mrb[0].mxu0
        %v829 = vadd.f32 %v425, %v828
        %v830 = vpop.f32.mrb[0].mxu0
        %831 = vmatprep.mubr.bf16.mxu0 0
        %832 = vmatmul.mubr.bf16.gmra.mrb[0].mxu0 %v552
        %v833 = vpop.f32.mrb[0].mxu0
        %v834 = vadd.f32 %v425, %v833
        %v835 = vpop.f32.mrb[0].mxu0
        %v836 = vpop.f32.mrb[0].mxu0
        %v837 = vadd.f32 %v425, %v836
        %v838 = vpop.f32.mrb[0].mxu0
        %839 = vmatprep.mubr.bf16.mxu0 0
        %840 = vmatmul.mubr.bf16.gmra.mrb[0].mxu0 %v553
        %v841 = vpop.f32.mrb[0].mxu0
        %v842 = vadd.f32 %v425, %v841
        %v843 = vpop.f32.mrb[0].mxu0
        %v844 = vpop.f32.mrb[0].mxu0
        %v845 = vadd.f32 %v425, %v844
        %v846 = vpop.f32.mrb[0].mxu0
        %847 = vmatprep.mubr.bf16.mxu0 0
        %848 = vmatmul.mubr.bf16.gmra.mrb[0].mxu0 %v554
        %v849 = vpop.f32.mrb[0].mxu0
        %v850 = vadd.f32 %v425, %v849
        %v851 = vpop.f32.mrb[0].mxu0
        %v852 = vpop.f32.mrb[0].mxu0
        %v853 = vadd.f32 %v425, %v852
        %v854 = vpop.f32.mrb[0].mxu0
        %855 = vmatprep.mubr.bf16.mxu0 0
        %856 = vmatmul.mubr.bf16.gmra.mrb[0].mxu0 %v555
        %v857 = vpop.f32.mrb[0].mxu0
        %v858 = vadd.f32 %v425, %v857
        %v859 = vpop.f32.mrb[0].mxu0
        %v860 = vpop.f32.mrb[0].mxu0
        %v861 = vadd.f32 %v425, %v860
        %v862 = vpop.f32.mrb[0].mxu0
        %863 = vmatprep.mubr.bf16.mxu0 0
        %864 = vmatmul.mubr.bf16.gmra.mrb[0].mxu0 %v556
        %v865 = vpop.f32.mrb[0].mxu0
        %v866 = vadd.f32 %v425, %v865
        %v867 = vpop.f32.mrb[0].mxu0
        %v868 = vpop.f32.mrb[0].mxu0
        %v869 = vadd.f32 %v425, %v868
        %v870 = vpop.f32.mrb[0].mxu0
        %871 = vdwg.mxu0
        %v872 = vld [vmem:[#allocation5] sm:$0xff]
        %v873 = vld [vmem:[#allocation5 + $0x8] sm:$0xff]
        %v874 = vld [vmem:[#allocation5 + $0x10] sm:$0xff]
        %v875 = vld [vmem:[#allocation5 + $0x18] sm:$0xff]
        %v876 = vld [vmem:[#allocation5 + $0x20] sm:$0xff]
        %v877 = vld [vmem:[#allocation5 + $0x28] sm:$0xff]
        %v878 = vld [vmem:[#allocation5 + $0x30] sm:$0xff]
        %v879 = vld [vmem:[#allocation5 + $0x38] sm:$0xff]
        %v880 = vld [vmem:[#allocation5 + $0x40] sm:$0xff]
        %v881 = vld [vmem:[#allocation5 + $0x48] sm:$0xff]
        %v882 = vld [vmem:[#allocation5 + $0x50] sm:$0xff]
        %v883 = vld [vmem:[#allocation5 + $0x58] sm:$0xff]
        %v884 = vld [vmem:[#allocation5 + $0x60] sm:$0xff]
        %v885 = vld [vmem:[#allocation5 + $0x68] sm:$0xff]
        %v886 = vld [vmem:[#allocation5 + $0x70] sm:$0xff]
        %v887 = vld [vmem:[#allocation5 + $0x78] sm:$0xff]
        %v888 = vld [vmem:[#allocation5 + $0x80] sm:$0xff]
        %v889 = vld [vmem:[#allocation5 + $0x88] sm:$0xff]
        %v890 = vld [vmem:[#allocation5 + $0x90] sm:$0xff]
        %v891 = vld [vmem:[#allocation5 + $0x98] sm:$0xff]
        %v892 = vld [vmem:[#allocation5 + $0xa0] sm:$0xff]
        %v893 = vld [vmem:[#allocation5 + $0xa8] sm:$0xff]
        %v894 = vld [vmem:[#allocation5 + $0xb0] sm:$0xff]
        %v895 = vld [vmem:[#allocation5 + $0xb8] sm:$0xff]
        %v896 = vld [vmem:[#allocation5 + $0xc0] sm:$0xff]
        %v897 = vld [vmem:[#allocation5 + $0xc8] sm:$0xff]
        %v898 = vld [vmem:[#allocation5 + $0xd0] sm:$0xff]
        %v899 = vld [vmem:[#allocation5 + $0xd8] sm:$0xff]
        %v900 = vld [vmem:[#allocation5 + $0xe0] sm:$0xff]
        %v901 = vld [vmem:[#allocation5 + $0xe8] sm:$0xff]
        %v902 = vld [vmem:[#allocation5 + $0xf0] sm:$0xff]
        %v903 = vld [vmem:[#allocation5 + $0xf8] sm:$0xff]
        %v904 = vld [vmem:[#allocation5 + $0x100] sm:$0xff]
        %v905 = vld [vmem:[#allocation5 + $0x108] sm:$0xff]
        %v906 = vld [vmem:[#allocation5 + $0x110] sm:$0xff]
        %v907 = vld [vmem:[#allocation5 + $0x118] sm:$0xff]
        %v908 = vld [vmem:[#allocation5 + $0x120] sm:$0xff]
        %v909 = vld [vmem:[#allocation5 + $0x128] sm:$0xff]
        %v910 = vld [vmem:[#allocation5 + $0x130] sm:$0xff]
        %v911 = vld [vmem:[#allocation5 + $0x138] sm:$0xff]
        %v912 = vld [vmem:[#allocation5 + $0x140] sm:$0xff]
        %v913 = vld [vmem:[#allocation5 + $0x148] sm:$0xff]
        %v914 = vld [vmem:[#allocation5 + $0x150] sm:$0xff]
        %v915 = vld [vmem:[#allocation5 + $0x158] sm:$0xff]
        %v916 = vld [vmem:[#allocation5 + $0x160] sm:$0xff]
        %v917 = vld [vmem:[#allocation5 + $0x168] sm:$0xff]
        %v918 = vld [vmem:[#allocation5 + $0x170] sm:$0xff]
        %v919 = vld [vmem:[#allocation5 + $0x178] sm:$0xff]
        %v920 = vld [vmem:[#allocation5 + $0x180] sm:$0xff]
        %v921 = vld [vmem:[#allocation5 + $0x188] sm:$0xff]
        %v922 = vld [vmem:[#allocation5 + $0x190] sm:$0xff]
        %v923 = vld [vmem:[#allocation5 + $0x198] sm:$0xff]
        %v924 = vld [vmem:[#allocation5 + $0x1a0] sm:$0xff]
        %v925 = vld [vmem:[#allocation5 + $0x1a8] sm:$0xff]
        %v926 = vld [vmem:[#allocation5 + $0x1b0] sm:$0xff]
        %v927 = vld [vmem:[#allocation5 + $0x1b8] sm:$0xff]
        %v928 = vld [vmem:[#allocation5 + $0x1c0] sm:$0xff]
        %v929 = vld [vmem:[#allocation5 + $0x1c8] sm:$0xff]
        %v930 = vld [vmem:[#allocation5 + $0x1d0] sm:$0xff]
        %v931 = vld [vmem:[#allocation5 + $0x1d8] sm:$0xff]
        %v932 = vld [vmem:[#allocation5 + $0x1e0] sm:$0xff]
        %v933 = vld [vmem:[#allocation5 + $0x1e8] sm:$0xff]
        %v934 = vld [vmem:[#allocation5 + $0x1f0] sm:$0xff]
        %v935 = vld [vmem:[#allocation5 + $0x1f8] sm:$0xff]
        %v936 = vld [vmem:[#allocation5 + $0x200] sm:$0xff]
        %v937 = vld [vmem:[#allocation5 + $0x208] sm:$0xff]
        %v938 = vld [vmem:[#allocation5 + $0x210] sm:$0xff]
        %v939 = vld [vmem:[#allocation5 + $0x218] sm:$0xff]
        %v940 = vld [vmem:[#allocation5 + $0x220] sm:$0xff]
        %v941 = vld [vmem:[#allocation5 + $0x228] sm:$0xff]
        %v942 = vld [vmem:[#allocation5 + $0x230] sm:$0xff]
        %v943 = vld [vmem:[#allocation5 + $0x238] sm:$0xff]
        %v944 = vld [vmem:[#allocation5 + $0x240] sm:$0xff]
        %v945 = vld [vmem:[#allocation5 + $0x248] sm:$0xff]
        %v946 = vld [vmem:[#allocation5 + $0x250] sm:$0xff]
        %v947 = vld [vmem:[#allocation5 + $0x258] sm:$0xff]
        %v948 = vld [vmem:[#allocation5 + $0x260] sm:$0xff]
        %v949 = vld [vmem:[#allocation5 + $0x268] sm:$0xff]
        %v950 = vld [vmem:[#allocation5 + $0x270] sm:$0xff]
        %v951 = vld [vmem:[#allocation5 + $0x278] sm:$0xff]
        %v952 = vld [vmem:[#allocation5 + $0x280] sm:$0xff]
        %v953 = vld [vmem:[#allocation5 + $0x288] sm:$0xff]
        %v954 = vld [vmem:[#allocation5 + $0x290] sm:$0xff]
        %v955 = vld [vmem:[#allocation5 + $0x298] sm:$0xff]
        %v956 = vld [vmem:[#allocation5 + $0x2a0] sm:$0xff]
        %v957 = vld [vmem:[#allocation5 + $0x2a8] sm:$0xff]
        %v958 = vld [vmem:[#allocation5 + $0x2b0] sm:$0xff]
        %v959 = vld [vmem:[#allocation5 + $0x2b8] sm:$0xff]
        %v960 = vld [vmem:[#allocation5 + $0x2c0] sm:$0xff]
        %v961 = vld [vmem:[#allocation5 + $0x2c8] sm:$0xff]
        %v962 = vld [vmem:[#allocation5 + $0x2d0] sm:$0xff]
        %v963 = vld [vmem:[#allocation5 + $0x2d8] sm:$0xff]
        %v964 = vld [vmem:[#allocation5 + $0x2e0] sm:$0xff]
        %v965 = vld [vmem:[#allocation5 + $0x2e8] sm:$0xff]
        %v966 = vld [vmem:[#allocation5 + $0x2f0] sm:$0xff]
        %v967 = vld [vmem:[#allocation5 + $0x2f8] sm:$0xff]
        %v968 = vld [vmem:[#allocation5 + $0x300] sm:$0xff]
        %v969 = vld [vmem:[#allocation5 + $0x308] sm:$0xff]
        %v970 = vld [vmem:[#allocation5 + $0x310] sm:$0xff]
        %v971 = vld [vmem:[#allocation5 + $0x318] sm:$0xff]
        %v972 = vld [vmem:[#allocation5 + $0x320] sm:$0xff]
        %v973 = vld [vmem:[#allocation5 + $0x328] sm:$0xff]
        %v974 = vld [vmem:[#allocation5 + $0x330] sm:$0xff]
        %v975 = vld [vmem:[#allocation5 + $0x338] sm:$0xff]
        %v976 = vld [vmem:[#allocation5 + $0x340] sm:$0xff]
        %v977 = vld [vmem:[#allocation5 + $0x348] sm:$0xff]
        %v978 = vld [vmem:[#allocation5 + $0x350] sm:$0xff]
        %v979 = vld [vmem:[#allocation5 + $0x358] sm:$0xff]
        %v980 = vld [vmem:[#allocation5 + $0x360] sm:$0xff]
        %v981 = vld [vmem:[#allocation5 + $0x368] sm:$0xff]
        %v982 = vld [vmem:[#allocation5 + $0x370] sm:$0xff]
        %v983 = vld [vmem:[#allocation5 + $0x378] sm:$0xff]
        %v984 = vld [vmem:[#allocation5 + $0x380] sm:$0xff]
        %v985 = vld [vmem:[#allocation5 + $0x388] sm:$0xff]
        %v986 = vld [vmem:[#allocation5 + $0x390] sm:$0xff]
        %v987 = vld [vmem:[#allocation5 + $0x398] sm:$0xff]
        %v988 = vld [vmem:[#allocation5 + $0x3a0] sm:$0xff]
        %v989 = vld [vmem:[#allocation5 + $0x3a8] sm:$0xff]
        %v990 = vld [vmem:[#allocation5 + $0x3b0] sm:$0xff]
        %v991 = vld [vmem:[#allocation5 + $0x3b8] sm:$0xff]
        %v992 = vld [vmem:[#allocation5 + $0x3c0] sm:$0xff]
        %v993 = vld [vmem:[#allocation5 + $0x3c8] sm:$0xff]
        %v994 = vld [vmem:[#allocation5 + $0x3d0] sm:$0xff]
        %v995 = vld [vmem:[#allocation5 + $0x3d8] sm:$0xff]
        %v996 = vld [vmem:[#allocation5 + $0x3e0] sm:$0xff]
        %v997 = vld [vmem:[#allocation5 + $0x3e8] sm:$0xff]
        %v998 = vld [vmem:[#allocation5 + $0x3f0] sm:$0xff]
        %v999 = vld [vmem:[#allocation5 + $0x3f8] sm:$0xff]
        %v1000 = vld [vmem:[#allocation5 + $0x400] sm:$0xff]
        %v1001 = vld [vmem:[#allocation5 + $0x408] sm:$0xff]
        %v1002 = vld [vmem:[#allocation5 + $0x410] sm:$0xff]
        %v1003 = vld [vmem:[#allocation5 + $0x418] sm:$0xff]
        %v1004 = vld [vmem:[#allocation5 + $0x420] sm:$0xff]
        %v1005 = vld [vmem:[#allocation5 + $0x428] sm:$0xff]
        %v1006 = vld [vmem:[#allocation5 + $0x430] sm:$0xff]
        %v1007 = vld [vmem:[#allocation5 + $0x438] sm:$0xff]
        %v1008 = vld [vmem:[#allocation5 + $0x440] sm:$0xff]
        %v1009 = vld [vmem:[#allocation5 + $0x448] sm:$0xff]
        %v1010 = vld [vmem:[#allocation5 + $0x450] sm:$0xff]
        %v1011 = vld [vmem:[#allocation5 + $0x458] sm:$0xff]
        %v1012 = vld [vmem:[#allocation5 + $0x460] sm:$0xff]
        %v1013 = vld [vmem:[#allocation5 + $0x468] sm:$0xff]
        %v1014 = vld [vmem:[#allocation5 + $0x470] sm:$0xff]
        %v1015 = vld [vmem:[#allocation5 + $0x478] sm:$0xff]
        %v1016 = vld [vmem:[#allocation5 + $0x480] sm:$0xff]
        %v1017 = vld [vmem:[#allocation5 + $0x488] sm:$0xff]
        %v1018 = vld [vmem:[#allocation5 + $0x490] sm:$0xff]
        %v1019 = vld [vmem:[#allocation5 + $0x498] sm:$0xff]
        %v1020 = vld [vmem:[#allocation5 + $0x4a0] sm:$0xff]
        %v1021 = vld [vmem:[#allocation5 + $0x4a8] sm:$0xff]
        %v1022 = vld [vmem:[#allocation5 + $0x4b0] sm:$0xff]
        %v1023 = vld [vmem:[#allocation5 + $0x4b8] sm:$0xff]
        %v1024 = vld [vmem:[#allocation5 + $0x4c0] sm:$0xff]
        %v1025 = vld [vmem:[#allocation5 + $0x4c8] sm:$0xff]
        %v1026 = vld [vmem:[#allocation5 + $0x4d0] sm:$0xff]
        %v1027 = vld [vmem:[#allocation5 + $0x4d8] sm:$0xff]
        %v1028 = vld [vmem:[#allocation5 + $0x4e0] sm:$0xff]
        %v1029 = vld [vmem:[#allocation5 + $0x4e8] sm:$0xff]
        %v1030 = vld [vmem:[#allocation5 + $0x4f0] sm:$0xff]
        %v1031 = vld [vmem:[#allocation5 + $0x4f8] sm:$0xff]
        %v1032 = vld [vmem:[#allocation5 + $0x500] sm:$0xff]
        %v1033 = vld [vmem:[#allocation5 + $0x508] sm:$0xff]
        %v1034 = vld [vmem:[#allocation5 + $0x510] sm:$0xff]
        %v1035 = vld [vmem:[#allocation5 + $0x518] sm:$0xff]
        %v1036 = vld [vmem:[#allocation5 + $0x520] sm:$0xff]
        %v1037 = vld [vmem:[#allocation5 + $0x528] sm:$0xff]
        %v1038 = vld [vmem:[#allocation5 + $0x530] sm:$0xff]
        %v1039 = vld [vmem:[#allocation5 + $0x538] sm:$0xff]
        %v1040 = vld [vmem:[#allocation5 + $0x540] sm:$0xff]
        %v1041 = vld [vmem:[#allocation5 + $0x548] sm:$0xff]
        %v1042 = vld [vmem:[#allocation5 + $0x550] sm:$0xff]
        %v1043 = vld [vmem:[#allocation5 + $0x558] sm:$0xff]
        %v1044 = vld [vmem:[#allocation5 + $0x560] sm:$0xff]
        %v1045 = vld [vmem:[#allocation5 + $0x568] sm:$0xff]
        %v1046 = vld [vmem:[#allocation5 + $0x570] sm:$0xff]
        %v1047 = vld [vmem:[#allocation5 + $0x578] sm:$0xff]
        %v1048 = vld [vmem:[#allocation5 + $0x580] sm:$0xff]
        %v1049 = vld [vmem:[#allocation5 + $0x588] sm:$0xff]
        %v1050 = vld [vmem:[#allocation5 + $0x590] sm:$0xff]
        %v1051 = vld [vmem:[#allocation5 + $0x598] sm:$0xff]
        %v1052 = vld [vmem:[#allocation5 + $0x5a0] sm:$0xff]
        %v1053 = vld [vmem:[#allocation5 + $0x5a8] sm:$0xff]
        %v1054 = vld [vmem:[#allocation5 + $0x5b0] sm:$0xff]
        %v1055 = vld [vmem:[#allocation5 + $0x5b8] sm:$0xff]
        %v1056 = vld [vmem:[#allocation5 + $0x5c0] sm:$0xff]
        %v1057 = vld [vmem:[#allocation5 + $0x5c8] sm:$0xff]
        %v1058 = vld [vmem:[#allocation5 + $0x5d0] sm:$0xff]
        %v1059 = vld [vmem:[#allocation5 + $0x5d8] sm:$0xff]
        %v1060 = vld [vmem:[#allocation5 + $0x5e0] sm:$0xff]
        %v1061 = vld [vmem:[#allocation5 + $0x5e8] sm:$0xff]
        %v1062 = vld [vmem:[#allocation5 + $0x5f0] sm:$0xff]
        %v1063 = vld [vmem:[#allocation5 + $0x5f8] sm:$0xff]
        %v1064 = vld [vmem:[#allocation5 + $0x600] sm:$0xff]
        %v1065 = vld [vmem:[#allocation5 + $0x608] sm:$0xff]
        %v1066 = vld [vmem:[#allocation5 + $0x610] sm:$0xff]
        %v1067 = vld [vmem:[#allocation5 + $0x618] sm:$0xff]
        %v1068 = vld [vmem:[#allocation5 + $0x620] sm:$0xff]
        %v1069 = vld [vmem:[#allocation5 + $0x628] sm:$0xff]
        %v1070 = vld [vmem:[#allocation5 + $0x630] sm:$0xff]
        %v1071 = vld [vmem:[#allocation5 + $0x638] sm:$0xff]
        %v1072 = vld [vmem:[#allocation5 + $0x640] sm:$0xff]
        %v1073 = vld [vmem:[#allocation5 + $0x648] sm:$0xff]
        %v1074 = vld [vmem:[#allocation5 + $0x650] sm:$0xff]
        %v1075 = vld [vmem:[#allocation5 + $0x658] sm:$0xff]
        %v1076 = vld [vmem:[#allocation5 + $0x660] sm:$0xff]
        %v1077 = vld [vmem:[#allocation5 + $0x668] sm:$0xff]
        %v1078 = vld [vmem:[#allocation5 + $0x670] sm:$0xff]
        %v1079 = vld [vmem:[#allocation5 + $0x678] sm:$0xff]
        %1132 = vrot.lane.b32.xlu0 %v666, 96
        %v1133 = vpop.permute.xlu0 %1132
        %1134 = vrot.lane.b32.xlu0 %v669, 96
        %v1135 = vpop.permute.xlu0 %1134
        %1136 = vrot.lane.b32.xlu0 %v674, 96
        %v1137 = vpop.permute.xlu0 %1136
        %1138 = vrot.lane.b32.xlu0 %v677, 96
        %v1139 = vpop.permute.xlu0 %1138
        %1140 = vrot.lane.b32.xlu0 %v682, 96
        %v1141 = vpop.permute.xlu0 %1140
        %1142 = vrot.lane.b32.xlu0 %v685, 96
        %v1143 = vpop.permute.xlu0 %1142
        %1144 = vrot.lane.b32.xlu0 %v690, 96
        %v1145 = vpop.permute.xlu0 %1144
        %1146 = vrot.lane.b32.xlu0 %v693, 96
        %v1147 = vpop.permute.xlu0 %1146
        %1148 = vrot.lane.b32.xlu0 %v698, 96
        %v1149 = vpop.permute.xlu0 %1148
        %1150 = vrot.lane.b32.xlu0 %v701, 96
        %v1151 = vpop.permute.xlu0 %1150
        %1152 = vrot.lane.b32.xlu0 %v706, 96
        %v1153 = vpop.permute.xlu0 %1152
        %1154 = vrot.lane.b32.xlu0 %v709, 96
        %v1155 = vpop.permute.xlu0 %1154
        %1156 = vrot.lane.b32.xlu0 %v714, 96
        %v1157 = vpop.permute.xlu0 %1156
        %1158 = vrot.lane.b32.xlu0 %v717, 96
        %v1159 = vpop.permute.xlu0 %1158
        %1160 = vrot.lane.b32.xlu0 %v722, 96
        %v1161 = vpop.permute.xlu0 %1160
        %1162 = vrot.lane.b32.xlu0 %v725, 96
        %v1163 = vpop.permute.xlu0 %1162
        %1164 = vrot.lane.b32.xlu0 %v730, 96
        %v1165 = vpop.permute.xlu0 %1164
        %1166 = vrot.lane.b32.xlu0 %v733, 96
        %v1167 = vpop.permute.xlu0 %1166
        %1168 = vrot.lane.b32.xlu0 %v738, 96
        %v1169 = vpop.permute.xlu0 %1168
        %1170 = vrot.lane.b32.xlu0 %v741, 96
        %v1171 = vpop.permute.xlu0 %1170
        %1172 = vrot.lane.b32.xlu0 %v746, 96
        %v1173 = vpop.permute.xlu0 %1172
        %1174 = vrot.lane.b32.xlu0 %v749, 96
        %v1175 = vpop.permute.xlu0 %1174
        %1176 = vrot.lane.b32.xlu0 %v754, 96
        %v1177 = vpop.permute.xlu0 %1176
        %1178 = vrot.lane.b32.xlu0 %v757, 96
        %v1179 = vpop.permute.xlu0 %1178
        %1180 = vrot.lane.b32.xlu0 %v762, 96
        %v1181 = vpop.permute.xlu0 %1180
        %1182 = vrot.lane.b32.xlu0 %v765, 96
        %v1183 = vpop.permute.xlu0 %1182
        %1184 = vrot.lane.b32.xlu0 %v770, 96
        %v1185 = vpop.permute.xlu0 %1184
        %1186 = vrot.lane.b32.xlu0 %v773, 96
        %v1187 = vpop.permute.xlu0 %1186
        %1188 = vrot.lane.b32.xlu0 %v778, 96
        %v1189 = vpop.permute.xlu0 %1188
        %1190 = vrot.lane.b32.xlu0 %v781, 96
        %v1191 = vpop.permute.xlu0 %1190
        %1192 = vrot.lane.b32.xlu0 %v786, 96
        %v1193 = vpop.permute.xlu0 %1192
        %1194 = vrot.lane.b32.xlu0 %v789, 96
        %v1195 = vpop.permute.xlu0 %1194
        %1196 = vrot.lane.b32.xlu0 %v794, 96
        %v1197 = vpop.permute.xlu0 %1196
        %1198 = vrot.lane.b32.xlu0 %v797, 96
        %v1199 = vpop.permute.xlu0 %1198
        %1200 = vrot.lane.b32.xlu0 %v802, 96
        %v1201 = vpop.permute.xlu0 %1200
        %1202 = vrot.lane.b32.xlu0 %v805, 96
        %v1203 = vpop.permute.xlu0 %1202
        %1204 = vrot.lane.b32.xlu0 %v810, 96
        %v1205 = vpop.permute.xlu0 %1204
        %1206 = vrot.lane.b32.xlu0 %v813, 96
        %v1207 = vpop.permute.xlu0 %1206
        %1208 = vrot.lane.b32.xlu0 %v818, 96
        %v1209 = vpop.permute.xlu0 %1208
        %1210 = vrot.lane.b32.xlu0 %v821, 96
        %v1211 = vpop.permute.xlu0 %1210
        %1212 = vrot.lane.b32.xlu0 %v826, 96
        %v1213 = vpop.permute.xlu0 %1212
        %1214 = vrot.lane.b32.xlu0 %v829, 96
        %v1215 = vpop.permute.xlu0 %1214
        %1216 = vrot.lane.b32.xlu0 %v834, 96
        %v1217 = vpop.permute.xlu0 %1216
        %1218 = vrot.lane.b32.xlu0 %v837, 96
        %v1219 = vpop.permute.xlu0 %1218
        %1220 = vrot.lane.b32.xlu0 %v842, 96
        %v1221 = vpop.permute.xlu0 %1220
        %1222 = vrot.lane.b32.xlu0 %v845, 96
        %v1223 = vpop.permute.xlu0 %1222
        %1224 = vrot.lane.b32.xlu0 %v850, 96
        %v1225 = vpop.permute.xlu0 %1224
        %1226 = vrot.lane.b32.xlu0 %v853, 96
        %v1227 = vpop.permute.xlu0 %1226
        %1228 = vrot.lane.b32.xlu0 %v858, 96
        %v1229 = vpop.permute.xlu0 %1228
        %1230 = vrot.lane.b32.xlu0 %v861, 96
        %v1231 = vpop.permute.xlu0 %1230
        %1232 = vrot.lane.b32.xlu0 %v866, 96
        %v1233 = vpop.permute.xlu0 %1232
        %1234 = vrot.lane.b32.xlu0 %v869, 96
        %v1235 = vpop.permute.xlu0 %1234
        %vm1236 = vcmask 261120
        %v1237 = vsel %vm1236, %v666, 0
        %v1239 = vsel %vm1236, %v669, 0
        %v1241 = vsel %vm1236, %v674, 0
        %v1243 = vsel %vm1236, %v677, 0
        %v1245 = vsel %vm1236, %v682, 0
        %v1247 = vsel %vm1236, %v685, 0
        %v1249 = vsel %vm1236, %v690, 0
        %v1251 = vsel %vm1236, %v693, 0
        %v1253 = vsel %vm1236, %v698, 0
        %v1255 = vsel %vm1236, %v701, 0
        %v1257 = vsel %vm1236, %v706, 0
        %v1259 = vsel %vm1236, %v709, 0
        %v1261 = vsel %vm1236, %v714, 0
        %v1263 = vsel %vm1236, %v717, 0
        %v1265 = vsel %vm1236, %v722, 0
        %v1267 = vsel %vm1236, %v725, 0
        %v1269 = vsel %vm1236, %v730, 0
        %v1271 = vsel %vm1236, %v733, 0
        %v1273 = vsel %vm1236, %v738, 0
        %v1275 = vsel %vm1236, %v741, 0
        %v1277 = vsel %vm1236, %v746, 0
        %v1279 = vsel %vm1236, %v749, 0
        %v1281 = vsel %vm1236, %v754, 0
        %v1283 = vsel %vm1236, %v757, 0
        %v1285 = vsel %vm1236, %v762, 0
        %v1287 = vsel %vm1236, %v765, 0
        %v1289 = vsel %vm1236, %v770, 0
        %v1291 = vsel %vm1236, %v773, 0
        %v1293 = vsel %vm1236, %v778, 0
        %v1295 = vsel %vm1236, %v781, 0
        %v1297 = vsel %vm1236, %v786, 0
        %v1299 = vsel %vm1236, %v789, 0
        %v1301 = vsel %vm1236, %v794, 0
        %v1303 = vsel %vm1236, %v797, 0
        %v1305 = vsel %vm1236, %v802, 0
        %v1307 = vsel %vm1236, %v805, 0
        %v1309 = vsel %vm1236, %v810, 0
        %v1311 = vsel %vm1236, %v813, 0
        %v1313 = vsel %vm1236, %v818, 0
        %v1315 = vsel %vm1236, %v821, 0
        %v1317 = vsel %vm1236, %v826, 0
        %v1319 = vsel %vm1236, %v829, 0
        %v1321 = vsel %vm1236, %v834, 0
        %v1323 = vsel %vm1236, %v837, 0
        %v1325 = vsel %vm1236, %v842, 0
        %v1327 = vsel %vm1236, %v845, 0
        %v1329 = vsel %vm1236, %v850, 0
        %v1331 = vsel %vm1236, %v853, 0
        %v1333 = vsel %vm1236, %v858, 0
        %v1335 = vsel %vm1236, %v861, 0
        %v1337 = vsel %vm1236, %v866, 0
        %v1339 = vsel %vm1236, %v869, 0
        %v1341 = vsel %vm1236, %v1133, 0
        %v1343 = vsel %vm1236, %v1135, 0
        %v1345 = vsel %vm1236, %v1137, 0
        %v1347 = vsel %vm1236, %v1139, 0
        %v1349 = vsel %vm1236, %v1141, 0
        %v1351 = vsel %vm1236, %v1143, 0
        %v1353 = vsel %vm1236, %v1145, 0
        %v1355 = vsel %vm1236, %v1147, 0
        %v1357 = vsel %vm1236, %v1149, 0
        %v1359 = vsel %vm1236, %v1151, 0
        %v1361 = vsel %vm1236, %v1153, 0
        %v1363 = vsel %vm1236, %v1155, 0
        %v1365 = vsel %vm1236, %v1157, 0
        %v1367 = vsel %vm1236, %v1159, 0
        %v1369 = vsel %vm1236, %v1161, 0
        %v1371 = vsel %vm1236, %v1163, 0
        %v1373 = vsel %vm1236, %v1165, 0
        %v1375 = vsel %vm1236, %v1167, 0
        %v1377 = vsel %vm1236, %v1169, 0
        %v1379 = vsel %vm1236, %v1171, 0
        %v1381 = vsel %vm1236, %v1173, 0
        %v1383 = vsel %vm1236, %v1175, 0
        %v1385 = vsel %vm1236, %v1177, 0
        %v1387 = vsel %vm1236, %v1179, 0
        %v1389 = vsel %vm1236, %v1181, 0
        %v1391 = vsel %vm1236, %v1183, 0
        %v1393 = vsel %vm1236, %v1185, 0
        %v1395 = vsel %vm1236, %v1187, 0
        %v1397 = vsel %vm1236, %v1189, 0
        %v1399 = vsel %vm1236, %v1191, 0
        %v1401 = vsel %vm1236, %v1193, 0
        %v1403 = vsel %vm1236, %v1195, 0
        %v1405 = vsel %vm1236, %v1197, 0
        %v1407 = vsel %vm1236, %v1199, 0
        %v1409 = vsel %vm1236, %v1201, 0
        %v1411 = vsel %vm1236, %v1203, 0
        %v1413 = vsel %vm1236, %v1205, 0
        %v1415 = vsel %vm1236, %v1207, 0
        %v1417 = vsel %vm1236, %v1209, 0
        %v1419 = vsel %vm1236, %v1211, 0
        %v1421 = vsel %vm1236, %v1213, 0
        %v1423 = vsel %vm1236, %v1215, 0
        %v1425 = vsel %vm1236, %v1217, 0
        %v1427 = vsel %vm1236, %v1219, 0
        %v1429 = vsel %vm1236, %v1221, 0
        %v1431 = vsel %vm1236, %v1223, 0
        %v1433 = vsel %vm1236, %v1225, 0
        %v1435 = vsel %vm1236, %v1227, 0
        %v1437 = vsel %vm1236, %v1229, 0
        %v1439 = vsel %vm1236, %v1231, 0
        %v1441 = vsel %vm1236, %v1233, 0
        %v1443 = vsel %vm1236, %v1235, 0
        %1445 = vmatprep.subr.mxu0 0.0
        %1446 = vmatpush1.xpose.msra.mxu0 %v1341
        %1447 = vmatprep.subr.mxu0 0.0
        %1448 = vmatpush1.xpose.msra.mxu0 %v1343
        %1449 = vmatprep.subr.mxu0 0.0
        %1450 = vmatpush1.xpose.msra.mxu0 %v1345
        %1451 = vmatprep.subr.mxu0 0.0
        %1452 = vmatpush1.xpose.msra.mxu0 %v1347
        %1453 = vmatprep.subr.mxu0 0.0
        %1454 = vmatpush1.xpose.msra.mxu0 %v1349
        %1455 = vmatprep.subr.mxu0 0.0
        %1456 = vmatpush1.xpose.msra.mxu0 %v1351
        %1457 = vmatprep.subr.mxu0 0.0
        %1458 = vmatpush1.xpose.msra.mxu0 %v1353
        %1459 = vmatprep.subr.mxu0 0.0
        %1460 = vmatpush1.xpose.msra.mxu0 %v1355
        %1461 = vmatprep.subr.mxu0 0.0
        %1462 = vmatpush1.xpose.msra.mxu0 %v1357
        %1463 = vmatprep.subr.mxu0 0.0
        %1464 = vmatpush1.xpose.msra.mxu0 %v1359
        %1465 = vmatprep.subr.mxu0 0.0
        %1466 = vmatpush1.xpose.msra.mxu0 %v1361
        %1467 = vmatprep.subr.mxu0 0.0
        %1468 = vmatpush1.xpose.msra.mxu0 %v1363
        %1469 = vmatprep.subr.mxu0 0.0
        %1470 = vmatpush1.xpose.msra.mxu0 %v1365
        %1471 = vmatprep.subr.mxu0 0.0
        %1472 = vmatpush1.xpose.msra.mxu0 %v1367
        %1473 = vmatprep.subr.mxu0 0.0
        %1474 = vmatpush1.xpose.msra.mxu0 %v1369
        %1475 = vmatprep.subr.mxu0 0.0
        %1476 = vmatpush1.xpose.msra.mxu0 %v1371
        %1477 = vmatprep.subr.mxu0 0.0
        %1478 = vmatpush1.xpose.msra.mxu0 %v1373
        %1479 = vmatprep.subr.mxu0 0.0
        %1480 = vmatpush1.xpose.msra.mxu0 %v1375
        %1481 = vmatprep.subr.mxu0 0.0
        %1482 = vmatpush1.xpose.msra.mxu0 %v1377
        %1483 = vmatprep.subr.mxu0 0.0
        %1484 = vmatpush1.xpose.msra.mxu0 %v1379
        %1485 = vmatprep.subr.mxu0 0.0
        %1486 = vmatpush1.xpose.msra.mxu0 %v1381
        %1487 = vmatprep.subr.mxu0 0.0
        %1488 = vmatpush1.xpose.msra.mxu0 %v1383
        %1489 = vmatprep.subr.mxu0 0.0
        %1490 = vmatpush1.xpose.msra.mxu0 %v1385
        %1491 = vmatprep.subr.mxu0 0.0
        %1492 = vmatpush1.xpose.msra.mxu0 %v1387
        %1493 = vmatprep.subr.mxu0 0.0
        %1494 = vmatpush1.xpose.msra.mxu0 %v1389
        %1495 = vmatprep.subr.mxu0 0.0
        %1496 = vmatpush1.xpose.msra.mxu0 %v1391
        %1497 = vmatprep.subr.mxu0 0.0
        %1498 = vmatpush1.xpose.msra.mxu0 %v1393
        %1499 = vmatprep.subr.mxu0 0.0
        %1500 = vmatpush1.xpose.msra.mxu0 %v1395
        %1501 = vmatprep.subr.mxu0 0.0
        %1502 = vmatpush1.xpose.msra.mxu0 %v1397
        %1503 = vmatprep.subr.mxu0 0.0
        %1504 = vmatpush1.xpose.msra.mxu0 %v1399
        %1505 = vmatprep.subr.mxu0 0.0
        %1506 = vmatpush1.xpose.msra.mxu0 %v1401
        %1507 = vmatprep.subr.mxu0 0.0
        %1508 = vmatpush1.xpose.msra.mxu0 %v1403
        %1509 = vmatprep.mubr.f32.mxu0 0.0
        %1510 = vmatmul.mubr.f32.gmra.mrb[0].mxu0 %v1237
        %v1511 = vpop.f32.mrb[0].mxu0
        %v1512 = vadd.f32 %v872, %v1511
        %v1513 = vpop.f32.mrb[0].mxu0
        %v1514 = vadd.f32 %v873, %v1513
        %1515 = vmatprep.mubr.f32.mxu0 0.0
        %1516 = vmatmul.mubr.f32.gmra.mrb[0].mxu0 %v1239
        %v1517 = vpop.f32.mrb[0].mxu0
        %v1518 = vadd.f32 %v876, %v1517
        %v1519 = vpop.f32.mrb[0].mxu0
        %v1520 = vadd.f32 %v877, %v1519
        %1521 = vmatprep.mubr.f32.mxu0 0.0
        %1522 = vmatmul.mubr.f32.gmra.mrb[0].mxu0 %v1241
        %v1523 = vpop.f32.mrb[0].mxu0
        %v1524 = vadd.f32 %v880, %v1523
        %v1525 = vpop.f32.mrb[0].mxu0
        %v1526 = vadd.f32 %v881, %v1525
        %1527 = vmatprep.mubr.f32.mxu0 0.0
        %1528 = vmatmul.mubr.f32.gmra.mrb[0].mxu0 %v1243
        %v1529 = vpop.f32.mrb[0].mxu0
        %v1530 = vadd.f32 %v884, %v1529
        %v1531 = vpop.f32.mrb[0].mxu0
        %v1532 = vadd.f32 %v885, %v1531
        %1533 = vmatprep.mubr.f32.mxu0 0.0
        %1534 = vmatmul.mubr.f32.gmra.mrb[0].mxu0 %v1245
        %v1535 = vpop.f32.mrb[0].mxu0
        %v1536 = vadd.f32 %v888, %v1535
        %v1537 = vpop.f32.mrb[0].mxu0
        %v1538 = vadd.f32 %v889, %v1537
        %1539 = vmatprep.mubr.f32.mxu0 0.0
        %1540 = vmatmul.mubr.f32.gmra.mrb[0].mxu0 %v1247
        %v1541 = vpop.f32.mrb[0].mxu0
        %v1542 = vadd.f32 %v892, %v1541
        %v1543 = vpop.f32.mrb[0].mxu0
        %v1544 = vadd.f32 %v893, %v1543
        %1545 = vmatprep.mubr.f32.mxu0 0.0
        %1546 = vmatmul.mubr.f32.gmra.mrb[0].mxu0 %v1249
        %v1547 = vpop.f32.mrb[0].mxu0
        %v1548 = vadd.f32 %v896, %v1547
        %v1549 = vpop.f32.mrb[0].mxu0
        %v1550 = vadd.f32 %v897, %v1549
        %1551 = vmatprep.mubr.f32.mxu0 0.0
        %1552 = vmatmul.mubr.f32.gmra.mrb[0].mxu0 %v1251
        %v1553 = vpop.f32.mrb[0].mxu0
        %v1554 = vadd.f32 %v900, %v1553
        %v1555 = vpop.f32.mrb[0].mxu0
        %v1556 = vadd.f32 %v901, %v1555
        %1557 = vmatprep.mubr.f32.mxu0 0.0
        %1558 = vmatmul.mubr.f32.gmra.mrb[0].mxu0 %v1253
        %v1559 = vpop.f32.mrb[0].mxu0
        %v1560 = vadd.f32 %v904, %v1559
        %v1561 = vpop.f32.mrb[0].mxu0
        %v1562 = vadd.f32 %v905, %v1561
        %1563 = vmatprep.mubr.f32.mxu0 0.0
        %1564 = vmatmul.mubr.f32.gmra.mrb[0].mxu0 %v1255
        %v1565 = vpop.f32.mrb[0].mxu0
        %v1566 = vadd.f32 %v908, %v1565
        %v1567 = vpop.f32.mrb[0].mxu0
        %v1568 = vadd.f32 %v909, %v1567
        %1569 = vmatprep.mubr.f32.mxu0 0.0
        %1570 = vmatmul.mubr.f32.gmra.mrb[0].mxu0 %v1257
        %v1571 = vpop.f32.mrb[0].mxu0
        %v1572 = vadd.f32 %v912, %v1571
        %v1573 = vpop.f32.mrb[0].mxu0
        %v1574 = vadd.f32 %v913, %v1573
        %1575 = vmatprep.mubr.f32.mxu0 0.0
        %1576 = vmatmul.mubr.f32.gmra.mrb[0].mxu0 %v1259
        %v1577 = vpop.f32.mrb[0].mxu0
        %v1578 = vadd.f32 %v916, %v1577
        %v1579 = vpop.f32.mrb[0].mxu0
        %v1580 = vadd.f32 %v917, %v1579
        %1581 = vmatprep.mubr.f32.mxu0 0.0
        %1582 = vmatmul.mubr.f32.gmra.mrb[0].mxu0 %v1261
        %v1583 = vpop.f32.mrb[0].mxu0
        %v1584 = vadd.f32 %v920, %v1583
        %v1585 = vpop.f32.mrb[0].mxu0
        %v1586 = vadd.f32 %v921, %v1585
        %1587 = vmatprep.mubr.f32.mxu0 0.0
        %1588 = vmatmul.mubr.f32.gmra.mrb[0].mxu0 %v1263
        %v1589 = vpop.f32.mrb[0].mxu0
        %v1590 = vadd.f32 %v924, %v1589
        %v1591 = vpop.f32.mrb[0].mxu0
        %v1592 = vadd.f32 %v925, %v1591
        %1593 = vmatprep.mubr.f32.mxu0 0.0
        %1594 = vmatmul.mubr.f32.gmra.mrb[0].mxu0 %v1265
        %v1595 = vpop.f32.mrb[0].mxu0
        %v1596 = vadd.f32 %v928, %v1595
        %v1597 = vpop.f32.mrb[0].mxu0
        %v1598 = vadd.f32 %v929, %v1597
        %1599 = vmatprep.mubr.f32.mxu0 0.0
        %1600 = vmatmul.mubr.f32.gmra.mrb[0].mxu0 %v1267
        %v1601 = vpop.f32.mrb[0].mxu0
        %v1602 = vadd.f32 %v932, %v1601
        %v1603 = vpop.f32.mrb[0].mxu0
        %v1604 = vadd.f32 %v933, %v1603
        %1605 = vmatprep.mubr.f32.mxu0 0.0
        %1606 = vmatmul.mubr.f32.gmra.mrb[0].mxu0 %v1269
        %v1607 = vpop.f32.mrb[0].mxu0
        %v1608 = vadd.f32 %v936, %v1607
        %v1609 = vpop.f32.mrb[0].mxu0
        %v1610 = vadd.f32 %v937, %v1609
        %1611 = vmatprep.mubr.f32.mxu0 0.0
        %1612 = vmatmul.mubr.f32.gmra.mrb[0].mxu0 %v1271
        %v1613 = vpop.f32.mrb[0].mxu0
        %v1614 = vadd.f32 %v940, %v1613
        %v1615 = vpop.f32.mrb[0].mxu0
        %v1616 = vadd.f32 %v941, %v1615
        %1617 = vmatprep.mubr.f32.mxu0 0.0
        %1618 = vmatmul.mubr.f32.gmra.mrb[0].mxu0 %v1273
        %v1619 = vpop.f32.mrb[0].mxu0
        %v1620 = vadd.f32 %v944, %v1619
        %v1621 = vpop.f32.mrb[0].mxu0
        %v1622 = vadd.f32 %v945, %v1621
        %1623 = vmatprep.mubr.f32.mxu0 0.0
        %1624 = vmatmul.mubr.f32.gmra.mrb[0].mxu0 %v1275
        %v1625 = vpop.f32.mrb[0].mxu0
        %v1626 = vadd.f32 %v948, %v1625
        %v1627 = vpop.f32.mrb[0].mxu0
        %v1628 = vadd.f32 %v949, %v1627
        %1629 = vmatprep.mubr.f32.mxu0 0.0
        %1630 = vmatmul.mubr.f32.gmra.mrb[0].mxu0 %v1277
        %v1631 = vpop.f32.mrb[0].mxu0
        %v1632 = vadd.f32 %v952, %v1631
        %v1633 = vpop.f32.mrb[0].mxu0
        %v1634 = vadd.f32 %v953, %v1633
        %1635 = vmatprep.mubr.f32.mxu0 0.0
        %1636 = vmatmul.mubr.f32.gmra.mrb[0].mxu0 %v1279
        %v1637 = vpop.f32.mrb[0].mxu0
        %v1638 = vadd.f32 %v956, %v1637
        %v1639 = vpop.f32.mrb[0].mxu0
        %v1640 = vadd.f32 %v957, %v1639
        %1641 = vmatprep.mubr.f32.mxu0 0.0
        %1642 = vmatmul.mubr.f32.gmra.mrb[0].mxu0 %v1281
        %v1643 = vpop.f32.mrb[0].mxu0
        %v1644 = vadd.f32 %v960, %v1643
        %v1645 = vpop.f32.mrb[0].mxu0
        %v1646 = vadd.f32 %v961, %v1645
        %1647 = vmatprep.mubr.f32.mxu0 0.0
        %1648 = vmatmul.mubr.f32.gmra.mrb[0].mxu0 %v1283
        %v1649 = vpop.f32.mrb[0].mxu0
        %v1650 = vadd.f32 %v964, %v1649
        %v1651 = vpop.f32.mrb[0].mxu0
        %v1652 = vadd.f32 %v965, %v1651
        %1653 = vmatprep.mubr.f32.mxu0 0.0
        %1654 = vmatmul.mubr.f32.gmra.mrb[0].mxu0 %v1285
        %v1655 = vpop.f32.mrb[0].mxu0
        %v1656 = vadd.f32 %v968, %v1655
        %v1657 = vpop.f32.mrb[0].mxu0
        %v1658 = vadd.f32 %v969, %v1657
        %1659 = vmatprep.mubr.f32.mxu0 0.0
        %1660 = vmatmul.mubr.f32.gmra.mrb[0].mxu0 %v1287
        %v1661 = vpop.f32.mrb[0].mxu0
        %v1662 = vadd.f32 %v972, %v1661
        %v1663 = vpop.f32.mrb[0].mxu0
        %v1664 = vadd.f32 %v973, %v1663
        %1665 = vmatprep.mubr.f32.mxu0 0.0
        %1666 = vmatmul.mubr.f32.gmra.mrb[0].mxu0 %v1289
        %v1667 = vpop.f32.mrb[0].mxu0
        %v1668 = vadd.f32 %v976, %v1667
        %v1669 = vpop.f32.mrb[0].mxu0
        %v1670 = vadd.f32 %v977, %v1669
        %1671 = vmatprep.mubr.f32.mxu0 0.0
        %1672 = vmatmul.mubr.f32.gmra.mrb[0].mxu0 %v1291
        %v1673 = vpop.f32.mrb[0].mxu0
        %v1674 = vadd.f32 %v980, %v1673
        %v1675 = vpop.f32.mrb[0].mxu0
        %v1676 = vadd.f32 %v981, %v1675
        %1677 = vmatprep.mubr.f32.mxu0 0.0
        %1678 = vmatmul.mubr.f32.gmra.mrb[0].mxu0 %v1293
        %v1679 = vpop.f32.mrb[0].mxu0
        %v1680 = vadd.f32 %v984, %v1679
        %v1681 = vpop.f32.mrb[0].mxu0
        %v1682 = vadd.f32 %v985, %v1681
        %1683 = vmatprep.mubr.f32.mxu0 0.0
        %1684 = vmatmul.mubr.f32.gmra.mrb[0].mxu0 %v1295
        %v1685 = vpop.f32.mrb[0].mxu0
        %v1686 = vadd.f32 %v988, %v1685
        %v1687 = vpop.f32.mrb[0].mxu0
        %v1688 = vadd.f32 %v989, %v1687
        %1689 = vmatprep.mubr.f32.mxu0 0.0
        %1690 = vmatmul.mubr.f32.gmra.mrb[0].mxu0 %v1297
        %v1691 = vpop.f32.mrb[0].mxu0
        %v1692 = vadd.f32 %v992, %v1691
        %v1693 = vpop.f32.mrb[0].mxu0
        %v1694 = vadd.f32 %v993, %v1693
        %1695 = vmatprep.mubr.f32.mxu0 0.0
        %1696 = vmatmul.mubr.f32.gmra.mrb[0].mxu0 %v1299
        %v1697 = vpop.f32.mrb[0].mxu0
        %v1698 = vadd.f32 %v996, %v1697
        %v1699 = vpop.f32.mrb[0].mxu0
        %v1700 = vadd.f32 %v997, %v1699
        %1701 = vmatprep.mubr.f32.mxu0 0.0
        %1702 = vmatmul.mubr.f32.gmra.mrb[0].mxu0 %v1301
        %v1703 = vpop.f32.mrb[0].mxu0
        %v1704 = vadd.f32 %v1000, %v1703
        %v1705 = vpop.f32.mrb[0].mxu0
        %v1706 = vadd.f32 %v1001, %v1705
        %1707 = vmatprep.mubr.f32.mxu0 0.0
        %1708 = vmatmul.mubr.f32.gmra.mrb[0].mxu0 %v1303
        %v1709 = vpop.f32.mrb[0].mxu0
        %v1710 = vadd.f32 %v1004, %v1709
        %v1711 = vpop.f32.mrb[0].mxu0
        %v1712 = vadd.f32 %v1005, %v1711
        %1713 = vmatprep.mubr.f32.mxu0 0.0
        %1714 = vmatmul.mubr.f32.gmra.mrb[0].mxu0 %v1305
        %v1715 = vpop.f32.mrb[0].mxu0
        %v1716 = vadd.f32 %v1008, %v1715
        %v1717 = vpop.f32.mrb[0].mxu0
        %v1718 = vadd.f32 %v1009, %v1717
        %1719 = vmatprep.mubr.f32.mxu0 0.0
        %1720 = vmatmul.mubr.f32.gmra.mrb[0].mxu0 %v1307
        %v1721 = vpop.f32.mrb[0].mxu0
        %v1722 = vadd.f32 %v1012, %v1721
        %v1723 = vpop.f32.mrb[0].mxu0
        %v1724 = vadd.f32 %v1013, %v1723
        %1725 = vmatprep.mubr.f32.mxu0 0.0
        %1726 = vmatmul.mubr.f32.gmra.mrb[0].mxu0 %v1309
        %v1727 = vpop.f32.mrb[0].mxu0
        %v1728 = vadd.f32 %v1016, %v1727
        %v1729 = vpop.f32.mrb[0].mxu0
        %v1730 = vadd.f32 %v1017, %v1729
        %1731 = vmatprep.mubr.f32.mxu0 0.0
        %1732 = vmatmul.mubr.f32.gmra.mrb[0].mxu0 %v1311
        %v1733 = vpop.f32.mrb[0].mxu0
        %v1734 = vadd.f32 %v1020, %v1733
        %v1735 = vpop.f32.mrb[0].mxu0
        %v1736 = vadd.f32 %v1021, %v1735
        %1737 = vmatprep.mubr.f32.mxu0 0.0
        %1738 = vmatmul.mubr.f32.gmra.mrb[0].mxu0 %v1313
        %v1739 = vpop.f32.mrb[0].mxu0
        %v1740 = vadd.f32 %v1024, %v1739
        %v1741 = vpop.f32.mrb[0].mxu0
        %v1742 = vadd.f32 %v1025, %v1741
        %1743 = vmatprep.mubr.f32.mxu0 0.0
        %1744 = vmatmul.mubr.f32.gmra.mrb[0].mxu0 %v1315
        %v1745 = vpop.f32.mrb[0].mxu0
        %v1746 = vadd.f32 %v1028, %v1745
        %v1747 = vpop.f32.mrb[0].mxu0
        %v1748 = vadd.f32 %v1029, %v1747
        %1749 = vmatprep.mubr.f32.mxu0 0.0
        %1750 = vmatmul.mubr.f32.gmra.mrb[0].mxu0 %v1317
        %v1751 = vpop.f32.mrb[0].mxu0
        %v1752 = vadd.f32 %v1032, %v1751
        %v1753 = vpop.f32.mrb[0].mxu0
        %v1754 = vadd.f32 %v1033, %v1753
        %1755 = vmatprep.mubr.f32.mxu0 0.0
        %1756 = vmatmul.mubr.f32.gmra.mrb[0].mxu0 %v1319
        %v1757 = vpop.f32.mrb[0].mxu0
        %v1758 = vadd.f32 %v1036, %v1757
        %v1759 = vpop.f32.mrb[0].mxu0
        %v1760 = vadd.f32 %v1037, %v1759
        %1761 = vmatprep.mubr.f32.mxu0 0.0
        %1762 = vmatmul.mubr.f32.gmra.mrb[0].mxu0 %v1321
        %v1763 = vpop.f32.mrb[0].mxu0
        %v1764 = vadd.f32 %v1040, %v1763
        %v1765 = vpop.f32.mrb[0].mxu0
        %v1766 = vadd.f32 %v1041, %v1765
        %1767 = vmatprep.mubr.f32.mxu0 0.0
        %1768 = vmatmul.mubr.f32.gmra.mrb[0].mxu0 %v1323
        %v1769 = vpop.f32.mrb[0].mxu0
        %v1770 = vadd.f32 %v1044, %v1769
        %v1771 = vpop.f32.mrb[0].mxu0
        %v1772 = vadd.f32 %v1045, %v1771
        %1773 = vmatprep.mubr.f32.mxu0 0.0
        %1774 = vmatmul.mubr.f32.gmra.mrb[0].mxu0 %v1325
        %v1775 = vpop.f32.mrb[0].mxu0
        %v1776 = vadd.f32 %v1048, %v1775
        %v1777 = vpop.f32.mrb[0].mxu0
        %v1778 = vadd.f32 %v1049, %v1777
        %1779 = vmatprep.mubr.f32.mxu0 0.0
        %1780 = vmatmul.mubr.f32.gmra.mrb[0].mxu0 %v1327
        %v1781 = vpop.f32.mrb[0].mxu0
        %v1782 = vadd.f32 %v1052, %v1781
        %v1783 = vpop.f32.mrb[0].mxu0
        %v1784 = vadd.f32 %v1053, %v1783
        %1785 = vmatprep.mubr.f32.mxu0 0.0
        %1786 = vmatmul.mubr.f32.gmra.mrb[0].mxu0 %v1329
        %v1787 = vpop.f32.mrb[0].mxu0
        %v1788 = vadd.f32 %v1056, %v1787
        %v1789 = vpop.f32.mrb[0].mxu0
        %v1790 = vadd.f32 %v1057, %v1789
        %1791 = vmatprep.mubr.f32.mxu0 0.0
        %1792 = vmatmul.mubr.f32.gmra.mrb[0].mxu0 %v1331
        %v1793 = vpop.f32.mrb[0].mxu0
        %v1794 = vadd.f32 %v1060, %v1793
        %v1795 = vpop.f32.mrb[0].mxu0
        %v1796 = vadd.f32 %v1061, %v1795
        %1797 = vmatprep.mubr.f32.mxu0 0.0
        %1798 = vmatmul.mubr.f32.gmra.mrb[0].mxu0 %v1333
        %v1799 = vpop.f32.mrb[0].mxu0
        %v1800 = vadd.f32 %v1064, %v1799
        %v1801 = vpop.f32.mrb[0].mxu0
        %v1802 = vadd.f32 %v1065, %v1801
        %1803 = vmatprep.mubr.f32.mxu0 0.0
        %1804 = vmatmul.mubr.f32.gmra.mrb[0].mxu0 %v1335
        %v1805 = vpop.f32.mrb[0].mxu0
        %v1806 = vadd.f32 %v1068, %v1805
        %v1807 = vpop.f32.mrb[0].mxu0
        %v1808 = vadd.f32 %v1069, %v1807
        %1809 = vmatprep.mubr.f32.mxu0 0.0
        %1810 = vmatmul.mubr.f32.gmra.mrb[0].mxu0 %v1337
        %v1811 = vpop.f32.mrb[0].mxu0
        %v1812 = vadd.f32 %v1072, %v1811
        %v1813 = vpop.f32.mrb[0].mxu0
        %v1814 = vadd.f32 %v1073, %v1813
        %1815 = vmatprep.mubr.f32.mxu0 0.0
        %1816 = vmatmul.mubr.f32.gmra.mrb[0].mxu0 %v1339
        %v1817 = vpop.f32.mrb[0].mxu0
        %v1818 = vadd.f32 %v1076, %v1817
        %v1819 = vpop.f32.mrb[0].mxu0
        %v1820 = vadd.f32 %v1077, %v1819
        %1821 = vdwg.mxu0
        %1822 = vmatprep.subr.mxu0 0.0
        %1823 = vmatpush1.xpose.msra.mxu0 %v1405
        %1824 = vmatprep.subr.mxu0 0.0
        %1825 = vmatpush1.xpose.msra.mxu0 %v1407
        %1826 = vmatprep.subr.mxu0 0.0
        %1827 = vmatpush1.xpose.msra.mxu0 %v1409
        %1828 = vmatprep.subr.mxu0 0.0
        %1829 = vmatpush1.xpose.msra.mxu0 %v1411
        %1830 = vmatprep.subr.mxu0 0.0
        %1831 = vmatpush1.xpose.msra.mxu0 %v1413
        %1832 = vmatprep.subr.mxu0 0.0
        %1833 = vmatpush1.xpose.msra.mxu0 %v1415
        %1834 = vmatprep.subr.mxu0 0.0
        %1835 = vmatpush1.xpose.msra.mxu0 %v1417
        %1836 = vmatprep.subr.mxu0 0.0
        %1837 = vmatpush1.xpose.msra.mxu0 %v1419
        %1838 = vmatprep.subr.mxu0 0.0
        %1839 = vmatpush1.xpose.msra.mxu0 %v1421
        %1840 = vmatprep.subr.mxu0 0.0
        %1841 = vmatpush1.xpose.msra.mxu0 %v1423
        %1842 = vmatprep.subr.mxu0 0.0
        %1843 = vmatpush1.xpose.msra.mxu0 %v1425
        %1844 = vmatprep.subr.mxu0 0.0
        %1845 = vmatpush1.xpose.msra.mxu0 %v1427
        %1846 = vmatprep.subr.mxu0 0.0
        %1847 = vmatpush1.xpose.msra.mxu0 %v1429
        %1848 = vmatprep.subr.mxu0 0.0
        %1849 = vmatpush1.xpose.msra.mxu0 %v1431
        %1850 = vmatprep.subr.mxu0 0.0
        %1851 = vmatpush1.xpose.msra.mxu0 %v1433
        %1852 = vmatprep.subr.mxu0 0.0
        %1853 = vmatpush1.xpose.msra.mxu0 %v1435
        %1854 = vmatprep.subr.mxu0 0.0
        %1855 = vmatpush1.xpose.msra.mxu0 %v1437
        %1856 = vmatprep.subr.mxu0 0.0
        %1857 = vmatpush1.xpose.msra.mxu0 %v1439
        %1858 = vmatprep.subr.mxu0 0.0
        %1859 = vmatpush1.xpose.msra.mxu0 %v1441
        %1860 = vmatprep.subr.mxu0 0.0
        %1861 = vmatpush1.xpose.msra.mxu0 %v1443
        %1862 = vmatprep.subr.mxu0 0.0
        %1863 = vmatpush1.xpose.msra.mxu0 0.0
        %1864 = vmatprep.subr.mxu0 0.0
        %1865 = vmatpush1.xpose.msra.mxu0 0.0
        %1866 = vmatprep.subr.mxu0 0.0
        %1867 = vmatpush1.xpose.msra.mxu0 0.0
        %1868 = vmatprep.subr.mxu0 0.0
        %1869 = vmatpush1.xpose.msra.mxu0 0.0
        %1870 = vmatprep.subr.mxu0 0.0
        %1871 = vmatpush1.xpose.msra.mxu0 0.0
        %1872 = vmatprep.subr.mxu0 0.0
        %1873 = vmatpush1.xpose.msra.mxu0 0.0
        %1874 = vmatprep.subr.mxu0 0.0
        %1875 = vmatpush1.xpose.msra.mxu0 0.0
        %1876 = vmatprep.subr.mxu0 0.0
        %1877 = vmatpush1.xpose.msra.mxu0 0.0
        %1878 = vmatprep.subr.mxu0 0.0
        %1879 = vmatpush1.xpose.msra.mxu0 0.0
        %1880 = vmatprep.subr.mxu0 0.0
        %1881 = vmatpush1.xpose.msra.mxu0 0.0
        %1882 = vmatprep.subr.mxu0 0.0
        %1883 = vmatpush1.xpose.msra.mxu0 0.0
        %1884 = vmatprep.subr.mxu0 0.0
        %1885 = vmatpush1.xpose.msra.mxu0 0.0
        %1886 = vmatprep.mubr.f32.mxu0 0.0
        %1887 = vmatmul.mubr.f32.gmra.mrb[0].mxu0 %v1237
        %v1888 = vpop.f32.mrb[0].mxu0
        %v1889 = vadd.f32 %v874, %v1888
        %v1890 = vpop.f32.mrb[0].mxu0
        %v1891 = vadd.f32 %v875, %v1890
        %1892 = vmatprep.mubr.f32.mxu0 0.0
        %1893 = vmatmul.mubr.f32.gmra.mrb[0].mxu0 %v1239
        %v1894 = vpop.f32.mrb[0].mxu0
        %v1895 = vadd.f32 %v878, %v1894
        %v1896 = vpop.f32.mrb[0].mxu0
        %v1897 = vadd.f32 %v879, %v1896
        %1898 = vmatprep.mubr.f32.mxu0 0.0
        %1899 = vmatmul.mubr.f32.gmra.mrb[0].mxu0 %v1241
        %v1900 = vpop.f32.mrb[0].mxu0
        %v1901 = vadd.f32 %v882, %v1900
        %v1902 = vpop.f32.mrb[0].mxu0
        %v1903 = vadd.f32 %v883, %v1902
        %1904 = vmatprep.mubr.f32.mxu0 0.0
        %1905 = vmatmul.mubr.f32.gmra.mrb[0].mxu0 %v1243
        %v1906 = vpop.f32.mrb[0].mxu0
        %v1907 = vadd.f32 %v886, %v1906
        %v1908 = vpop.f32.mrb[0].mxu0
        %v1909 = vadd.f32 %v887, %v1908
        %1910 = vmatprep.mubr.f32.mxu0 0.0
        %1911 = vmatmul.mubr.f32.gmra.mrb[0].mxu0 %v1245
        %v1912 = vpop.f32.mrb[0].mxu0
        %v1913 = vadd.f32 %v890, %v1912
        %v1914 = vpop.f32.mrb[0].mxu0
        %v1915 = vadd.f32 %v891, %v1914
        %1916 = vmatprep.mubr.f32.mxu0 0.0
        %1917 = vmatmul.mubr.f32.gmra.mrb[0].mxu0 %v1247
        %v1918 = vpop.f32.mrb[0].mxu0
        %v1919 = vadd.f32 %v894, %v1918
        %v1920 = vpop.f32.mrb[0].mxu0
        %v1921 = vadd.f32 %v895, %v1920
        %1922 = vmatprep.mubr.f32.mxu0 0.0
        %1923 = vmatmul.mubr.f32.gmra.mrb[0].mxu0 %v1249
        %v1924 = vpop.f32.mrb[0].mxu0
        %v1925 = vadd.f32 %v898, %v1924
        %v1926 = vpop.f32.mrb[0].mxu0
        %v1927 = vadd.f32 %v899, %v1926
        %1928 = vmatprep.mubr.f32.mxu0 0.0
        %1929 = vmatmul.mubr.f32.gmra.mrb[0].mxu0 %v1251
        %v1930 = vpop.f32.mrb[0].mxu0
        %v1931 = vadd.f32 %v902, %v1930
        %v1932 = vpop.f32.mrb[0].mxu0
        %v1933 = vadd.f32 %v903, %v1932
        %1934 = vmatprep.mubr.f32.mxu0 0.0
        %1935 = vmatmul.mubr.f32.gmra.mrb[0].mxu0 %v1253
        %v1936 = vpop.f32.mrb[0].mxu0
        %v1937 = vadd.f32 %v906, %v1936
        %v1938 = vpop.f32.mrb[0].mxu0
        %v1939 = vadd.f32 %v907, %v1938
        %1940 = vmatprep.mubr.f32.mxu0 0.0
        %1941 = vmatmul.mubr.f32.gmra.mrb[0].mxu0 %v1255
        %v1942 = vpop.f32.mrb[0].mxu0
        %v1943 = vadd.f32 %v910, %v1942
        %v1944 = vpop.f32.mrb[0].mxu0
        %v1945 = vadd.f32 %v911, %v1944
        %1946 = vmatprep.mubr.f32.mxu0 0.0
        %1947 = vmatmul.mubr.f32.gmra.mrb[0].mxu0 %v1257
        %v1948 = vpop.f32.mrb[0].mxu0
        %v1949 = vadd.f32 %v914, %v1948
        %v1950 = vpop.f32.mrb[0].mxu0
        %v1951 = vadd.f32 %v915, %v1950
        %1952 = vmatprep.mubr.f32.mxu0 0.0
        %1953 = vmatmul.mubr.f32.gmra.mrb[0].mxu0 %v1259
        %v1954 = vpop.f32.mrb[0].mxu0
        %v1955 = vadd.f32 %v918, %v1954
        %v1956 = vpop.f32.mrb[0].mxu0
        %v1957 = vadd.f32 %v919, %v1956
        %1958 = vmatprep.mubr.f32.mxu0 0.0
        %1959 = vmatmul.mubr.f32.gmra.mrb[0].mxu0 %v1261
        %v1960 = vpop.f32.mrb[0].mxu0
        %v1961 = vadd.f32 %v922, %v1960
        %v1962 = vpop.f32.mrb[0].mxu0
        %v1963 = vadd.f32 %v923, %v1962
        %1964 = vmatprep.mubr.f32.mxu0 0.0
        %1965 = vmatmul.mubr.f32.gmra.mrb[0].mxu0 %v1263
        %v1966 = vpop.f32.mrb[0].mxu0
        %v1967 = vadd.f32 %v926, %v1966
        %v1968 = vpop.f32.mrb[0].mxu0
        %v1969 = vadd.f32 %v927, %v1968
        %1970 = vmatprep.mubr.f32.mxu0 0.0
        %1971 = vmatmul.mubr.f32.gmra.mrb[0].mxu0 %v1265
        %v1972 = vpop.f32.mrb[0].mxu0
        %v1973 = vadd.f32 %v930, %v1972
        %v1974 = vpop.f32.mrb[0].mxu0
        %v1975 = vadd.f32 %v931, %v1974
        %1976 = vmatprep.mubr.f32.mxu0 0.0
        %1977 = vmatmul.mubr.f32.gmra.mrb[0].mxu0 %v1267
        %v1978 = vpop.f32.mrb[0].mxu0
        %v1979 = vadd.f32 %v934, %v1978
        %v1980 = vpop.f32.mrb[0].mxu0
        %v1981 = vadd.f32 %v935, %v1980
        %1982 = vmatprep.mubr.f32.mxu0 0.0
        %1983 = vmatmul.mubr.f32.gmra.mrb[0].mxu0 %v1269
        %v1984 = vpop.f32.mrb[0].mxu0
        %v1985 = vadd.f32 %v938, %v1984
        %v1986 = vpop.f32.mrb[0].mxu0
        %v1987 = vadd.f32 %v939, %v1986
        %1988 = vmatprep.mubr.f32.mxu0 0.0
        %1989 = vmatmul.mubr.f32.gmra.mrb[0].mxu0 %v1271
        %v1990 = vpop.f32.mrb[0].mxu0
        %v1991 = vadd.f32 %v942, %v1990
        %v1992 = vpop.f32.mrb[0].mxu0
        %v1993 = vadd.f32 %v943, %v1992
        %1994 = vmatprep.mubr.f32.mxu0 0.0
        %1995 = vmatmul.mubr.f32.gmra.mrb[0].mxu0 %v1273
        %v1996 = vpop.f32.mrb[0].mxu0
        %v1997 = vadd.f32 %v946, %v1996
        %v1998 = vpop.f32.mrb[0].mxu0
        %v1999 = vadd.f32 %v947, %v1998
        %2000 = vmatprep.mubr.f32.mxu0 0.0
        %2001 = vmatmul.mubr.f32.gmra.mrb[0].mxu0 %v1275
        %v2002 = vpop.f32.mrb[0].mxu0
        %v2003 = vadd.f32 %v950, %v2002
        %v2004 = vpop.f32.mrb[0].mxu0
        %v2005 = vadd.f32 %v951, %v2004
        %2006 = vmatprep.mubr.f32.mxu0 0.0
        %2007 = vmatmul.mubr.f32.gmra.mrb[0].mxu0 %v1277
        %v2008 = vpop.f32.mrb[0].mxu0
        %v2009 = vadd.f32 %v954, %v2008
        %v2010 = vpop.f32.mrb[0].mxu0
        %v2011 = vadd.f32 %v955, %v2010
        %2012 = vmatprep.mubr.f32.mxu0 0.0
        %2013 = vmatmul.mubr.f32.gmra.mrb[0].mxu0 %v1279
        %v2014 = vpop.f32.mrb[0].mxu0
        %v2015 = vadd.f32 %v958, %v2014
        %v2016 = vpop.f32.mrb[0].mxu0
        %v2017 = vadd.f32 %v959, %v2016
        %2018 = vmatprep.mubr.f32.mxu0 0.0
        %2019 = vmatmul.mubr.f32.gmra.mrb[0].mxu0 %v1281
        %v2020 = vpop.f32.mrb[0].mxu0
        %v2021 = vadd.f32 %v962, %v2020
        %v2022 = vpop.f32.mrb[0].mxu0
        %v2023 = vadd.f32 %v963, %v2022
        %2024 = vmatprep.mubr.f32.mxu0 0.0
        %2025 = vmatmul.mubr.f32.gmra.mrb[0].mxu0 %v1283
        %v2026 = vpop.f32.mrb[0].mxu0
        %v2027 = vadd.f32 %v966, %v2026
        %v2028 = vpop.f32.mrb[0].mxu0
        %v2029 = vadd.f32 %v967, %v2028
        %2030 = vmatprep.mubr.f32.mxu0 0.0
        %2031 = vmatmul.mubr.f32.gmra.mrb[0].mxu0 %v1285
        %v2032 = vpop.f32.mrb[0].mxu0
        %v2033 = vadd.f32 %v970, %v2032
        %v2034 = vpop.f32.mrb[0].mxu0
        %v2035 = vadd.f32 %v971, %v2034
        %2036 = vmatprep.mubr.f32.mxu0 0.0
        %2037 = vmatmul.mubr.f32.gmra.mrb[0].mxu0 %v1287
        %v2038 = vpop.f32.mrb[0].mxu0
        %v2039 = vadd.f32 %v974, %v2038
        %v2040 = vpop.f32.mrb[0].mxu0
        %v2041 = vadd.f32 %v975, %v2040
        %2042 = vmatprep.mubr.f32.mxu0 0.0
        %2043 = vmatmul.mubr.f32.gmra.mrb[0].mxu0 %v1289
        %v2044 = vpop.f32.mrb[0].mxu0
        %v2045 = vadd.f32 %v978, %v2044
        %v2046 = vpop.f32.mrb[0].mxu0
        %v2047 = vadd.f32 %v979, %v2046
        %2048 = vmatprep.mubr.f32.mxu0 0.0
        %2049 = vmatmul.mubr.f32.gmra.mrb[0].mxu0 %v1291
        %v2050 = vpop.f32.mrb[0].mxu0
        %v2051 = vadd.f32 %v982, %v2050
        %v2052 = vpop.f32.mrb[0].mxu0
        %v2053 = vadd.f32 %v983, %v2052
        %2054 = vmatprep.mubr.f32.mxu0 0.0
        %2055 = vmatmul.mubr.f32.gmra.mrb[0].mxu0 %v1293
        %v2056 = vpop.f32.mrb[0].mxu0
        %v2057 = vadd.f32 %v986, %v2056
        %v2058 = vpop.f32.mrb[0].mxu0
        %v2059 = vadd.f32 %v987, %v2058
        %2060 = vmatprep.mubr.f32.mxu0 0.0
        %2061 = vmatmul.mubr.f32.gmra.mrb[0].mxu0 %v1295
        %v2062 = vpop.f32.mrb[0].mxu0
        %v2063 = vadd.f32 %v990, %v2062
        %v2064 = vpop.f32.mrb[0].mxu0
        %v2065 = vadd.f32 %v991, %v2064
        %2066 = vmatprep.mubr.f32.mxu0 0.0
        %2067 = vmatmul.mubr.f32.gmra.mrb[0].mxu0 %v1297
        %v2068 = vpop.f32.mrb[0].mxu0
        %v2069 = vadd.f32 %v994, %v2068
        %v2070 = vpop.f32.mrb[0].mxu0
        %v2071 = vadd.f32 %v995, %v2070
        %2072 = vmatprep.mubr.f32.mxu0 0.0
        %2073 = vmatmul.mubr.f32.gmra.mrb[0].mxu0 %v1299
        %v2074 = vpop.f32.mrb[0].mxu0
        %v2075 = vadd.f32 %v998, %v2074
        %v2076 = vpop.f32.mrb[0].mxu0
        %v2077 = vadd.f32 %v999, %v2076
        %2078 = vmatprep.mubr.f32.mxu0 0.0
        %2079 = vmatmul.mubr.f32.gmra.mrb[0].mxu0 %v1301
        %v2080 = vpop.f32.mrb[0].mxu0
        %v2081 = vadd.f32 %v1002, %v2080
        %v2082 = vpop.f32.mrb[0].mxu0
        %v2083 = vadd.f32 %v1003, %v2082
        %2084 = vmatprep.mubr.f32.mxu0 0.0
        %2085 = vmatmul.mubr.f32.gmra.mrb[0].mxu0 %v1303
        %v2086 = vpop.f32.mrb[0].mxu0
        %v2087 = vadd.f32 %v1006, %v2086
        %v2088 = vpop.f32.mrb[0].mxu0
        %v2089 = vadd.f32 %v1007, %v2088
        %2090 = vmatprep.mubr.f32.mxu0 0.0
        %2091 = vmatmul.mubr.f32.gmra.mrb[0].mxu0 %v1305
        %v2092 = vpop.f32.mrb[0].mxu0
        %v2093 = vadd.f32 %v1010, %v2092
        %v2094 = vpop.f32.mrb[0].mxu0
        %v2095 = vadd.f32 %v1011, %v2094
        %2096 = vmatprep.mubr.f32.mxu0 0.0
        %2097 = vmatmul.mubr.f32.gmra.mrb[0].mxu0 %v1307
        %v2098 = vpop.f32.mrb[0].mxu0
        %v2099 = vadd.f32 %v1014, %v2098
        %v2100 = vpop.f32.mrb[0].mxu0
        %v2101 = vadd.f32 %v1015, %v2100
        %2102 = vmatprep.mubr.f32.mxu0 0.0
        %2103 = vmatmul.mubr.f32.gmra.mrb[0].mxu0 %v1309
        %v2104 = vpop.f32.mrb[0].mxu0
        %v2105 = vadd.f32 %v1018, %v2104
        %v2106 = vpop.f32.mrb[0].mxu0
        %v2107 = vadd.f32 %v1019, %v2106
        %2108 = vmatprep.mubr.f32.mxu0 0.0
        %2109 = vmatmul.mubr.f32.gmra.mrb[0].mxu0 %v1311
        %v2110 = vpop.f32.mrb[0].mxu0
        %v2111 = vadd.f32 %v1022, %v2110
        %v2112 = vpop.f32.mrb[0].mxu0
        %v2113 = vadd.f32 %v1023, %v2112
        %2114 = vmatprep.mubr.f32.mxu0 0.0
        %2115 = vmatmul.mubr.f32.gmra.mrb[0].mxu0 %v1313
        %v2116 = vpop.f32.mrb[0].mxu0
        %v2117 = vadd.f32 %v1026, %v2116
        %v2118 = vpop.f32.mrb[0].mxu0
        %v2119 = vadd.f32 %v1027, %v2118
        %2120 = vmatprep.mubr.f32.mxu0 0.0
        %2121 = vmatmul.mubr.f32.gmra.mrb[0].mxu0 %v1315
        %v2122 = vpop.f32.mrb[0].mxu0
        %v2123 = vadd.f32 %v1030, %v2122
        %v2124 = vpop.f32.mrb[0].mxu0
        %v2125 = vadd.f32 %v1031, %v2124
        %2126 = vmatprep.mubr.f32.mxu0 0.0
        %2127 = vmatmul.mubr.f32.gmra.mrb[0].mxu0 %v1317
        %v2128 = vpop.f32.mrb[0].mxu0
        %v2129 = vadd.f32 %v1034, %v2128
        %v2130 = vpop.f32.mrb[0].mxu0
        %v2131 = vadd.f32 %v1035, %v2130
        %2132 = vmatprep.mubr.f32.mxu0 0.0
        %2133 = vmatmul.mubr.f32.gmra.mrb[0].mxu0 %v1319
        %v2134 = vpop.f32.mrb[0].mxu0
        %v2135 = vadd.f32 %v1038, %v2134
        %v2136 = vpop.f32.mrb[0].mxu0
        %v2137 = vadd.f32 %v1039, %v2136
        %2138 = vmatprep.mubr.f32.mxu0 0.0
        %2139 = vmatmul.mubr.f32.gmra.mrb[0].mxu0 %v1321
        %v2140 = vpop.f32.mrb[0].mxu0
        %v2141 = vadd.f32 %v1042, %v2140
        %v2142 = vpop.f32.mrb[0].mxu0
        %v2143 = vadd.f32 %v1043, %v2142
        %2144 = vmatprep.mubr.f32.mxu0 0.0
        %2145 = vmatmul.mubr.f32.gmra.mrb[0].mxu0 %v1323
        %v2146 = vpop.f32.mrb[0].mxu0
        %v2147 = vadd.f32 %v1046, %v2146
        %v2148 = vpop.f32.mrb[0].mxu0
        %v2149 = vadd.f32 %v1047, %v2148
        %2150 = vmatprep.mubr.f32.mxu0 0.0
        %2151 = vmatmul.mubr.f32.gmra.mrb[0].mxu0 %v1325
        %v2152 = vpop.f32.mrb[0].mxu0
        %v2153 = vadd.f32 %v1050, %v2152
        %v2154 = vpop.f32.mrb[0].mxu0
        %v2155 = vadd.f32 %v1051, %v2154
        %2156 = vmatprep.mubr.f32.mxu0 0.0
        %2157 = vmatmul.mubr.f32.gmra.mrb[0].mxu0 %v1327
        %v2158 = vpop.f32.mrb[0].mxu0
        %v2159 = vadd.f32 %v1054, %v2158
        %v2160 = vpop.f32.mrb[0].mxu0
        %v2161 = vadd.f32 %v1055, %v2160
        %2162 = vmatprep.mubr.f32.mxu0 0.0
        %2163 = vmatmul.mubr.f32.gmra.mrb[0].mxu0 %v1329
        %v2164 = vpop.f32.mrb[0].mxu0
        %v2165 = vadd.f32 %v1058, %v2164
        %v2166 = vpop.f32.mrb[0].mxu0
        %v2167 = vadd.f32 %v1059, %v2166
        %2168 = vmatprep.mubr.f32.mxu0 0.0
        %2169 = vmatmul.mubr.f32.gmra.mrb[0].mxu0 %v1331
        %v2170 = vpop.f32.mrb[0].mxu0
        %v2171 = vadd.f32 %v1062, %v2170
        %v2172 = vpop.f32.mrb[0].mxu0
        %v2173 = vadd.f32 %v1063, %v2172
        %2174 = vmatprep.mubr.f32.mxu0 0.0
        %2175 = vmatmul.mubr.f32.gmra.mrb[0].mxu0 %v1333
        %v2176 = vpop.f32.mrb[0].mxu0
        %v2177 = vadd.f32 %v1066, %v2176
        %v2178 = vpop.f32.mrb[0].mxu0
        %v2179 = vadd.f32 %v1067, %v2178
        %2180 = vmatprep.mubr.f32.mxu0 0.0
        %2181 = vmatmul.mubr.f32.gmra.mrb[0].mxu0 %v1335
        %v2182 = vpop.f32.mrb[0].mxu0
        %v2183 = vadd.f32 %v1070, %v2182
        %v2184 = vpop.f32.mrb[0].mxu0
        %v2185 = vadd.f32 %v1071, %v2184
        %2186 = vmatprep.mubr.f32.mxu0 0.0
        %2187 = vmatmul.mubr.f32.gmra.mrb[0].mxu0 %v1337
        %v2188 = vpop.f32.mrb[0].mxu0
        %v2189 = vadd.f32 %v1074, %v2188
        %v2190 = vpop.f32.mrb[0].mxu0
        %v2191 = vadd.f32 %v1075, %v2190
        %2192 = vmatprep.mubr.f32.mxu0 0.0
        %2193 = vmatmul.mubr.f32.gmra.mrb[0].mxu0 %v1339
        %v2194 = vpop.f32.mrb[0].mxu0
        %v2195 = vadd.f32 %v1078, %v2194
        %v2196 = vpop.f32.mrb[0].mxu0
        %v2197 = vadd.f32 %v1079, %v2196
        %2198 = vdwg.mxu0
        %v2199 = vmax.f32 %v1512, %v1514
        %v2200 = vmax.f32 %v2199, %v1889
        %v2201 = vsel %vm1236, %v1891, -inf
        %v2202 = vmax.f32 %v2200, %v2201
        %2203 = vmax.xlane.f32.xlu0 %v2202
        %v2204 = vpop.xlane.xlu0 %2203
        %v2205 = vmax.f32 %v1518, %v1520
        %v2206 = vmax.f32 %v2205, %v1895
        %v2207 = vsel %vm1236, %v1897, -inf
        %v2208 = vmax.f32 %v2206, %v2207
        %2209 = vmax.xlane.f32.xlu0 %v2208
        %v2210 = vpop.xlane.xlu0 %2209
        %v2211 = vmax.f32 %v1524, %v1526
        %v2212 = vmax.f32 %v2211, %v1901
        %v2213 = vsel %vm1236, %v1903, -inf
        %v2214 = vmax.f32 %v2212, %v2213
        %2215 = vmax.xlane.f32.xlu0 %v2214
        %v2216 = vpop.xlane.xlu0 %2215
        %v2217 = vmax.f32 %v1530, %v1532
        %v2218 = vmax.f32 %v2217, %v1907
        %v2219 = vsel %vm1236, %v1909, -inf
        %v2220 = vmax.f32 %v2218, %v2219
        %2221 = vmax.xlane.f32.xlu0 %v2220
        %v2222 = vpop.xlane.xlu0 %2221
        %v2223 = vmax.f32 %v1536, %v1538
        %v2224 = vmax.f32 %v2223, %v1913
        %v2225 = vsel %vm1236, %v1915, -inf
        %v2226 = vmax.f32 %v2224, %v2225
        %2227 = vmax.xlane.f32.xlu0 %v2226
        %v2228 = vpop.xlane.xlu0 %2227
        %v2229 = vmax.f32 %v1542, %v1544
        %v2230 = vmax.f32 %v2229, %v1919
        %v2231 = vsel %vm1236, %v1921, -inf
        %v2232 = vmax.f32 %v2230, %v2231
        %2233 = vmax.xlane.f32.xlu0 %v2232
        %v2234 = vpop.xlane.xlu0 %2233
        %v2235 = vmax.f32 %v1548, %v1550
        %v2236 = vmax.f32 %v2235, %v1925
        %v2237 = vsel %vm1236, %v1927, -inf
        %v2238 = vmax.f32 %v2236, %v2237
        %2239 = vmax.xlane.f32.xlu0 %v2238
        %v2240 = vpop.xlane.xlu0 %2239
        %v2241 = vmax.f32 %v1554, %v1556
        %v2242 = vmax.f32 %v2241, %v1931
        %v2243 = vsel %vm1236, %v1933, -inf
        %v2244 = vmax.f32 %v2242, %v2243
        %2245 = vmax.xlane.f32.xlu0 %v2244
        %v2246 = vpop.xlane.xlu0 %2245
        %v2247 = vmax.f32 %v1560, %v1562
        %v2248 = vmax.f32 %v2247, %v1937
        %v2249 = vsel %vm1236, %v1939, -inf
        %v2250 = vmax.f32 %v2248, %v2249
        %2251 = vmax.xlane.f32.xlu0 %v2250
        %v2252 = vpop.xlane.xlu0 %2251
        %v2253 = vmax.f32 %v1566, %v1568
        %v2254 = vmax.f32 %v2253, %v1943
        %v2255 = vsel %vm1236, %v1945, -inf
        %v2256 = vmax.f32 %v2254, %v2255
        %2257 = vmax.xlane.f32.xlu0 %v2256
        %v2258 = vpop.xlane.xlu0 %2257
        %v2259 = vmax.f32 %v1572, %v1574
        %v2260 = vmax.f32 %v2259, %v1949
        %v2261 = vsel %vm1236, %v1951, -inf
        %v2262 = vmax.f32 %v2260, %v2261
        %2263 = vmax.xlane.f32.xlu0 %v2262
        %v2264 = vpop.xlane.xlu0 %2263
        %v2265 = vmax.f32 %v1578, %v1580
        %v2266 = vmax.f32 %v2265, %v1955
        %v2267 = vsel %vm1236, %v1957, -inf
        %v2268 = vmax.f32 %v2266, %v2267
        %2269 = vmax.xlane.f32.xlu0 %v2268
        %v2270 = vpop.xlane.xlu0 %2269
        %v2271 = vmax.f32 %v1584, %v1586
        %v2272 = vmax.f32 %v2271, %v1961
        %v2273 = vsel %vm1236, %v1963, -inf
        %v2274 = vmax.f32 %v2272, %v2273
        %2275 = vmax.xlane.f32.xlu0 %v2274
        %v2276 = vpop.xlane.xlu0 %2275
        %v2277 = vmax.f32 %v1590, %v1592
        %v2278 = vmax.f32 %v2277, %v1967
        %v2279 = vsel %vm1236, %v1969, -inf
        %v2280 = vmax.f32 %v2278, %v2279
        %2281 = vmax.xlane.f32.xlu0 %v2280
        %v2282 = vpop.xlane.xlu0 %2281
        %v2283 = vmax.f32 %v1596, %v1598
        %v2284 = vmax.f32 %v2283, %v1973
        %v2285 = vsel %vm1236, %v1975, -inf
        %v2286 = vmax.f32 %v2284, %v2285
        %2287 = vmax.xlane.f32.xlu0 %v2286
        %v2288 = vpop.xlane.xlu0 %2287
        %v2289 = vmax.f32 %v1602, %v1604
        %v2290 = vmax.f32 %v2289, %v1979
        %v2291 = vsel %vm1236, %v1981, -inf
        %v2292 = vmax.f32 %v2290, %v2291
        %2293 = vmax.xlane.f32.xlu0 %v2292
        %v2294 = vpop.xlane.xlu0 %2293
        %v2295 = vmax.f32 %v1608, %v1610
        %v2296 = vmax.f32 %v2295, %v1985
        %v2297 = vsel %vm1236, %v1987, -inf
        %v2298 = vmax.f32 %v2296, %v2297
        %2299 = vmax.xlane.f32.xlu0 %v2298
        %v2300 = vpop.xlane.xlu0 %2299
        %v2301 = vmax.f32 %v1614, %v1616
        %v2302 = vmax.f32 %v2301, %v1991
        %v2303 = vsel %vm1236, %v1993, -inf
        %v2304 = vmax.f32 %v2302, %v2303
        %2305 = vmax.xlane.f32.xlu0 %v2304
        %v2306 = vpop.xlane.xlu0 %2305
        %v2307 = vmax.f32 %v1620, %v1622
        %v2308 = vmax.f32 %v2307, %v1997
        %v2309 = vsel %vm1236, %v1999, -inf
        %v2310 = vmax.f32 %v2308, %v2309
        %2311 = vmax.xlane.f32.xlu0 %v2310
        %v2312 = vpop.xlane.xlu0 %2311
        %v2313 = vmax.f32 %v1626, %v1628
        %v2314 = vmax.f32 %v2313, %v2003
        %v2315 = vsel %vm1236, %v2005, -inf
        %v2316 = vmax.f32 %v2314, %v2315
        %2317 = vmax.xlane.f32.xlu0 %v2316
        %v2318 = vpop.xlane.xlu0 %2317
        %v2319 = vmax.f32 %v1632, %v1634
        %v2320 = vmax.f32 %v2319, %v2009
        %v2321 = vsel %vm1236, %v2011, -inf
        %v2322 = vmax.f32 %v2320, %v2321
        %2323 = vmax.xlane.f32.xlu0 %v2322
        %v2324 = vpop.xlane.xlu0 %2323
        %v2325 = vmax.f32 %v1638, %v1640
        %v2326 = vmax.f32 %v2325, %v2015
        %v2327 = vsel %vm1236, %v2017, -inf
        %v2328 = vmax.f32 %v2326, %v2327
        %2329 = vmax.xlane.f32.xlu0 %v2328
        %v2330 = vpop.xlane.xlu0 %2329
        %v2331 = vmax.f32 %v1644, %v1646
        %v2332 = vmax.f32 %v2331, %v2021
        %v2333 = vsel %vm1236, %v2023, -inf
        %v2334 = vmax.f32 %v2332, %v2333
        %2335 = vmax.xlane.f32.xlu0 %v2334
        %v2336 = vpop.xlane.xlu0 %2335
        %v2337 = vmax.f32 %v1650, %v1652
        %v2338 = vmax.f32 %v2337, %v2027
        %v2339 = vsel %vm1236, %v2029, -inf
        %v2340 = vmax.f32 %v2338, %v2339
        %2341 = vmax.xlane.f32.xlu0 %v2340
        %v2342 = vpop.xlane.xlu0 %2341
        %v2343 = vmax.f32 %v1656, %v1658
        %v2344 = vmax.f32 %v2343, %v2033
        %v2345 = vsel %vm1236, %v2035, -inf
        %v2346 = vmax.f32 %v2344, %v2345
        %2347 = vmax.xlane.f32.xlu0 %v2346
        %v2348 = vpop.xlane.xlu0 %2347
        %v2349 = vmax.f32 %v1662, %v1664
        %v2350 = vmax.f32 %v2349, %v2039
        %v2351 = vsel %vm1236, %v2041, -inf
        %v2352 = vmax.f32 %v2350, %v2351
        %2353 = vmax.xlane.f32.xlu0 %v2352
        %v2354 = vpop.xlane.xlu0 %2353
        %v2355 = vmax.f32 %v1668, %v1670
        %v2356 = vmax.f32 %v2355, %v2045
        %v2357 = vsel %vm1236, %v2047, -inf
        %v2358 = vmax.f32 %v2356, %v2357
        %2359 = vmax.xlane.f32.xlu0 %v2358
        %v2360 = vpop.xlane.xlu0 %2359
        %v2361 = vmax.f32 %v1674, %v1676
        %v2362 = vmax.f32 %v2361, %v2051
        %v2363 = vsel %vm1236, %v2053, -inf
        %v2364 = vmax.f32 %v2362, %v2363
        %2365 = vmax.xlane.f32.xlu0 %v2364
        %v2366 = vpop.xlane.xlu0 %2365
        %v2367 = vmax.f32 %v1680, %v1682
        %v2368 = vmax.f32 %v2367, %v2057
        %v2369 = vsel %vm1236, %v2059, -inf
        %v2370 = vmax.f32 %v2368, %v2369
        %2371 = vmax.xlane.f32.xlu0 %v2370
        %v2372 = vpop.xlane.xlu0 %2371
        %v2373 = vmax.f32 %v1686, %v1688
        %v2374 = vmax.f32 %v2373, %v2063
        %v2375 = vsel %vm1236, %v2065, -inf
        %v2376 = vmax.f32 %v2374, %v2375
        %2377 = vmax.xlane.f32.xlu0 %v2376
        %v2378 = vpop.xlane.xlu0 %2377
        %v2379 = vmax.f32 %v1692, %v1694
        %v2380 = vmax.f32 %v2379, %v2069
        %v2381 = vsel %vm1236, %v2071, -inf
        %v2382 = vmax.f32 %v2380, %v2381
        %2383 = vmax.xlane.f32.xlu0 %v2382
        %v2384 = vpop.xlane.xlu0 %2383
        %v2385 = vmax.f32 %v1698, %v1700
        %v2386 = vmax.f32 %v2385, %v2075
        %v2387 = vsel %vm1236, %v2077, -inf
        %v2388 = vmax.f32 %v2386, %v2387
        %2389 = vmax.xlane.f32.xlu0 %v2388
        %v2390 = vpop.xlane.xlu0 %2389
        %v2391 = vmax.f32 %v1704, %v1706
        %v2392 = vmax.f32 %v2391, %v2081
        %v2393 = vsel %vm1236, %v2083, -inf
        %v2394 = vmax.f32 %v2392, %v2393
        %2395 = vmax.xlane.f32.xlu0 %v2394
        %v2396 = vpop.xlane.xlu0 %2395
        %v2397 = vmax.f32 %v1710, %v1712
        %v2398 = vmax.f32 %v2397, %v2087
        %v2399 = vsel %vm1236, %v2089, -inf
        %v2400 = vmax.f32 %v2398, %v2399
        %2401 = vmax.xlane.f32.xlu0 %v2400
        %v2402 = vpop.xlane.xlu0 %2401
        %v2403 = vmax.f32 %v1716, %v1718
        %v2404 = vmax.f32 %v2403, %v2093
        %v2405 = vsel %vm1236, %v2095, -inf
        %v2406 = vmax.f32 %v2404, %v2405
        %2407 = vmax.xlane.f32.xlu0 %v2406
        %v2408 = vpop.xlane.xlu0 %2407
        %v2409 = vmax.f32 %v1722, %v1724
        %v2410 = vmax.f32 %v2409, %v2099
        %v2411 = vsel %vm1236, %v2101, -inf
        %v2412 = vmax.f32 %v2410, %v2411
        %2413 = vmax.xlane.f32.xlu0 %v2412
        %v2414 = vpop.xlane.xlu0 %2413
        %v2415 = vmax.f32 %v1728, %v1730
        %v2416 = vmax.f32 %v2415, %v2105
        %v2417 = vsel %vm1236, %v2107, -inf
        %v2418 = vmax.f32 %v2416, %v2417
        %2419 = vmax.xlane.f32.xlu0 %v2418
        %v2420 = vpop.xlane.xlu0 %2419
        %v2421 = vmax.f32 %v1734, %v1736
        %v2422 = vmax.f32 %v2421, %v2111
        %v2423 = vsel %vm1236, %v2113, -inf
        %v2424 = vmax.f32 %v2422, %v2423
        %2425 = vmax.xlane.f32.xlu0 %v2424
        %v2426 = vpop.xlane.xlu0 %2425
        %v2427 = vmax.f32 %v1740, %v1742
        %v2428 = vmax.f32 %v2427, %v2117
        %v2429 = vsel %vm1236, %v2119, -inf
        %v2430 = vmax.f32 %v2428, %v2429
        %2431 = vmax.xlane.f32.xlu0 %v2430
        %v2432 = vpop.xlane.xlu0 %2431
        %v2433 = vmax.f32 %v1746, %v1748
        %v2434 = vmax.f32 %v2433, %v2123
        %v2435 = vsel %vm1236, %v2125, -inf
        %v2436 = vmax.f32 %v2434, %v2435
        %2437 = vmax.xlane.f32.xlu0 %v2436
        %v2438 = vpop.xlane.xlu0 %2437
        %v2439 = vmax.f32 %v1752, %v1754
        %v2440 = vmax.f32 %v2439, %v2129
        %v2441 = vsel %vm1236, %v2131, -inf
        %v2442 = vmax.f32 %v2440, %v2441
        %2443 = vmax.xlane.f32.xlu0 %v2442
        %v2444 = vpop.xlane.xlu0 %2443
        %v2445 = vmax.f32 %v1758, %v1760
        %v2446 = vmax.f32 %v2445, %v2135
        %v2447 = vsel %vm1236, %v2137, -inf
        %v2448 = vmax.f32 %v2446, %v2447
        %2449 = vmax.xlane.f32.xlu0 %v2448
        %v2450 = vpop.xlane.xlu0 %2449
        %v2451 = vmax.f32 %v1764, %v1766
        %v2452 = vmax.f32 %v2451, %v2141
        %v2453 = vsel %vm1236, %v2143, -inf
        %v2454 = vmax.f32 %v2452, %v2453
        %2455 = vmax.xlane.f32.xlu0 %v2454
        %v2456 = vpop.xlane.xlu0 %2455
        %v2457 = vmax.f32 %v1770, %v1772
        %v2458 = vmax.f32 %v2457, %v2147
        %v2459 = vsel %vm1236, %v2149, -inf
        %v2460 = vmax.f32 %v2458, %v2459
        %2461 = vmax.xlane.f32.xlu0 %v2460
        %v2462 = vpop.xlane.xlu0 %2461
        %v2463 = vmax.f32 %v1776, %v1778
        %v2464 = vmax.f32 %v2463, %v2153
        %v2465 = vsel %vm1236, %v2155, -inf
        %v2466 = vmax.f32 %v2464, %v2465
        %2467 = vmax.xlane.f32.xlu0 %v2466
        %v2468 = vpop.xlane.xlu0 %2467
        %v2469 = vmax.f32 %v1782, %v1784
        %v2470 = vmax.f32 %v2469, %v2159
        %v2471 = vsel %vm1236, %v2161, -inf
        %v2472 = vmax.f32 %v2470, %v2471
        %2473 = vmax.xlane.f32.xlu0 %v2472
        %v2474 = vpop.xlane.xlu0 %2473
        %v2475 = vmax.f32 %v1788, %v1790
        %v2476 = vmax.f32 %v2475, %v2165
        %v2477 = vsel %vm1236, %v2167, -inf
        %v2478 = vmax.f32 %v2476, %v2477
        %2479 = vmax.xlane.f32.xlu0 %v2478
        %v2480 = vpop.xlane.xlu0 %2479
        %v2481 = vmax.f32 %v1794, %v1796
        %v2482 = vmax.f32 %v2481, %v2171
        %v2483 = vsel %vm1236, %v2173, -inf
        %v2484 = vmax.f32 %v2482, %v2483
        %2485 = vmax.xlane.f32.xlu0 %v2484
        %v2486 = vpop.xlane.xlu0 %2485
        %v2487 = vmax.f32 %v1800, %v1802
        %v2488 = vmax.f32 %v2487, %v2177
        %v2489 = vsel %vm1236, %v2179, -inf
        %v2490 = vmax.f32 %v2488, %v2489
        %2491 = vmax.xlane.f32.xlu0 %v2490
        %v2492 = vpop.xlane.xlu0 %2491
        %v2493 = vmax.f32 %v1806, %v1808
        %v2494 = vmax.f32 %v2493, %v2183
        %v2495 = vsel %vm1236, %v2185, -inf
        %v2496 = vmax.f32 %v2494, %v2495
        %2497 = vmax.xlane.f32.xlu0 %v2496
        %v2498 = vpop.xlane.xlu0 %2497
        %v2499 = vmax.f32 %v1812, %v1814
        %v2500 = vmax.f32 %v2499, %v2189
        %v2501 = vsel %vm1236, %v2191, -inf
        %v2502 = vmax.f32 %v2500, %v2501
        %2503 = vmax.xlane.f32.xlu0 %v2502
        %v2504 = vpop.xlane.xlu0 %2503
        %v2505 = vmax.f32 %v1818, %v1820
        %v2506 = vmax.f32 %v2505, %v2195
        %v2507 = vsel %vm1236, %v2197, -inf
        %v2508 = vmax.f32 %v2506, %v2507
        %2509 = vmax.xlane.f32.xlu0 %v2508
        %v2510 = vpop.xlane.xlu0 %2509
        %v2511 = vsub.f32 %v1512, %v2204
        %v2512 = vsub.f32 %v1514, %v2204
        %v2513 = vsub.f32 %v1889, %v2204
        %v2514 = vsub.f32 %v1891, %v2204
        %v2515 = vsub.f32 %v1518, %v2210
        %v2516 = vsub.f32 %v1520, %v2210
        %v2517 = vsub.f32 %v1895, %v2210
        %v2518 = vsub.f32 %v1897, %v2210
        %v2519 = vsub.f32 %v1524, %v2216
        %v2520 = vsub.f32 %v1526, %v2216
        %v2521 = vsub.f32 %v1901, %v2216
        %v2522 = vsub.f32 %v1903, %v2216
        %v2523 = vsub.f32 %v1530, %v2222
        %v2524 = vsub.f32 %v1532, %v2222
        %v2525 = vsub.f32 %v1907, %v2222
        %v2526 = vsub.f32 %v1909, %v2222
        %v2527 = vsub.f32 %v1536, %v2228
        %v2528 = vsub.f32 %v1538, %v2228
        %v2529 = vsub.f32 %v1913, %v2228
        %v2530 = vsub.f32 %v1915, %v2228
        %v2531 = vsub.f32 %v1542, %v2234
        %v2532 = vsub.f32 %v1544, %v2234
        %v2533 = vsub.f32 %v1919, %v2234
        %v2534 = vsub.f32 %v1921, %v2234
        %v2535 = vsub.f32 %v1548, %v2240
        %v2536 = vsub.f32 %v1550, %v2240
        %v2537 = vsub.f32 %v1925, %v2240
        %v2538 = vsub.f32 %v1927, %v2240
        %v2539 = vsub.f32 %v1554, %v2246
        %v2540 = vsub.f32 %v1556, %v2246
        %v2541 = vsub.f32 %v1931, %v2246
        %v2542 = vsub.f32 %v1933, %v2246
        %v2543 = vsub.f32 %v1560, %v2252
        %v2544 = vsub.f32 %v1562, %v2252
        %v2545 = vsub.f32 %v1937, %v2252
        %v2546 = vsub.f32 %v1939, %v2252
        %v2547 = vsub.f32 %v1566, %v2258
        %v2548 = vsub.f32 %v1568, %v2258
        %v2549 = vsub.f32 %v1943, %v2258
        %v2550 = vsub.f32 %v1945, %v2258
        %v2551 = vsub.f32 %v1572, %v2264
        %v2552 = vsub.f32 %v1574, %v2264
        %v2553 = vsub.f32 %v1949, %v2264
        %v2554 = vsub.f32 %v1951, %v2264
        %v2555 = vsub.f32 %v1578, %v2270
        %v2556 = vsub.f32 %v1580, %v2270
        %v2557 = vsub.f32 %v1955, %v2270
        %v2558 = vsub.f32 %v1957, %v2270
        %v2559 = vsub.f32 %v1584, %v2276
        %v2560 = vsub.f32 %v1586, %v2276
        %v2561 = vsub.f32 %v1961, %v2276
        %v2562 = vsub.f32 %v1963, %v2276
        %v2563 = vsub.f32 %v1590, %v2282
        %v2564 = vsub.f32 %v1592, %v2282
        %v2565 = vsub.f32 %v1967, %v2282
        %v2566 = vsub.f32 %v1969, %v2282
        %v2567 = vsub.f32 %v1596, %v2288
        %v2568 = vsub.f32 %v1598, %v2288
        %v2569 = vsub.f32 %v1973, %v2288
        %v2570 = vsub.f32 %v1975, %v2288
        %v2571 = vsub.f32 %v1602, %v2294
        %v2572 = vsub.f32 %v1604, %v2294
        %v2573 = vsub.f32 %v1979, %v2294
        %v2574 = vsub.f32 %v1981, %v2294
        %v2575 = vsub.f32 %v1608, %v2300
        %v2576 = vsub.f32 %v1610, %v2300
        %v2577 = vsub.f32 %v1985, %v2300
        %v2578 = vsub.f32 %v1987, %v2300
        %v2579 = vsub.f32 %v1614, %v2306
        %v2580 = vsub.f32 %v1616, %v2306
        %v2581 = vsub.f32 %v1991, %v2306
        %v2582 = vsub.f32 %v1993, %v2306
        %v2583 = vsub.f32 %v1620, %v2312
        %v2584 = vsub.f32 %v1622, %v2312
        %v2585 = vsub.f32 %v1997, %v2312
        %v2586 = vsub.f32 %v1999, %v2312
        %v2587 = vsub.f32 %v1626, %v2318
        %v2588 = vsub.f32 %v1628, %v2318
        %v2589 = vsub.f32 %v2003, %v2318
        %v2590 = vsub.f32 %v2005, %v2318
        %v2591 = vsub.f32 %v1632, %v2324
        %v2592 = vsub.f32 %v1634, %v2324
        %v2593 = vsub.f32 %v2009, %v2324
        %v2594 = vsub.f32 %v2011, %v2324
        %v2595 = vsub.f32 %v1638, %v2330
        %v2596 = vsub.f32 %v1640, %v2330
        %v2597 = vsub.f32 %v2015, %v2330
        %v2598 = vsub.f32 %v2017, %v2330
        %v2599 = vsub.f32 %v1644, %v2336
        %v2600 = vsub.f32 %v1646, %v2336
        %v2601 = vsub.f32 %v2021, %v2336
        %v2602 = vsub.f32 %v2023, %v2336
        %v2603 = vsub.f32 %v1650, %v2342
        %v2604 = vsub.f32 %v1652, %v2342
        %v2605 = vsub.f32 %v2027, %v2342
        %v2606 = vsub.f32 %v2029, %v2342
        %v2607 = vsub.f32 %v1656, %v2348
        %v2608 = vsub.f32 %v1658, %v2348
        %v2609 = vsub.f32 %v2033, %v2348
        %v2610 = vsub.f32 %v2035, %v2348
        %v2611 = vsub.f32 %v1662, %v2354
        %v2612 = vsub.f32 %v1664, %v2354
        %v2613 = vsub.f32 %v2039, %v2354
        %v2614 = vsub.f32 %v2041, %v2354
        %v2615 = vsub.f32 %v1668, %v2360
        %v2616 = vsub.f32 %v1670, %v2360
        %v2617 = vsub.f32 %v2045, %v2360
        %v2618 = vsub.f32 %v2047, %v2360
        %v2619 = vsub.f32 %v1674, %v2366
        %v2620 = vsub.f32 %v1676, %v2366
        %v2621 = vsub.f32 %v2051, %v2366
        %v2622 = vsub.f32 %v2053, %v2366
        %v2623 = vsub.f32 %v1680, %v2372
        %v2624 = vsub.f32 %v1682, %v2372
        %v2625 = vsub.f32 %v2057, %v2372
        %v2626 = vsub.f32 %v2059, %v2372
        %v2627 = vsub.f32 %v1686, %v2378
        %v2628 = vsub.f32 %v1688, %v2378
        %v2629 = vsub.f32 %v2063, %v2378
        %v2630 = vsub.f32 %v2065, %v2378
        %v2631 = vsub.f32 %v1692, %v2384
        %v2632 = vsub.f32 %v1694, %v2384
        %v2633 = vsub.f32 %v2069, %v2384
        %v2634 = vsub.f32 %v2071, %v2384
        %v2635 = vsub.f32 %v1698, %v2390
        %v2636 = vsub.f32 %v1700, %v2390
        %v2637 = vsub.f32 %v2075, %v2390
        %v2638 = vsub.f32 %v2077, %v2390
        %v2639 = vsub.f32 %v1704, %v2396
        %v2640 = vsub.f32 %v1706, %v2396
        %v2641 = vsub.f32 %v2081, %v2396
        %v2642 = vsub.f32 %v2083, %v2396
        %v2643 = vsub.f32 %v1710, %v2402
        %v2644 = vsub.f32 %v1712, %v2402
        %v2645 = vsub.f32 %v2087, %v2402
        %v2646 = vsub.f32 %v2089, %v2402
        %v2647 = vsub.f32 %v1716, %v2408
        %v2648 = vsub.f32 %v1718, %v2408
        %v2649 = vsub.f32 %v2093, %v2408
        %v2650 = vsub.f32 %v2095, %v2408
        %v2651 = vsub.f32 %v1722, %v2414
        %v2652 = vsub.f32 %v1724, %v2414
        %v2653 = vsub.f32 %v2099, %v2414
        %v2654 = vsub.f32 %v2101, %v2414
        %v2655 = vsub.f32 %v1728, %v2420
        %v2656 = vsub.f32 %v1730, %v2420
        %v2657 = vsub.f32 %v2105, %v2420
        %v2658 = vsub.f32 %v2107, %v2420
        %v2659 = vsub.f32 %v1734, %v2426
        %v2660 = vsub.f32 %v1736, %v2426
        %v2661 = vsub.f32 %v2111, %v2426
        %v2662 = vsub.f32 %v2113, %v2426
        %v2663 = vsub.f32 %v1740, %v2432
        %v2664 = vsub.f32 %v1742, %v2432
        %v2665 = vsub.f32 %v2117, %v2432
        %v2666 = vsub.f32 %v2119, %v2432
        %v2667 = vsub.f32 %v1746, %v2438
        %v2668 = vsub.f32 %v1748, %v2438
        %v2669 = vsub.f32 %v2123, %v2438
        %v2670 = vsub.f32 %v2125, %v2438
        %v2671 = vsub.f32 %v1752, %v2444
        %v2672 = vsub.f32 %v1754, %v2444
        %v2673 = vsub.f32 %v2129, %v2444
        %v2674 = vsub.f32 %v2131, %v2444
        %v2675 = vsub.f32 %v1758, %v2450
        %v2676 = vsub.f32 %v1760, %v2450
        %v2677 = vsub.f32 %v2135, %v2450
        %v2678 = vsub.f32 %v2137, %v2450
        %v2679 = vsub.f32 %v1764, %v2456
        %v2680 = vsub.f32 %v1766, %v2456
        %v2681 = vsub.f32 %v2141, %v2456
        %v2682 = vsub.f32 %v2143, %v2456
        %v2683 = vsub.f32 %v1770, %v2462
        %v2684 = vsub.f32 %v1772, %v2462
        %v2685 = vsub.f32 %v2147, %v2462
        %v2686 = vsub.f32 %v2149, %v2462
        %v2687 = vsub.f32 %v1776, %v2468
        %v2688 = vsub.f32 %v1778, %v2468
        %v2689 = vsub.f32 %v2153, %v2468
        %v2690 = vsub.f32 %v2155, %v2468
        %v2691 = vsub.f32 %v1782, %v2474
        %v2692 = vsub.f32 %v1784, %v2474
        %v2693 = vsub.f32 %v2159, %v2474
        %v2694 = vsub.f32 %v2161, %v2474
        %v2695 = vsub.f32 %v1788, %v2480
        %v2696 = vsub.f32 %v1790, %v2480
        %v2697 = vsub.f32 %v2165, %v2480
        %v2698 = vsub.f32 %v2167, %v2480
        %v2699 = vsub.f32 %v1794, %v2486
        %v2700 = vsub.f32 %v1796, %v2486
        %v2701 = vsub.f32 %v2171, %v2486
        %v2702 = vsub.f32 %v2173, %v2486
        %v2703 = vsub.f32 %v1800, %v2492
        %v2704 = vsub.f32 %v1802, %v2492
        %v2705 = vsub.f32 %v2177, %v2492
        %v2706 = vsub.f32 %v2179, %v2492
        %v2707 = vsub.f32 %v1806, %v2498
        %v2708 = vsub.f32 %v1808, %v2498
        %v2709 = vsub.f32 %v2183, %v2498
        %v2710 = vsub.f32 %v2185, %v2498
        %v2711 = vsub.f32 %v1812, %v2504
        %v2712 = vsub.f32 %v1814, %v2504
        %v2713 = vsub.f32 %v2189, %v2504
        %v2714 = vsub.f32 %v2191, %v2504
        %v2715 = vsub.f32 %v1818, %v2510
        %v2716 = vsub.f32 %v1820, %v2510
        %v2717 = vsub.f32 %v2195, %v2510
        %v2718 = vsub.f32 %v2197, %v2510
        %v2719 = vmul.f32 %v2511, 1.442695
        %v2720 = vpow.pop %v2719
        %v2721 = vmul.f32 %v2512, 1.442695
        %v2722 = vpow.pop %v2721
        %v2723 = vmul.f32 %v2513, 1.442695
        %v2724 = vpow.pop %v2723
        %v2725 = vmul.f32 %v2514, 1.442695
        %v2726 = vpow.pop %v2725
        %v2727 = vmul.f32 %v2515, 1.442695
        %v2728 = vpow.pop %v2727
        %v2729 = vmul.f32 %v2516, 1.442695
        %v2730 = vpow.pop %v2729
        %v2731 = vmul.f32 %v2517, 1.442695
        %v2732 = vpow.pop %v2731
        %v2733 = vmul.f32 %v2518, 1.442695
        %v2734 = vpow.pop %v2733
        %v2735 = vmul.f32 %v2519, 1.442695
        %v2736 = vpow.pop %v2735
        %v2737 = vmul.f32 %v2520, 1.442695
        %v2738 = vpow.pop %v2737
        %v2739 = vmul.f32 %v2521, 1.442695
        %v2740 = vpow.pop %v2739
        %v2741 = vmul.f32 %v2522, 1.442695
        %v2742 = vpow.pop %v2741
        %v2743 = vmul.f32 %v2523, 1.442695
        %v2744 = vpow.pop %v2743
        %v2745 = vmul.f32 %v2524, 1.442695
        %v2746 = vpow.pop %v2745
        %v2747 = vmul.f32 %v2525, 1.442695
        %v2748 = vpow.pop %v2747
        %v2749 = vmul.f32 %v2526, 1.442695
        %v2750 = vpow.pop %v2749
        %v2751 = vmul.f32 %v2527, 1.442695
        %v2752 = vpow.pop %v2751
        %v2753 = vmul.f32 %v2528, 1.442695
        %v2754 = vpow.pop %v2753
        %v2755 = vmul.f32 %v2529, 1.442695
        %v2756 = vpow.pop %v2755
        %v2757 = vmul.f32 %v2530, 1.442695
        %v2758 = vpow.pop %v2757
        %v2759 = vmul.f32 %v2531, 1.442695
        %v2760 = vpow.pop %v2759
        %v2761 = vmul.f32 %v2532, 1.442695
        %v2762 = vpow.pop %v2761
        %v2763 = vmul.f32 %v2533, 1.442695
        %v2764 = vpow.pop %v2763
        %v2765 = vmul.f32 %v2534, 1.442695
        %v2766 = vpow.pop %v2765
        %v2767 = vmul.f32 %v2535, 1.442695
        %v2768 = vpow.pop %v2767
        %v2769 = vmul.f32 %v2536, 1.442695
        %v2770 = vpow.pop %v2769
        %v2771 = vmul.f32 %v2537, 1.442695
        %v2772 = vpow.pop %v2771
        %v2773 = vmul.f32 %v2538, 1.442695
        %v2774 = vpow.pop %v2773
        %v2775 = vmul.f32 %v2539, 1.442695
        %v2776 = vpow.pop %v2775
        %v2777 = vmul.f32 %v2540, 1.442695
        %v2778 = vpow.pop %v2777
        %v2779 = vmul.f32 %v2541, 1.442695
        %v2780 = vpow.pop %v2779
        %v2781 = vmul.f32 %v2542, 1.442695
        %v2782 = vpow.pop %v2781
        %v2783 = vmul.f32 %v2543, 1.442695
        %v2784 = vpow.pop %v2783
        %v2785 = vmul.f32 %v2544, 1.442695
        %v2786 = vpow.pop %v2785
        %v2787 = vmul.f32 %v2545, 1.442695
        %v2788 = vpow.pop %v2787
        %v2789 = vmul.f32 %v2546, 1.442695
        %v2790 = vpow.pop %v2789
        %v2791 = vmul.f32 %v2547, 1.442695
        %v2792 = vpow.pop %v2791
        %v2793 = vmul.f32 %v2548, 1.442695
        %v2794 = vpow.pop %v2793
        %v2795 = vmul.f32 %v2549, 1.442695
        %v2796 = vpow.pop %v2795
        %v2797 = vmul.f32 %v2550, 1.442695
        %v2798 = vpow.pop %v2797
        %v2799 = vmul.f32 %v2551, 1.442695
        %v2800 = vpow.pop %v2799
        %v2801 = vmul.f32 %v2552, 1.442695
        %v2802 = vpow.pop %v2801
        %v2803 = vmul.f32 %v2553, 1.442695
        %v2804 = vpow.pop %v2803
        %v2805 = vmul.f32 %v2554, 1.442695
        %v2806 = vpow.pop %v2805
        %v2807 = vmul.f32 %v2555, 1.442695
        %v2808 = vpow.pop %v2807
        %v2809 = vmul.f32 %v2556, 1.442695
        %v2810 = vpow.pop %v2809
        %v2811 = vmul.f32 %v2557, 1.442695
        %v2812 = vpow.pop %v2811
        %v2813 = vmul.f32 %v2558, 1.442695
        %v2814 = vpow.pop %v2813
        %v2815 = vmul.f32 %v2559, 1.442695
        %v2816 = vpow.pop %v2815
        %v2817 = vmul.f32 %v2560, 1.442695
        %v2818 = vpow.pop %v2817
        %v2819 = vmul.f32 %v2561, 1.442695
        %v2820 = vpow.pop %v2819
        %v2821 = vmul.f32 %v2562, 1.442695
        %v2822 = vpow.pop %v2821
        %v2823 = vmul.f32 %v2563, 1.442695
        %v2824 = vpow.pop %v2823
        %v2825 = vmul.f32 %v2564, 1.442695
        %v2826 = vpow.pop %v2825
        %v2827 = vmul.f32 %v2565, 1.442695
        %v2828 = vpow.pop %v2827
        %v2829 = vmul.f32 %v2566, 1.442695
        %v2830 = vpow.pop %v2829
        %v2831 = vmul.f32 %v2567, 1.442695
        %v2832 = vpow.pop %v2831
        %v2833 = vmul.f32 %v2568, 1.442695
        %v2834 = vpow.pop %v2833
        %v2835 = vmul.f32 %v2569, 1.442695
        %v2836 = vpow.pop %v2835
        %v2837 = vmul.f32 %v2570, 1.442695
        %v2838 = vpow.pop %v2837
        %v2839 = vmul.f32 %v2571, 1.442695
        %v2840 = vpow.pop %v2839
        %v2841 = vmul.f32 %v2572, 1.442695
        %v2842 = vpow.pop %v2841
        %v2843 = vmul.f32 %v2573, 1.442695
        %v2844 = vpow.pop %v2843
        %v2845 = vmul.f32 %v2574, 1.442695
        %v2846 = vpow.pop %v2845
        %v2847 = vmul.f32 %v2575, 1.442695
        %v2848 = vpow.pop %v2847
        %v2849 = vmul.f32 %v2576, 1.442695
        %v2850 = vpow.pop %v2849
        %v2851 = vmul.f32 %v2577, 1.442695
        %v2852 = vpow.pop %v2851
        %v2853 = vmul.f32 %v2578, 1.442695
        %v2854 = vpow.pop %v2853
        %v2855 = vmul.f32 %v2579, 1.442695
        %v2856 = vpow.pop %v2855
        %v2857 = vmul.f32 %v2580, 1.442695
        %v2858 = vpow.pop %v2857
        %v2859 = vmul.f32 %v2581, 1.442695
        %v2860 = vpow.pop %v2859
        %v2861 = vmul.f32 %v2582, 1.442695
        %v2862 = vpow.pop %v2861
        %v2863 = vmul.f32 %v2583, 1.442695
        %v2864 = vpow.pop %v2863
        %v2865 = vmul.f32 %v2584, 1.442695
        %v2866 = vpow.pop %v2865
        %v2867 = vmul.f32 %v2585, 1.442695
        %v2868 = vpow.pop %v2867
        %v2869 = vmul.f32 %v2586, 1.442695
        %v2870 = vpow.pop %v2869
        %v2871 = vmul.f32 %v2587, 1.442695
        %v2872 = vpow.pop %v2871
        %v2873 = vmul.f32 %v2588, 1.442695
        %v2874 = vpow.pop %v2873
        %v2875 = vmul.f32 %v2589, 1.442695
        %v2876 = vpow.pop %v2875
        %v2877 = vmul.f32 %v2590, 1.442695
        %v2878 = vpow.pop %v2877
        %v2879 = vmul.f32 %v2591, 1.442695
        %v2880 = vpow.pop %v2879
        %v2881 = vmul.f32 %v2592, 1.442695
        %v2882 = vpow.pop %v2881
        %v2883 = vmul.f32 %v2593, 1.442695
        %v2884 = vpow.pop %v2883
        %v2885 = vmul.f32 %v2594, 1.442695
        %v2886 = vpow.pop %v2885
        %v2887 = vmul.f32 %v2595, 1.442695
        %v2888 = vpow.pop %v2887
        %v2889 = vmul.f32 %v2596, 1.442695
        %v2890 = vpow.pop %v2889
        %v2891 = vmul.f32 %v2597, 1.442695
        %v2892 = vpow.pop %v2891
        %v2893 = vmul.f32 %v2598, 1.442695
        %v2894 = vpow.pop %v2893
        %v2895 = vmul.f32 %v2599, 1.442695
        %v2896 = vpow.pop %v2895
        %v2897 = vmul.f32 %v2600, 1.442695
        %v2898 = vpow.pop %v2897
        %v2899 = vmul.f32 %v2601, 1.442695
        %v2900 = vpow.pop %v2899
        %v2901 = vmul.f32 %v2602, 1.442695
        %v2902 = vpow.pop %v2901
        %v2903 = vmul.f32 %v2603, 1.442695
        %v2904 = vpow.pop %v2903
        %v2905 = vmul.f32 %v2604, 1.442695
        %v2906 = vpow.pop %v2905
        %v2907 = vmul.f32 %v2605, 1.442695
        %v2908 = vpow.pop %v2907
        %v2909 = vmul.f32 %v2606, 1.442695
        %v2910 = vpow.pop %v2909
        %v2911 = vmul.f32 %v2607, 1.442695
        %v2912 = vpow.pop %v2911
        %v2913 = vmul.f32 %v2608, 1.442695
        %v2914 = vpow.pop %v2913
        %v2915 = vmul.f32 %v2609, 1.442695
        %v2916 = vpow.pop %v2915
        %v2917 = vmul.f32 %v2610, 1.442695
        %v2918 = vpow.pop %v2917
        %v2919 = vmul.f32 %v2611, 1.442695
        %v2920 = vpow.pop %v2919
        %v2921 = vmul.f32 %v2612, 1.442695
        %v2922 = vpow.pop %v2921
        %v2923 = vmul.f32 %v2613, 1.442695
        %v2924 = vpow.pop %v2923
        %v2925 = vmul.f32 %v2614, 1.442695
        %v2926 = vpow.pop %v2925
        %v2927 = vmul.f32 %v2615, 1.442695
        %v2928 = vpow.pop %v2927
        %v2929 = vmul.f32 %v2616, 1.442695
        %v2930 = vpow.pop %v2929
        %v2931 = vmul.f32 %v2617, 1.442695
        %v2932 = vpow.pop %v2931
        %v2933 = vmul.f32 %v2618, 1.442695
        %v2934 = vpow.pop %v2933
        %v2935 = vmul.f32 %v2619, 1.442695
        %v2936 = vpow.pop %v2935
        %v2937 = vmul.f32 %v2620, 1.442695
        %v2938 = vpow.pop %v2937
        %v2939 = vmul.f32 %v2621, 1.442695
        %v2940 = vpow.pop %v2939
        %v2941 = vmul.f32 %v2622, 1.442695
        %v2942 = vpow.pop %v2941
        %v2943 = vmul.f32 %v2623, 1.442695
        %v2944 = vpow.pop %v2943
        %v2945 = vmul.f32 %v2624, 1.442695
        %v2946 = vpow.pop %v2945
        %v2947 = vmul.f32 %v2625, 1.442695
        %v2948 = vpow.pop %v2947
        %v2949 = vmul.f32 %v2626, 1.442695
        %v2950 = vpow.pop %v2949
        %v2951 = vmul.f32 %v2627, 1.442695
        %v2952 = vpow.pop %v2951
        %v2953 = vmul.f32 %v2628, 1.442695
        %v2954 = vpow.pop %v2953
        %v2955 = vmul.f32 %v2629, 1.442695
        %v2956 = vpow.pop %v2955
        %v2957 = vmul.f32 %v2630, 1.442695
        %v2958 = vpow.pop %v2957
        %v2959 = vmul.f32 %v2631, 1.442695
        %v2960 = vpow.pop %v2959
        %v2961 = vmul.f32 %v2632, 1.442695
        %v2962 = vpow.pop %v2961
        %v2963 = vmul.f32 %v2633, 1.442695
        %v2964 = vpow.pop %v2963
        %v2965 = vmul.f32 %v2634, 1.442695
        %v2966 = vpow.pop %v2965
        %v2967 = vmul.f32 %v2635, 1.442695
        %v2968 = vpow.pop %v2967
        %v2969 = vmul.f32 %v2636, 1.442695
        %v2970 = vpow.pop %v2969
        %v2971 = vmul.f32 %v2637, 1.442695
        %v2972 = vpow.pop %v2971
        %v2973 = vmul.f32 %v2638, 1.442695
        %v2974 = vpow.pop %v2973
        %v2975 = vmul.f32 %v2639, 1.442695
        %v2976 = vpow.pop %v2975
        %v2977 = vmul.f32 %v2640, 1.442695
        %v2978 = vpow.pop %v2977
        %v2979 = vmul.f32 %v2641, 1.442695
        %v2980 = vpow.pop %v2979
        %v2981 = vmul.f32 %v2642, 1.442695
        %v2982 = vpow.pop %v2981
        %v2983 = vmul.f32 %v2643, 1.442695
        %v2984 = vpow.pop %v2983
        %v2985 = vmul.f32 %v2644, 1.442695
        %v2986 = vpow.pop %v2985
        %v2987 = vmul.f32 %v2645, 1.442695
        %v2988 = vpow.pop %v2987
        %v2989 = vmul.f32 %v2646, 1.442695
        %v2990 = vpow.pop %v2989
        %v2991 = vmul.f32 %v2647, 1.442695
        %v2992 = vpow.pop %v2991
        %v2993 = vmul.f32 %v2648, 1.442695
        %v2994 = vpow.pop %v2993
        %v2995 = vmul.f32 %v2649, 1.442695
        %v2996 = vpow.pop %v2995
        %v2997 = vmul.f32 %v2650, 1.442695
        %v2998 = vpow.pop %v2997
        %v2999 = vmul.f32 %v2651, 1.442695
        %v3000 = vpow.pop %v2999
        %v3001 = vmul.f32 %v2652, 1.442695
        %v3002 = vpow.pop %v3001
        %v3003 = vmul.f32 %v2653, 1.442695
        %v3004 = vpow.pop %v3003
        %v3005 = vmul.f32 %v2654, 1.442695
        %v3006 = vpow.pop %v3005
        %v3007 = vmul.f32 %v2655, 1.442695
        %v3008 = vpow.pop %v3007
        %v3009 = vmul.f32 %v2656, 1.442695
        %v3010 = vpow.pop %v3009
        %v3011 = vmul.f32 %v2657, 1.442695
        %v3012 = vpow.pop %v3011
        %v3013 = vmul.f32 %v2658, 1.442695
        %v3014 = vpow.pop %v3013
        %v3015 = vmul.f32 %v2659, 1.442695
        %v3016 = vpow.pop %v3015
        %v3017 = vmul.f32 %v2660, 1.442695
        %v3018 = vpow.pop %v3017
        %v3019 = vmul.f32 %v2661, 1.442695
        %v3020 = vpow.pop %v3019
        %v3021 = vmul.f32 %v2662, 1.442695
        %v3022 = vpow.pop %v3021
        %v3023 = vmul.f32 %v2663, 1.442695
        %v3024 = vpow.pop %v3023
        %v3025 = vmul.f32 %v2664, 1.442695
        %v3026 = vpow.pop %v3025
        %v3027 = vmul.f32 %v2665, 1.442695
        %v3028 = vpow.pop %v3027
        %v3029 = vmul.f32 %v2666, 1.442695
        %v3030 = vpow.pop %v3029
        %v3031 = vmul.f32 %v2667, 1.442695
        %v3032 = vpow.pop %v3031
        %v3033 = vmul.f32 %v2668, 1.442695
        %v3034 = vpow.pop %v3033
        %v3035 = vmul.f32 %v2669, 1.442695
        %v3036 = vpow.pop %v3035
        %v3037 = vmul.f32 %v2670, 1.442695
        %v3038 = vpow.pop %v3037
        %v3039 = vmul.f32 %v2671, 1.442695
        %v3040 = vpow.pop %v3039
        %v3041 = vmul.f32 %v2672, 1.442695
        %v3042 = vpow.pop %v3041
        %v3043 = vmul.f32 %v2673, 1.442695
        %v3044 = vpow.pop %v3043
        %v3045 = vmul.f32 %v2674, 1.442695
        %v3046 = vpow.pop %v3045
        %v3047 = vmul.f32 %v2675, 1.442695
        %v3048 = vpow.pop %v3047
        %v3049 = vmul.f32 %v2676, 1.442695
        %v3050 = vpow.pop %v3049
        %v3051 = vmul.f32 %v2677, 1.442695
        %v3052 = vpow.pop %v3051
        %v3053 = vmul.f32 %v2678, 1.442695
        %v3054 = vpow.pop %v3053
        %v3055 = vmul.f32 %v2679, 1.442695
        %v3056 = vpow.pop %v3055
        %v3057 = vmul.f32 %v2680, 1.442695
        %v3058 = vpow.pop %v3057
        %v3059 = vmul.f32 %v2681, 1.442695
        %v3060 = vpow.pop %v3059
        %v3061 = vmul.f32 %v2682, 1.442695
        %v3062 = vpow.pop %v3061
        %v3063 = vmul.f32 %v2683, 1.442695
        %v3064 = vpow.pop %v3063
        %v3065 = vmul.f32 %v2684, 1.442695
        %v3066 = vpow.pop %v3065
        %v3067 = vmul.f32 %v2685, 1.442695
        %v3068 = vpow.pop %v3067
        %v3069 = vmul.f32 %v2686, 1.442695
        %v3070 = vpow.pop %v3069
        %v3071 = vmul.f32 %v2687, 1.442695
        %v3072 = vpow.pop %v3071
        %v3073 = vmul.f32 %v2688, 1.442695
        %v3074 = vpow.pop %v3073
        %v3075 = vmul.f32 %v2689, 1.442695
        %v3076 = vpow.pop %v3075
        %v3077 = vmul.f32 %v2690, 1.442695
        %v3078 = vpow.pop %v3077
        %v3079 = vmul.f32 %v2691, 1.442695
        %v3080 = vpow.pop %v3079
        %v3081 = vmul.f32 %v2692, 1.442695
        %v3082 = vpow.pop %v3081
        %v3083 = vmul.f32 %v2693, 1.442695
        %v3084 = vpow.pop %v3083
        %v3085 = vmul.f32 %v2694, 1.442695
        %v3086 = vpow.pop %v3085
        %v3087 = vmul.f32 %v2695, 1.442695
        %v3088 = vpow.pop %v3087
        %v3089 = vmul.f32 %v2696, 1.442695
        %v3090 = vpow.pop %v3089
        %v3091 = vmul.f32 %v2697, 1.442695
        %v3092 = vpow.pop %v3091
        %v3093 = vmul.f32 %v2698, 1.442695
        %v3094 = vpow.pop %v3093
        %v3095 = vmul.f32 %v2699, 1.442695
        %v3096 = vpow.pop %v3095
        %v3097 = vmul.f32 %v2700, 1.442695
        %v3098 = vpow.pop %v3097
        %v3099 = vmul.f32 %v2701, 1.442695
        %v3100 = vpow.pop %v3099
        %v3101 = vmul.f32 %v2702, 1.442695
        %v3102 = vpow.pop %v3101
        %v3103 = vmul.f32 %v2703, 1.442695
        %v3104 = vpow.pop %v3103
        %v3105 = vmul.f32 %v2704, 1.442695
        %v3106 = vpow.pop %v3105
        %v3107 = vmul.f32 %v2705, 1.442695
        %v3108 = vpow.pop %v3107
        %v3109 = vmul.f32 %v2706, 1.442695
        %v3110 = vpow.pop %v3109
        %v3111 = vmul.f32 %v2707, 1.442695
        %v3112 = vpow.pop %v3111
        %v3113 = vmul.f32 %v2708, 1.442695
        %v3114 = vpow.pop %v3113
        %v3115 = vmul.f32 %v2709, 1.442695
        %v3116 = vpow.pop %v3115
        %v3117 = vmul.f32 %v2710, 1.442695
        %v3118 = vpow.pop %v3117
        %v3119 = vmul.f32 %v2711, 1.442695
        %v3120 = vpow.pop %v3119
        %v3121 = vmul.f32 %v2712, 1.442695
        %v3122 = vpow.pop %v3121
        %v3123 = vmul.f32 %v2713, 1.442695
        %v3124 = vpow.pop %v3123
        %v3125 = vmul.f32 %v2714, 1.442695
        %v3126 = vpow.pop %v3125
        %v3127 = vmul.f32 %v2715, 1.442695
        %v3128 = vpow.pop %v3127
        %v3129 = vmul.f32 %v2716, 1.442695
        %v3130 = vpow.pop %v3129
        %v3131 = vmul.f32 %v2717, 1.442695
        %v3132 = vpow.pop %v3131
        %v3133 = vmul.f32 %v2718, 1.442695
        %v3134 = vpow.pop %v3133
        %v3135 = vadd.f32 %v2720, %v2722
        %v3136 = vadd.f32 %v3135, %v2724
        %v3137 = vsel %vm1236, %v2726, 0.0
        %v3138 = vadd.f32 %v3136, %v3137
        %3139 = vadd.xlane.f32.xlu0 %v3138
        %v3140 = vpop.xlane.xlu0 %3139
        %v3141 = vadd.f32 %v2728, %v2730
        %v3142 = vadd.f32 %v3141, %v2732
        %v3143 = vsel %vm1236, %v2734, 0.0
        %v3144 = vadd.f32 %v3142, %v3143
        %3145 = vadd.xlane.f32.xlu0 %v3144
        %v3146 = vpop.xlane.xlu0 %3145
        %v3147 = vadd.f32 %v2736, %v2738
        %v3148 = vadd.f32 %v3147, %v2740
        %v3149 = vsel %vm1236, %v2742, 0.0
        %v3150 = vadd.f32 %v3148, %v3149
        %3151 = vadd.xlane.f32.xlu0 %v3150
        %v3152 = vpop.xlane.xlu0 %3151
        %v3153 = vadd.f32 %v2744, %v2746
        %v3154 = vadd.f32 %v3153, %v2748
        %v3155 = vsel %vm1236, %v2750, 0.0
        %v3156 = vadd.f32 %v3154, %v3155
        %3157 = vadd.xlane.f32.xlu0 %v3156
        %v3158 = vpop.xlane.xlu0 %3157
        %v3159 = vadd.f32 %v2752, %v2754
        %v3160 = vadd.f32 %v3159, %v2756
        %v3161 = vsel %vm1236, %v2758, 0.0
        %v3162 = vadd.f32 %v3160, %v3161
        %3163 = vadd.xlane.f32.xlu0 %v3162
        %v3164 = vpop.xlane.xlu0 %3163
        %v3165 = vadd.f32 %v2760, %v2762
        %v3166 = vadd.f32 %v3165, %v2764
        %v3167 = vsel %vm1236, %v2766, 0.0
        %v3168 = vadd.f32 %v3166, %v3167
        %3169 = vadd.xlane.f32.xlu0 %v3168
        %v3170 = vpop.xlane.xlu0 %3169
        %v3171 = vadd.f32 %v2768, %v2770
        %v3172 = vadd.f32 %v3171, %v2772
        %v3173 = vsel %vm1236, %v2774, 0.0
        %v3174 = vadd.f32 %v3172, %v3173
        %3175 = vadd.xlane.f32.xlu0 %v3174
        %v3176 = vpop.xlane.xlu0 %3175
        %v3177 = vadd.f32 %v2776, %v2778
        %v3178 = vadd.f32 %v3177, %v2780
        %v3179 = vsel %vm1236, %v2782, 0.0
        %v3180 = vadd.f32 %v3178, %v3179
        %3181 = vadd.xlane.f32.xlu0 %v3180
        %v3182 = vpop.xlane.xlu0 %3181
        %v3183 = vadd.f32 %v2784, %v2786
        %v3184 = vadd.f32 %v3183, %v2788
        %v3185 = vsel %vm1236, %v2790, 0.0
        %v3186 = vadd.f32 %v3184, %v3185
        %3187 = vadd.xlane.f32.xlu0 %v3186
        %v3188 = vpop.xlane.xlu0 %3187
        %v3189 = vadd.f32 %v2792, %v2794
        %v3190 = vadd.f32 %v3189, %v2796
        %v3191 = vsel %vm1236, %v2798, 0.0
        %v3192 = vadd.f32 %v3190, %v3191
        %3193 = vadd.xlane.f32.xlu0 %v3192
        %v3194 = vpop.xlane.xlu0 %3193
        %v3195 = vadd.f32 %v2800, %v2802
        %v3196 = vadd.f32 %v3195, %v2804
        %v3197 = vsel %vm1236, %v2806, 0.0
        %v3198 = vadd.f32 %v3196, %v3197
        %3199 = vadd.xlane.f32.xlu0 %v3198
        %v3200 = vpop.xlane.xlu0 %3199
        %v3201 = vadd.f32 %v2808, %v2810
        %v3202 = vadd.f32 %v3201, %v2812
        %v3203 = vsel %vm1236, %v2814, 0.0
        %v3204 = vadd.f32 %v3202, %v3203
        %3205 = vadd.xlane.f32.xlu0 %v3204
        %v3206 = vpop.xlane.xlu0 %3205
        %v3207 = vadd.f32 %v2816, %v2818
        %v3208 = vadd.f32 %v3207, %v2820
        %v3209 = vsel %vm1236, %v2822, 0.0
        %v3210 = vadd.f32 %v3208, %v3209
        %3211 = vadd.xlane.f32.xlu0 %v3210
        %v3212 = vpop.xlane.xlu0 %3211
        %v3213 = vadd.f32 %v2824, %v2826
        %v3214 = vadd.f32 %v3213, %v2828
        %v3215 = vsel %vm1236, %v2830, 0.0
        %v3216 = vadd.f32 %v3214, %v3215
        %3217 = vadd.xlane.f32.xlu0 %v3216
        %v3218 = vpop.xlane.xlu0 %3217
        %v3219 = vadd.f32 %v2832, %v2834
        %v3220 = vadd.f32 %v3219, %v2836
        %v3221 = vsel %vm1236, %v2838, 0.0
        %v3222 = vadd.f32 %v3220, %v3221
        %3223 = vadd.xlane.f32.xlu0 %v3222
        %v3224 = vpop.xlane.xlu0 %3223
        %v3225 = vadd.f32 %v2840, %v2842
        %v3226 = vadd.f32 %v3225, %v2844
        %v3227 = vsel %vm1236, %v2846, 0.0
        %v3228 = vadd.f32 %v3226, %v3227
        %3229 = vadd.xlane.f32.xlu0 %v3228
        %v3230 = vpop.xlane.xlu0 %3229
        %v3231 = vadd.f32 %v2848, %v2850
        %v3232 = vadd.f32 %v3231, %v2852
        %v3233 = vsel %vm1236, %v2854, 0.0
        %v3234 = vadd.f32 %v3232, %v3233
        %3235 = vadd.xlane.f32.xlu0 %v3234
        %v3236 = vpop.xlane.xlu0 %3235
        %v3237 = vadd.f32 %v2856, %v2858
        %v3238 = vadd.f32 %v3237, %v2860
        %v3239 = vsel %vm1236, %v2862, 0.0
        %v3240 = vadd.f32 %v3238, %v3239
        %3241 = vadd.xlane.f32.xlu0 %v3240
        %v3242 = vpop.xlane.xlu0 %3241
        %v3243 = vadd.f32 %v2864, %v2866
        %v3244 = vadd.f32 %v3243, %v2868
        %v3245 = vsel %vm1236, %v2870, 0.0
        %v3246 = vadd.f32 %v3244, %v3245
        %3247 = vadd.xlane.f32.xlu0 %v3246
        %v3248 = vpop.xlane.xlu0 %3247
        %v3249 = vadd.f32 %v2872, %v2874
        %v3250 = vadd.f32 %v3249, %v2876
        %v3251 = vsel %vm1236, %v2878, 0.0
        %v3252 = vadd.f32 %v3250, %v3251
        %3253 = vadd.xlane.f32.xlu0 %v3252
        %v3254 = vpop.xlane.xlu0 %3253
        %v3255 = vadd.f32 %v2880, %v2882
        %v3256 = vadd.f32 %v3255, %v2884
        %v3257 = vsel %vm1236, %v2886, 0.0
        %v3258 = vadd.f32 %v3256, %v3257
        %3259 = vadd.xlane.f32.xlu0 %v3258
        %v3260 = vpop.xlane.xlu0 %3259
        %v3261 = vadd.f32 %v2888, %v2890
        %v3262 = vadd.f32 %v3261, %v2892
        %v3263 = vsel %vm1236, %v2894, 0.0
        %v3264 = vadd.f32 %v3262, %v3263
        %3265 = vadd.xlane.f32.xlu0 %v3264
        %v3266 = vpop.xlane.xlu0 %3265
        %v3267 = vadd.f32 %v2896, %v2898
        %v3268 = vadd.f32 %v3267, %v2900
        %v3269 = vsel %vm1236, %v2902, 0.0
        %v3270 = vadd.f32 %v3268, %v3269
        %3271 = vadd.xlane.f32.xlu0 %v3270
        %v3272 = vpop.xlane.xlu0 %3271
        %v3273 = vadd.f32 %v2904, %v2906
        %v3274 = vadd.f32 %v3273, %v2908
        %v3275 = vsel %vm1236, %v2910, 0.0
        %v3276 = vadd.f32 %v3274, %v3275
        %3277 = vadd.xlane.f32.xlu0 %v3276
        %v3278 = vpop.xlane.xlu0 %3277
        %v3279 = vadd.f32 %v2912, %v2914
        %v3280 = vadd.f32 %v3279, %v2916
        %v3281 = vsel %vm1236, %v2918, 0.0
        %v3282 = vadd.f32 %v3280, %v3281
        %3283 = vadd.xlane.f32.xlu0 %v3282
        %v3284 = vpop.xlane.xlu0 %3283
        %v3285 = vadd.f32 %v2920, %v2922
        %v3286 = vadd.f32 %v3285, %v2924
        %v3287 = vsel %vm1236, %v2926, 0.0
        %v3288 = vadd.f32 %v3286, %v3287
        %3289 = vadd.xlane.f32.xlu0 %v3288
        %v3290 = vpop.xlane.xlu0 %3289
        %v3291 = vadd.f32 %v2928, %v2930
        %v3292 = vadd.f32 %v3291, %v2932
        %v3293 = vsel %vm1236, %v2934, 0.0
        %v3294 = vadd.f32 %v3292, %v3293
        %3295 = vadd.xlane.f32.xlu0 %v3294
        %v3296 = vpop.xlane.xlu0 %3295
        %v3297 = vadd.f32 %v2936, %v2938
        %v3298 = vadd.f32 %v3297, %v2940
        %v3299 = vsel %vm1236, %v2942, 0.0
        %v3300 = vadd.f32 %v3298, %v3299
        %3301 = vadd.xlane.f32.xlu0 %v3300
        %v3302 = vpop.xlane.xlu0 %3301
        %v3303 = vadd.f32 %v2944, %v2946
        %v3304 = vadd.f32 %v3303, %v2948
        %v3305 = vsel %vm1236, %v2950, 0.0
        %v3306 = vadd.f32 %v3304, %v3305
        %3307 = vadd.xlane.f32.xlu0 %v3306
        %v3308 = vpop.xlane.xlu0 %3307
        %v3309 = vadd.f32 %v2952, %v2954
        %v3310 = vadd.f32 %v3309, %v2956
        %v3311 = vsel %vm1236, %v2958, 0.0
        %v3312 = vadd.f32 %v3310, %v3311
        %3313 = vadd.xlane.f32.xlu0 %v3312
        %v3314 = vpop.xlane.xlu0 %3313
        %v3315 = vadd.f32 %v2960, %v2962
        %v3316 = vadd.f32 %v3315, %v2964
        %v3317 = vsel %vm1236, %v2966, 0.0
        %v3318 = vadd.f32 %v3316, %v3317
        %3319 = vadd.xlane.f32.xlu0 %v3318
        %v3320 = vpop.xlane.xlu0 %3319
        %v3321 = vadd.f32 %v2968, %v2970
        %v3322 = vadd.f32 %v3321, %v2972
        %v3323 = vsel %vm1236, %v2974, 0.0
        %v3324 = vadd.f32 %v3322, %v3323
        %3325 = vadd.xlane.f32.xlu0 %v3324
        %v3326 = vpop.xlane.xlu0 %3325
        %v3327 = vadd.f32 %v2976, %v2978
        %v3328 = vadd.f32 %v3327, %v2980
        %v3329 = vsel %vm1236, %v2982, 0.0
        %v3330 = vadd.f32 %v3328, %v3329
        %3331 = vadd.xlane.f32.xlu0 %v3330
        %v3332 = vpop.xlane.xlu0 %3331
        %v3333 = vadd.f32 %v2984, %v2986
        %v3334 = vadd.f32 %v3333, %v2988
        %v3335 = vsel %vm1236, %v2990, 0.0
        %v3336 = vadd.f32 %v3334, %v3335
        %3337 = vadd.xlane.f32.xlu0 %v3336
        %v3338 = vpop.xlane.xlu0 %3337
        %v3339 = vadd.f32 %v2992, %v2994
        %v3340 = vadd.f32 %v3339, %v2996
        %v3341 = vsel %vm1236, %v2998, 0.0
        %v3342 = vadd.f32 %v3340, %v3341
        %3343 = vadd.xlane.f32.xlu0 %v3342
        %v3344 = vpop.xlane.xlu0 %3343
        %v3345 = vadd.f32 %v3000, %v3002
        %v3346 = vadd.f32 %v3345, %v3004
        %v3347 = vsel %vm1236, %v3006, 0.0
        %v3348 = vadd.f32 %v3346, %v3347
        %3349 = vadd.xlane.f32.xlu0 %v3348
        %v3350 = vpop.xlane.xlu0 %3349
        %v3351 = vadd.f32 %v3008, %v3010
        %v3352 = vadd.f32 %v3351, %v3012
        %v3353 = vsel %vm1236, %v3014, 0.0
        %v3354 = vadd.f32 %v3352, %v3353
        %3355 = vadd.xlane.f32.xlu0 %v3354
        %v3356 = vpop.xlane.xlu0 %3355
        %v3357 = vadd.f32 %v3016, %v3018
        %v3358 = vadd.f32 %v3357, %v3020
        %v3359 = vsel %vm1236, %v3022, 0.0
        %v3360 = vadd.f32 %v3358, %v3359
        %3361 = vadd.xlane.f32.xlu0 %v3360
        %v3362 = vpop.xlane.xlu0 %3361
        %v3363 = vadd.f32 %v3024, %v3026
        %v3364 = vadd.f32 %v3363, %v3028
        %v3365 = vsel %vm1236, %v3030, 0.0
        %v3366 = vadd.f32 %v3364, %v3365
        %3367 = vadd.xlane.f32.xlu0 %v3366
        %v3368 = vpop.xlane.xlu0 %3367
        %v3369 = vadd.f32 %v3032, %v3034
        %v3370 = vadd.f32 %v3369, %v3036
        %v3371 = vsel %vm1236, %v3038, 0.0
        %v3372 = vadd.f32 %v3370, %v3371
        %3373 = vadd.xlane.f32.xlu0 %v3372
        %v3374 = vpop.xlane.xlu0 %3373
        %v3375 = vadd.f32 %v3040, %v3042
        %v3376 = vadd.f32 %v3375, %v3044
        %v3377 = vsel %vm1236, %v3046, 0.0
        %v3378 = vadd.f32 %v3376, %v3377
        %3379 = vadd.xlane.f32.xlu0 %v3378
        %v3380 = vpop.xlane.xlu0 %3379
        %v3381 = vadd.f32 %v3048, %v3050
        %v3382 = vadd.f32 %v3381, %v3052
        %v3383 = vsel %vm1236, %v3054, 0.0
        %v3384 = vadd.f32 %v3382, %v3383
        %3385 = vadd.xlane.f32.xlu0 %v3384
        %v3386 = vpop.xlane.xlu0 %3385
        %v3387 = vadd.f32 %v3056, %v3058
        %v3388 = vadd.f32 %v3387, %v3060
        %v3389 = vsel %vm1236, %v3062, 0.0
        %v3390 = vadd.f32 %v3388, %v3389
        %3391 = vadd.xlane.f32.xlu0 %v3390
        %v3392 = vpop.xlane.xlu0 %3391
        %v3393 = vadd.f32 %v3064, %v3066
        %v3394 = vadd.f32 %v3393, %v3068
        %v3395 = vsel %vm1236, %v3070, 0.0
        %v3396 = vadd.f32 %v3394, %v3395
        %3397 = vadd.xlane.f32.xlu0 %v3396
        %v3398 = vpop.xlane.xlu0 %3397
        %v3399 = vadd.f32 %v3072, %v3074
        %v3400 = vadd.f32 %v3399, %v3076
        %v3401 = vsel %vm1236, %v3078, 0.0
        %v3402 = vadd.f32 %v3400, %v3401
        %3403 = vadd.xlane.f32.xlu0 %v3402
        %v3404 = vpop.xlane.xlu0 %3403
        %v3405 = vadd.f32 %v3080, %v3082
        %v3406 = vadd.f32 %v3405, %v3084
        %v3407 = vsel %vm1236, %v3086, 0.0
        %v3408 = vadd.f32 %v3406, %v3407
        %3409 = vadd.xlane.f32.xlu0 %v3408
        %v3410 = vpop.xlane.xlu0 %3409
        %v3411 = vadd.f32 %v3088, %v3090
        %v3412 = vadd.f32 %v3411, %v3092
        %v3413 = vsel %vm1236, %v3094, 0.0
        %v3414 = vadd.f32 %v3412, %v3413
        %3415 = vadd.xlane.f32.xlu0 %v3414
        %v3416 = vpop.xlane.xlu0 %3415
        %v3417 = vadd.f32 %v3096, %v3098
        %v3418 = vadd.f32 %v3417, %v3100
        %v3419 = vsel %vm1236, %v3102, 0.0
        %v3420 = vadd.f32 %v3418, %v3419
        %3421 = vadd.xlane.f32.xlu0 %v3420
        %v3422 = vpop.xlane.xlu0 %3421
        %v3423 = vadd.f32 %v3104, %v3106
        %v3424 = vadd.f32 %v3423, %v3108
        %v3425 = vsel %vm1236, %v3110, 0.0
        %v3426 = vadd.f32 %v3424, %v3425
        %3427 = vadd.xlane.f32.xlu0 %v3426
        %v3428 = vpop.xlane.xlu0 %3427
        %v3429 = vadd.f32 %v3112, %v3114
        %v3430 = vadd.f32 %v3429, %v3116
        %v3431 = vsel %vm1236, %v3118, 0.0
        %v3432 = vadd.f32 %v3430, %v3431
        %3433 = vadd.xlane.f32.xlu0 %v3432
        %v3434 = vpop.xlane.xlu0 %3433
        %v3435 = vadd.f32 %v3120, %v3122
        %v3436 = vadd.f32 %v3435, %v3124
        %v3437 = vsel %vm1236, %v3126, 0.0
        %v3438 = vadd.f32 %v3436, %v3437
        %3439 = vadd.xlane.f32.xlu0 %v3438
        %v3440 = vpop.xlane.xlu0 %3439
        %v3441 = vadd.f32 %v3128, %v3130
        %v3442 = vadd.f32 %v3441, %v3132
        %v3443 = vsel %vm1236, %v3134, 0.0
        %v3444 = vadd.f32 %v3442, %v3443
        %3445 = vadd.xlane.f32.xlu0 %v3444
        %v3446 = vpop.xlane.xlu0 %3445
        %v3447 = vrcp.pop %v3140
        %v3448 = vrcp.pop %v3146
        %v3449 = vrcp.pop %v3152
        %v3450 = vrcp.pop %v3158
        %v3451 = vrcp.pop %v3164
        %v3452 = vrcp.pop %v3170
        %v3453 = vrcp.pop %v3176
        %v3454 = vrcp.pop %v3182
        %v3455 = vrcp.pop %v3188
        %v3456 = vrcp.pop %v3194
        %v3457 = vrcp.pop %v3200
        %v3458 = vrcp.pop %v3206
        %v3459 = vrcp.pop %v3212
        %v3460 = vrcp.pop %v3218
        %v3461 = vrcp.pop %v3224
        %v3462 = vrcp.pop %v3230
        %v3463 = vrcp.pop %v3236
        %v3464 = vrcp.pop %v3242
        %v3465 = vrcp.pop %v3248
        %v3466 = vrcp.pop %v3254
        %v3467 = vrcp.pop %v3260
        %v3468 = vrcp.pop %v3266
        %v3469 = vrcp.pop %v3272
        %v3470 = vrcp.pop %v3278
        %v3471 = vrcp.pop %v3284
        %v3472 = vrcp.pop %v3290
        %v3473 = vrcp.pop %v3296
        %v3474 = vrcp.pop %v3302
        %v3475 = vrcp.pop %v3308
        %v3476 = vrcp.pop %v3314
        %v3477 = vrcp.pop %v3320
        %v3478 = vrcp.pop %v3326
        %v3479 = vrcp.pop %v3332
        %v3480 = vrcp.pop %v3338
        %v3481 = vrcp.pop %v3344
        %v3482 = vrcp.pop %v3350
        %v3483 = vrcp.pop %v3356
        %v3484 = vrcp.pop %v3362
        %v3485 = vrcp.pop %v3368
        %v3486 = vrcp.pop %v3374
        %v3487 = vrcp.pop %v3380
        %v3488 = vrcp.pop %v3386
        %v3489 = vrcp.pop %v3392
        %v3490 = vrcp.pop %v3398
        %v3491 = vrcp.pop %v3404
        %v3492 = vrcp.pop %v3410
        %v3493 = vrcp.pop %v3416
        %v3494 = vrcp.pop %v3422
        %v3495 = vrcp.pop %v3428
        %v3496 = vrcp.pop %v3434
        %v3497 = vrcp.pop %v3440
        %v3498 = vrcp.pop %v3446
        %v3499 = vmul.f32 %v2720, %v3447
        %v3500 = vmul.f32 %v2722, %v3447
        %v3501 = vmul.f32 %v2724, %v3447
        %v3502 = vmul.f32 %v2726, %v3447
        %v3503 = vmul.f32 %v2728, %v3448
        %v3504 = vmul.f32 %v2730, %v3448
        %v3505 = vmul.f32 %v2732, %v3448
        %v3506 = vmul.f32 %v2734, %v3448
        %v3507 = vmul.f32 %v2736, %v3449
        %v3508 = vmul.f32 %v2738, %v3449
        %v3509 = vmul.f32 %v2740, %v3449
        %v3510 = vmul.f32 %v2742, %v3449
        %v3511 = vmul.f32 %v2744, %v3450
        %v3512 = vmul.f32 %v2746, %v3450
        %v3513 = vmul.f32 %v2748, %v3450
        %v3514 = vmul.f32 %v2750, %v3450
        %v3515 = vmul.f32 %v2752, %v3451
        %v3516 = vmul.f32 %v2754, %v3451
        %v3517 = vmul.f32 %v2756, %v3451
        %v3518 = vmul.f32 %v2758, %v3451
        %v3519 = vmul.f32 %v2760, %v3452
        %v3520 = vmul.f32 %v2762, %v3452
        %v3521 = vmul.f32 %v2764, %v3452
        %v3522 = vmul.f32 %v2766, %v3452
        %v3523 = vmul.f32 %v2768, %v3453
        %v3524 = vmul.f32 %v2770, %v3453
        %v3525 = vmul.f32 %v2772, %v3453
        %v3526 = vmul.f32 %v2774, %v3453
        %v3527 = vmul.f32 %v2776, %v3454
        %v3528 = vmul.f32 %v2778, %v3454
        %v3529 = vmul.f32 %v2780, %v3454
        %v3530 = vmul.f32 %v2782, %v3454
        %v3531 = vmul.f32 %v2784, %v3455
        %v3532 = vmul.f32 %v2786, %v3455
        %v3533 = vmul.f32 %v2788, %v3455
        %v3534 = vmul.f32 %v2790, %v3455
        %v3535 = vmul.f32 %v2792, %v3456
        %v3536 = vmul.f32 %v2794, %v3456
        %v3537 = vmul.f32 %v2796, %v3456
        %v3538 = vmul.f32 %v2798, %v3456
        %v3539 = vmul.f32 %v2800, %v3457
        %v3540 = vmul.f32 %v2802, %v3457
        %v3541 = vmul.f32 %v2804, %v3457
        %v3542 = vmul.f32 %v2806, %v3457
        %v3543 = vmul.f32 %v2808, %v3458
        %v3544 = vmul.f32 %v2810, %v3458
        %v3545 = vmul.f32 %v2812, %v3458
        %v3546 = vmul.f32 %v2814, %v3458
        %v3547 = vmul.f32 %v2816, %v3459
        %v3548 = vmul.f32 %v2818, %v3459
        %v3549 = vmul.f32 %v2820, %v3459
        %v3550 = vmul.f32 %v2822, %v3459
        %v3551 = vmul.f32 %v2824, %v3460
        %v3552 = vmul.f32 %v2826, %v3460
        %v3553 = vmul.f32 %v2828, %v3460
        %v3554 = vmul.f32 %v2830, %v3460
        %v3555 = vmul.f32 %v2832, %v3461
        %v3556 = vmul.f32 %v2834, %v3461
        %v3557 = vmul.f32 %v2836, %v3461
        %v3558 = vmul.f32 %v2838, %v3461
        %v3559 = vmul.f32 %v2840, %v3462
        %v3560 = vmul.f32 %v2842, %v3462
        %v3561 = vmul.f32 %v2844, %v3462
        %v3562 = vmul.f32 %v2846, %v3462
        %v3563 = vmul.f32 %v2848, %v3463
        %v3564 = vmul.f32 %v2850, %v3463
        %v3565 = vmul.f32 %v2852, %v3463
        %v3566 = vmul.f32 %v2854, %v3463
        %v3567 = vmul.f32 %v2856, %v3464
        %v3568 = vmul.f32 %v2858, %v3464
        %v3569 = vmul.f32 %v2860, %v3464
        %v3570 = vmul.f32 %v2862, %v3464
        %v3571 = vmul.f32 %v2864, %v3465
        %v3572 = vmul.f32 %v2866, %v3465
        %v3573 = vmul.f32 %v2868, %v3465
        %v3574 = vmul.f32 %v2870, %v3465
        %v3575 = vmul.f32 %v2872, %v3466
        %v3576 = vmul.f32 %v2874, %v3466
        %v3577 = vmul.f32 %v2876, %v3466
        %v3578 = vmul.f32 %v2878, %v3466
        %v3579 = vmul.f32 %v2880, %v3467
        %v3580 = vmul.f32 %v2882, %v3467
        %v3581 = vmul.f32 %v2884, %v3467
        %v3582 = vmul.f32 %v2886, %v3467
        %v3583 = vmul.f32 %v2888, %v3468
        %v3584 = vmul.f32 %v2890, %v3468
        %v3585 = vmul.f32 %v2892, %v3468
        %v3586 = vmul.f32 %v2894, %v3468
        %v3587 = vmul.f32 %v2896, %v3469
        %v3588 = vmul.f32 %v2898, %v3469
        %v3589 = vmul.f32 %v2900, %v3469
        %v3590 = vmul.f32 %v2902, %v3469
        %v3591 = vmul.f32 %v2904, %v3470
        %v3592 = vmul.f32 %v2906, %v3470
        %v3593 = vmul.f32 %v2908, %v3470
        %v3594 = vmul.f32 %v2910, %v3470
        %v3595 = vmul.f32 %v2912, %v3471
        %v3596 = vmul.f32 %v2914, %v3471
        %v3597 = vmul.f32 %v2916, %v3471
        %v3598 = vmul.f32 %v2918, %v3471
        %v3599 = vmul.f32 %v2920, %v3472
        %v3600 = vmul.f32 %v2922, %v3472
        %v3601 = vmul.f32 %v2924, %v3472
        %v3602 = vmul.f32 %v2926, %v3472
        %v3603 = vmul.f32 %v2928, %v3473
        %v3604 = vmul.f32 %v2930, %v3473
        %v3605 = vmul.f32 %v2932, %v3473
        %v3606 = vmul.f32 %v2934, %v3473
        %v3607 = vmul.f32 %v2936, %v3474
        %v3608 = vmul.f32 %v2938, %v3474
        %v3609 = vmul.f32 %v2940, %v3474
        %v3610 = vmul.f32 %v2942, %v3474
        %v3611 = vmul.f32 %v2944, %v3475
        %v3612 = vmul.f32 %v2946, %v3475
        %v3613 = vmul.f32 %v2948, %v3475
        %v3614 = vmul.f32 %v2950, %v3475
        %v3615 = vmul.f32 %v2952, %v3476
        %v3616 = vmul.f32 %v2954, %v3476
        %v3617 = vmul.f32 %v2956, %v3476
        %v3618 = vmul.f32 %v2958, %v3476
        %v3619 = vmul.f32 %v2960, %v3477
        %v3620 = vmul.f32 %v2962, %v3477
        %v3621 = vmul.f32 %v2964, %v3477
        %v3622 = vmul.f32 %v2966, %v3477
        %v3623 = vmul.f32 %v2968, %v3478
        %v3624 = vmul.f32 %v2970, %v3478
        %v3625 = vmul.f32 %v2972, %v3478
        %v3626 = vmul.f32 %v2974, %v3478
        %v3627 = vmul.f32 %v2976, %v3479
        %v3628 = vmul.f32 %v2978, %v3479
        %v3629 = vmul.f32 %v2980, %v3479
        %v3630 = vmul.f32 %v2982, %v3479
        %v3631 = vmul.f32 %v2984, %v3480
        %v3632 = vmul.f32 %v2986, %v3480
        %v3633 = vmul.f32 %v2988, %v3480
        %v3634 = vmul.f32 %v2990, %v3480
        %v3635 = vmul.f32 %v2992, %v3481
        %v3636 = vmul.f32 %v2994, %v3481
        %v3637 = vmul.f32 %v2996, %v3481
        %v3638 = vmul.f32 %v2998, %v3481
        %v3639 = vmul.f32 %v3000, %v3482
        %v3640 = vmul.f32 %v3002, %v3482
        %v3641 = vmul.f32 %v3004, %v3482
        %v3642 = vmul.f32 %v3006, %v3482
        %v3643 = vmul.f32 %v3008, %v3483
        %v3644 = vmul.f32 %v3010, %v3483
        %v3645 = vmul.f32 %v3012, %v3483
        %v3646 = vmul.f32 %v3014, %v3483
        %v3647 = vmul.f32 %v3016, %v3484
        %v3648 = vmul.f32 %v3018, %v3484
        %v3649 = vmul.f32 %v3020, %v3484
        %v3650 = vmul.f32 %v3022, %v3484
        %v3651 = vmul.f32 %v3024, %v3485
        %v3652 = vmul.f32 %v3026, %v3485
        %v3653 = vmul.f32 %v3028, %v3485
        %v3654 = vmul.f32 %v3030, %v3485
        %v3655 = vmul.f32 %v3032, %v3486
        %v3656 = vmul.f32 %v3034, %v3486
        %v3657 = vmul.f32 %v3036, %v3486
        %v3658 = vmul.f32 %v3038, %v3486
        %v3659 = vmul.f32 %v3040, %v3487
        %v3660 = vmul.f32 %v3042, %v3487
        %v3661 = vmul.f32 %v3044, %v3487
        %v3662 = vmul.f32 %v3046, %v3487
        %v3663 = vmul.f32 %v3048, %v3488
        %v3664 = vmul.f32 %v3050, %v3488
        %v3665 = vmul.f32 %v3052, %v3488
        %v3666 = vmul.f32 %v3054, %v3488
        %v3667 = vmul.f32 %v3056, %v3489
        %v3668 = vmul.f32 %v3058, %v3489
        %v3669 = vmul.f32 %v3060, %v3489
        %v3670 = vmul.f32 %v3062, %v3489
        %v3671 = vmul.f32 %v3064, %v3490
        %v3672 = vmul.f32 %v3066, %v3490
        %v3673 = vmul.f32 %v3068, %v3490
        %v3674 = vmul.f32 %v3070, %v3490
        %v3675 = vmul.f32 %v3072, %v3491
        %v3676 = vmul.f32 %v3074, %v3491
        %v3677 = vmul.f32 %v3076, %v3491
        %v3678 = vmul.f32 %v3078, %v3491
        %v3679 = vmul.f32 %v3080, %v3492
        %v3680 = vmul.f32 %v3082, %v3492
        %v3681 = vmul.f32 %v3084, %v3492
        %v3682 = vmul.f32 %v3086, %v3492
        %v3683 = vmul.f32 %v3088, %v3493
        %v3684 = vmul.f32 %v3090, %v3493
        %v3685 = vmul.f32 %v3092, %v3493
        %v3686 = vmul.f32 %v3094, %v3493
        %v3687 = vmul.f32 %v3096, %v3494
        %v3688 = vmul.f32 %v3098, %v3494
        %v3689 = vmul.f32 %v3100, %v3494
        %v3690 = vmul.f32 %v3102, %v3494
        %v3691 = vmul.f32 %v3104, %v3495
        %v3692 = vmul.f32 %v3106, %v3495
        %v3693 = vmul.f32 %v3108, %v3495
        %v3694 = vmul.f32 %v3110, %v3495
        %v3695 = vmul.f32 %v3112, %v3496
        %v3696 = vmul.f32 %v3114, %v3496
        %v3697 = vmul.f32 %v3116, %v3496
        %v3698 = vmul.f32 %v3118, %v3496
        %v3699 = vmul.f32 %v3120, %v3497
        %v3700 = vmul.f32 %v3122, %v3497
        %v3701 = vmul.f32 %v3124, %v3497
        %v3702 = vmul.f32 %v3126, %v3497
        %v3703 = vmul.f32 %v3128, %v3498
        %v3704 = vmul.f32 %v3130, %v3498
        %v3705 = vmul.f32 %v3132, %v3498
        %v3706 = vmul.f32 %v3134, %v3498
        %v3707 = vpack.c.bf16 %v3503, %v3499
        %v3708 = vpack.c.bf16 %v3504, %v3500
        %v3709 = vpack.c.bf16 %v3505, %v3501
        %v3710 = vpack.c.bf16 %v3506, %v3502
        %v3711 = vpack.c.bf16 %v3511, %v3507
        %v3712 = vpack.c.bf16 %v3512, %v3508
        %v3713 = vpack.c.bf16 %v3513, %v3509
        %v3714 = vpack.c.bf16 %v3514, %v3510
        %v3715 = vpack.c.bf16 %v3519, %v3515
        %v3716 = vpack.c.bf16 %v3520, %v3516
        %v3717 = vpack.c.bf16 %v3521, %v3517
        %v3718 = vpack.c.bf16 %v3522, %v3518
        %v3719 = vpack.c.bf16 %v3527, %v3523
        %v3720 = vpack.c.bf16 %v3528, %v3524
        %v3721 = vpack.c.bf16 %v3529, %v3525
        %v3722 = vpack.c.bf16 %v3530, %v3526
        %v3723 = vpack.c.bf16 %v3535, %v3531
        %v3724 = vpack.c.bf16 %v3536, %v3532
        %v3725 = vpack.c.bf16 %v3537, %v3533
        %v3726 = vpack.c.bf16 %v3538, %v3534
        %v3727 = vpack.c.bf16 %v3543, %v3539
        %v3728 = vpack.c.bf16 %v3544, %v3540
        %v3729 = vpack.c.bf16 %v3545, %v3541
        %v3730 = vpack.c.bf16 %v3546, %v3542
        %v3731 = vpack.c.bf16 %v3551, %v3547
        %v3732 = vpack.c.bf16 %v3552, %v3548
        %v3733 = vpack.c.bf16 %v3553, %v3549
        %v3734 = vpack.c.bf16 %v3554, %v3550
        %v3735 = vpack.c.bf16 %v3559, %v3555
        %v3736 = vpack.c.bf16 %v3560, %v3556
        %v3737 = vpack.c.bf16 %v3561, %v3557
        %v3738 = vpack.c.bf16 %v3562, %v3558
        %v3739 = vpack.c.bf16 %v3567, %v3563
        %v3740 = vpack.c.bf16 %v3568, %v3564
        %v3741 = vpack.c.bf16 %v3569, %v3565
        %v3742 = vpack.c.bf16 %v3570, %v3566
        %v3743 = vpack.c.bf16 %v3575, %v3571
        %v3744 = vpack.c.bf16 %v3576, %v3572
        %v3745 = vpack.c.bf16 %v3577, %v3573
        %v3746 = vpack.c.bf16 %v3578, %v3574
        %v3747 = vpack.c.bf16 %v3583, %v3579
        %v3748 = vpack.c.bf16 %v3584, %v3580
        %v3749 = vpack.c.bf16 %v3585, %v3581
        %v3750 = vpack.c.bf16 %v3586, %v3582
        %v3751 = vpack.c.bf16 %v3591, %v3587
        %v3752 = vpack.c.bf16 %v3592, %v3588
        %v3753 = vpack.c.bf16 %v3593, %v3589
        %v3754 = vpack.c.bf16 %v3594, %v3590
        %v3755 = vpack.c.bf16 %v3599, %v3595
        %v3756 = vpack.c.bf16 %v3600, %v3596
        %v3757 = vpack.c.bf16 %v3601, %v3597
        %v3758 = vpack.c.bf16 %v3602, %v3598
        %v3759 = vpack.c.bf16 %v3607, %v3603
        %v3760 = vpack.c.bf16 %v3608, %v3604
        %v3761 = vpack.c.bf16 %v3609, %v3605
        %v3762 = vpack.c.bf16 %v3610, %v3606
        %v3763 = vpack.c.bf16 %v3615, %v3611
        %v3764 = vpack.c.bf16 %v3616, %v3612
        %v3765 = vpack.c.bf16 %v3617, %v3613
        %v3766 = vpack.c.bf16 %v3618, %v3614
        %v3767 = vpack.c.bf16 %v3623, %v3619
        %v3768 = vpack.c.bf16 %v3624, %v3620
        %v3769 = vpack.c.bf16 %v3625, %v3621
        %v3770 = vpack.c.bf16 %v3626, %v3622
        %v3771 = vpack.c.bf16 %v3631, %v3627
        %v3772 = vpack.c.bf16 %v3632, %v3628
        %v3773 = vpack.c.bf16 %v3633, %v3629
        %v3774 = vpack.c.bf16 %v3634, %v3630
        %v3775 = vpack.c.bf16 %v3639, %v3635
        %v3776 = vpack.c.bf16 %v3640, %v3636
        %v3777 = vpack.c.bf16 %v3641, %v3637
        %v3778 = vpack.c.bf16 %v3642, %v3638
        %v3779 = vpack.c.bf16 %v3647, %v3643
        %v3780 = vpack.c.bf16 %v3648, %v3644
        %v3781 = vpack.c.bf16 %v3649, %v3645
        %v3782 = vpack.c.bf16 %v3650, %v3646
        %v3783 = vpack.c.bf16 %v3655, %v3651
        %v3784 = vpack.c.bf16 %v3656, %v3652
        %v3785 = vpack.c.bf16 %v3657, %v3653
        %v3786 = vpack.c.bf16 %v3658, %v3654
        %v3787 = vpack.c.bf16 %v3663, %v3659
        %v3788 = vpack.c.bf16 %v3664, %v3660
        %v3789 = vpack.c.bf16 %v3665, %v3661
        %v3790 = vpack.c.bf16 %v3666, %v3662
        %v3791 = vpack.c.bf16 %v3671, %v3667
        %v3792 = vpack.c.bf16 %v3672, %v3668
        %v3793 = vpack.c.bf16 %v3673, %v3669
        %v3794 = vpack.c.bf16 %v3674, %v3670
        %v3795 = vpack.c.bf16 %v3679, %v3675
        %v3796 = vpack.c.bf16 %v3680, %v3676
        %v3797 = vpack.c.bf16 %v3681, %v3677
        %v3798 = vpack.c.bf16 %v3682, %v3678
        %v3799 = vpack.c.bf16 %v3687, %v3683
        %v3800 = vpack.c.bf16 %v3688, %v3684
        %v3801 = vpack.c.bf16 %v3689, %v3685
        %v3802 = vpack.c.bf16 %v3690, %v3686
        %v3803 = vpack.c.bf16 %v3695, %v3691
        %v3804 = vpack.c.bf16 %v3696, %v3692
        %v3805 = vpack.c.bf16 %v3697, %v3693
        %v3806 = vpack.c.bf16 %v3698, %v3694
        %v3807 = vpack.c.bf16 %v3703, %v3699
        %v3808 = vpack.c.bf16 %v3704, %v3700
        %v3809 = vpack.c.bf16 %v3705, %v3701
        %v3810 = vpack.c.bf16 %v3706, %v3702
        %v3811 = vpack.c.bf16 %v669, %v666
        %v3812 = vpack.c.bf16 %v677, %v674
        %v3813 = vpack.c.bf16 %v685, %v682
        %v3814 = vpack.c.bf16 %v693, %v690
        %v3815 = vpack.c.bf16 %v701, %v698
        %v3816 = vpack.c.bf16 %v709, %v706
        %v3817 = vpack.c.bf16 %v717, %v714
        %v3818 = vpack.c.bf16 %v725, %v722
        %v3819 = vpack.c.bf16 %v733, %v730
        %v3820 = vpack.c.bf16 %v741, %v738
        %v3821 = vpack.c.bf16 %v749, %v746
        %v3822 = vpack.c.bf16 %v757, %v754
        %v3823 = vpack.c.bf16 %v765, %v762
        %v3824 = vpack.c.bf16 %v773, %v770
        %v3825 = vpack.c.bf16 %v781, %v778
        %v3826 = vpack.c.bf16 %v789, %v786
        %v3827 = vpack.c.bf16 %v797, %v794
        %v3828 = vpack.c.bf16 %v805, %v802
        %v3829 = vpack.c.bf16 %v813, %v810
        %v3830 = vpack.c.bf16 %v821, %v818
        %v3831 = vpack.c.bf16 %v829, %v826
        %v3832 = vpack.c.bf16 %v837, %v834
        %v3833 = vpack.c.bf16 %v845, %v842
        %v3834 = vpack.c.bf16 %v853, %v850
        %v3835 = vpack.c.bf16 %v861, %v858
        %v3836 = vpack.c.bf16 %v869, %v866
        %3863 = vrot.lane.b32.xlu0 %v3811, 64
        %v3864 = vpop.permute.xlu0 %3863
        %3865 = vrot.lane.b32.xlu0 %v3812, 64
        %v3866 = vpop.permute.xlu0 %3865
        %3867 = vrot.lane.b32.xlu0 %v3813, 64
        %v3868 = vpop.permute.xlu0 %3867
        %3869 = vrot.lane.b32.xlu0 %v3814, 64
        %v3870 = vpop.permute.xlu0 %3869
        %3871 = vrot.lane.b32.xlu0 %v3815, 64
        %v3872 = vpop.permute.xlu0 %3871
        %3873 = vrot.lane.b32.xlu0 %v3816, 64
        %v3874 = vpop.permute.xlu0 %3873
        %3875 = vrot.lane.b32.xlu0 %v3817, 64
        %v3876 = vpop.permute.xlu0 %3875
        %3877 = vrot.lane.b32.xlu0 %v3818, 64
        %v3878 = vpop.permute.xlu0 %3877
        %3879 = vrot.lane.b32.xlu0 %v3819, 64
        %v3880 = vpop.permute.xlu0 %3879
        %3881 = vrot.lane.b32.xlu0 %v3820, 64
        %v3882 = vpop.permute.xlu0 %3881
        %3883 = vrot.lane.b32.xlu0 %v3821, 64
        %v3884 = vpop.permute.xlu0 %3883
        %3885 = vrot.lane.b32.xlu0 %v3822, 64
        %v3886 = vpop.permute.xlu0 %3885
        %3887 = vrot.lane.b32.xlu0 %v3823, 64
        %v3888 = vpop.permute.xlu0 %3887
        %3889 = vrot.lane.b32.xlu0 %v3824, 64
        %v3890 = vpop.permute.xlu0 %3889
        %3891 = vrot.lane.b32.xlu0 %v3825, 64
        %v3892 = vpop.permute.xlu0 %3891
        %3893 = vrot.lane.b32.xlu0 %v3826, 64
        %v3894 = vpop.permute.xlu0 %3893
        %3895 = vrot.lane.b32.xlu0 %v3827, 64
        %v3896 = vpop.permute.xlu0 %3895
        %3897 = vrot.lane.b32.xlu0 %v3828, 64
        %v3898 = vpop.permute.xlu0 %3897
        %3899 = vrot.lane.b32.xlu0 %v3829, 64
        %v3900 = vpop.permute.xlu0 %3899
        %3901 = vrot.lane.b32.xlu0 %v3830, 64
        %v3902 = vpop.permute.xlu0 %3901
        %3903 = vrot.lane.b32.xlu0 %v3831, 64
        %v3904 = vpop.permute.xlu0 %3903
        %3905 = vrot.lane.b32.xlu0 %v3832, 64
        %v3906 = vpop.permute.xlu0 %3905
        %3907 = vrot.lane.b32.xlu0 %v3833, 64
        %v3908 = vpop.permute.xlu0 %3907
        %3909 = vrot.lane.b32.xlu0 %v3834, 64
        %v3910 = vpop.permute.xlu0 %3909
        %3911 = vrot.lane.b32.xlu0 %v3835, 64
        %v3912 = vpop.permute.xlu0 %3911
        %3913 = vrot.lane.b32.xlu0 %v3836, 64
        %v3914 = vpop.permute.xlu0 %3913
        %v3942 = vsel %vm1236, %v3710, 0
        %v3945 = vsel %vm1236, %v3714, 0
        %v3948 = vsel %vm1236, %v3718, 0
        %v3951 = vsel %vm1236, %v3722, 0
        %v3954 = vsel %vm1236, %v3726, 0
        %v3957 = vsel %vm1236, %v3730, 0
        %v3960 = vsel %vm1236, %v3734, 0
        %v3963 = vsel %vm1236, %v3738, 0
        %v3966 = vsel %vm1236, %v3742, 0
        %v3969 = vsel %vm1236, %v3746, 0
        %v3972 = vsel %vm1236, %v3750, 0
        %v3975 = vsel %vm1236, %v3754, 0
        %v3978 = vsel %vm1236, %v3758, 0
        %v3981 = vsel %vm1236, %v3762, 0
        %v3984 = vsel %vm1236, %v3766, 0
        %v3987 = vsel %vm1236, %v3770, 0
        %v3990 = vsel %vm1236, %v3774, 0
        %v3993 = vsel %vm1236, %v3778, 0
        %v3996 = vsel %vm1236, %v3782, 0
        %v3999 = vsel %vm1236, %v3786, 0
        %v4002 = vsel %vm1236, %v3790, 0
        %v4005 = vsel %vm1236, %v3794, 0
        %v4008 = vsel %vm1236, %v3798, 0
        %v4011 = vsel %vm1236, %v3802, 0
        %v4014 = vsel %vm1236, %v3806, 0
        %v4017 = vsel %vm1236, %v3810, 0
        %4019 = vmatprep.subr.bf16.mxu0 0
        %4020 = vmatpush1.bf16.msra.mxu0 %v3864
        %4021 = vmatprep.subr.bf16.mxu0 0
        %4022 = vmatpush1.bf16.msra.mxu0 %v3866
        %4023 = vmatprep.subr.bf16.mxu0 0
        %4024 = vmatpush1.bf16.msra.mxu0 %v3868
        %4025 = vmatprep.subr.bf16.mxu0 0
        %4026 = vmatpush1.bf16.msra.mxu0 %v3870
        %4027 = vmatprep.subr.bf16.mxu0 0
        %4028 = vmatpush1.bf16.msra.mxu0 %v3872
        %4029 = vmatprep.subr.bf16.mxu0 0
        %4030 = vmatpush1.bf16.msra.mxu0 %v3874
        %4031 = vmatprep.subr.bf16.mxu0 0
        %4032 = vmatpush1.bf16.msra.mxu0 %v3876
        %4033 = vmatprep.subr.bf16.mxu0 0
        %4034 = vmatpush1.bf16.msra.mxu0 %v3878
        %4035 = vmatprep.subr.bf16.mxu0 0
        %4036 = vmatpush1.bf16.msra.mxu0 %v3880
        %4037 = vmatprep.subr.bf16.mxu0 0
        %4038 = vmatpush1.bf16.msra.mxu0 %v3882
        %4039 = vmatprep.subr.bf16.mxu0 0
        %4040 = vmatpush1.bf16.msra.mxu0 %v3884
        %4041 = vmatprep.subr.bf16.mxu0 0
        %4042 = vmatpush1.bf16.msra.mxu0 %v3886
        %4043 = vmatprep.subr.bf16.mxu0 0
        %4044 = vmatpush1.bf16.msra.mxu0 %v3888
        %4045 = vmatprep.subr.bf16.mxu0 0
        %4046 = vmatpush1.bf16.msra.mxu0 %v3890
        %4047 = vmatprep.subr.bf16.mxu0 0
        %4048 = vmatpush1.bf16.msra.mxu0 %v3892
        %4049 = vmatprep.subr.bf16.mxu0 0
        %4050 = vmatpush1.bf16.msra.mxu0 %v3894
        %4051 = vmatprep.mubr.bf16.mxu0 %v3708
        %4052 = vmatmul.mubr.bf16.gmra.mrb[0].mxu0 %v3707
        %v4053 = vpop.f32.mrb[0].mxu0
        %v4054 = vadd.f32 0.0, %v4053
        %v4055 = vpop.f32.mrb[0].mxu0
        %v4056 = vpop.f32.mrb[0].mxu0
        %v4057 = vadd.f32 0.0, %v4056
        %v4058 = vpop.f32.mrb[0].mxu0
        %4059 = vmatprep.mubr.bf16.mxu0 %v3712
        %4060 = vmatmul.mubr.bf16.gmra.mrb[0].mxu0 %v3711
        %v4061 = vpop.f32.mrb[0].mxu0
        %v4062 = vadd.f32 0.0, %v4061
        %v4063 = vpop.f32.mrb[0].mxu0
        %v4064 = vpop.f32.mrb[0].mxu0
        %v4065 = vadd.f32 0.0, %v4064
        %v4066 = vpop.f32.mrb[0].mxu0
        %4067 = vmatprep.mubr.bf16.mxu0 %v3716
        %4068 = vmatmul.mubr.bf16.gmra.mrb[0].mxu0 %v3715
        %v4069 = vpop.f32.mrb[0].mxu0
        %v4070 = vadd.f32 0.0, %v4069
        %v4071 = vpop.f32.mrb[0].mxu0
        %v4072 = vpop.f32.mrb[0].mxu0
        %v4073 = vadd.f32 0.0, %v4072
        %v4074 = vpop.f32.mrb[0].mxu0
        %4075 = vmatprep.mubr.bf16.mxu0 %v3720
        %4076 = vmatmul.mubr.bf16.gmra.mrb[0].mxu0 %v3719
        %v4077 = vpop.f32.mrb[0].mxu0
        %v4078 = vadd.f32 0.0, %v4077
        %v4079 = vpop.f32.mrb[0].mxu0
        %v4080 = vpop.f32.mrb[0].mxu0
        %v4081 = vadd.f32 0.0, %v4080
        %v4082 = vpop.f32.mrb[0].mxu0
        %4083 = vmatprep.mubr.bf16.mxu0 %v3724
        %4084 = vmatmul.mubr.bf16.gmra.mrb[0].mxu0 %v3723
        %v4085 = vpop.f32.mrb[0].mxu0
        %v4086 = vadd.f32 0.0, %v4085
        %v4087 = vpop.f32.mrb[0].mxu0
        %v4088 = vpop.f32.mrb[0].mxu0
        %v4089 = vadd.f32 0.0, %v4088
        %v4090 = vpop.f32.mrb[0].mxu0
        %4091 = vmatprep.mubr.bf16.mxu0 %v3728
        %4092 = vmatmul.mubr.bf16.gmra.mrb[0].mxu0 %v3727
        %v4093 = vpop.f32.mrb[0].mxu0
        %v4094 = vadd.f32 0.0, %v4093
        %v4095 = vpop.f32.mrb[0].mxu0
        %v4096 = vpop.f32.mrb[0].mxu0
        %v4097 = vadd.f32 0.0, %v4096
        %v4098 = vpop.f32.mrb[0].mxu0
        %4099 = vmatprep.mubr.bf16.mxu0 %v3732
        %4100 = vmatmul.mubr.bf16.gmra.mrb[0].mxu0 %v3731
        %v4101 = vpop.f32.mrb[0].mxu0
        %v4102 = vadd.f32 0.0, %v4101
        %v4103 = vpop.f32.mrb[0].mxu0
        %v4104 = vpop.f32.mrb[0].mxu0
        %v4105 = vadd.f32 0.0, %v4104
        %v4106 = vpop.f32.mrb[0].mxu0
        %4107 = vmatprep.mubr.bf16.mxu0 %v3736
        %4108 = vmatmul.mubr.bf16.gmra.mrb[0].mxu0 %v3735
        %v4109 = vpop.f32.mrb[0].mxu0
        %v4110 = vadd.f32 0.0, %v4109
        %v4111 = vpop.f32.mrb[0].mxu0
        %v4112 = vpop.f32.mrb[0].mxu0
        %v4113 = vadd.f32 0.0, %v4112
        %v4114 = vpop.f32.mrb[0].mxu0
        %4115 = vmatprep.mubr.bf16.mxu0 %v3740
        %4116 = vmatmul.mubr.bf16.gmra.mrb[0].mxu0 %v3739
        %v4117 = vpop.f32.mrb[0].mxu0
        %v4118 = vadd.f32 0.0, %v4117
        %v4119 = vpop.f32.mrb[0].mxu0
        %v4120 = vpop.f32.mrb[0].mxu0
        %v4121 = vadd.f32 0.0, %v4120
        %v4122 = vpop.f32.mrb[0].mxu0
        %4123 = vmatprep.mubr.bf16.mxu0 %v3744
        %4124 = vmatmul.mubr.bf16.gmra.mrb[0].mxu0 %v3743
        %v4125 = vpop.f32.mrb[0].mxu0
        %v4126 = vadd.f32 0.0, %v4125
        %v4127 = vpop.f32.mrb[0].mxu0
        %v4128 = vpop.f32.mrb[0].mxu0
        %v4129 = vadd.f32 0.0, %v4128
        %v4130 = vpop.f32.mrb[0].mxu0
        %4131 = vmatprep.mubr.bf16.mxu0 %v3748
        %4132 = vmatmul.mubr.bf16.gmra.mrb[0].mxu0 %v3747
        %v4133 = vpop.f32.mrb[0].mxu0
        %v4134 = vadd.f32 0.0, %v4133
        %v4135 = vpop.f32.mrb[0].mxu0
        %v4136 = vpop.f32.mrb[0].mxu0
        %v4137 = vadd.f32 0.0, %v4136
        %v4138 = vpop.f32.mrb[0].mxu0
        %4139 = vmatprep.mubr.bf16.mxu0 %v3752
        %4140 = vmatmul.mubr.bf16.gmra.mrb[0].mxu0 %v3751
        %v4141 = vpop.f32.mrb[0].mxu0
        %v4142 = vadd.f32 0.0, %v4141
        %v4143 = vpop.f32.mrb[0].mxu0
        %v4144 = vpop.f32.mrb[0].mxu0
        %v4145 = vadd.f32 0.0, %v4144
        %v4146 = vpop.f32.mrb[0].mxu0
        %4147 = vmatprep.mubr.bf16.mxu0 %v3756
        %4148 = vmatmul.mubr.bf16.gmra.mrb[0].mxu0 %v3755
        %v4149 = vpop.f32.mrb[0].mxu0
        %v4150 = vadd.f32 0.0, %v4149
        %v4151 = vpop.f32.mrb[0].mxu0
        %v4152 = vpop.f32.mrb[0].mxu0
        %v4153 = vadd.f32 0.0, %v4152
        %v4154 = vpop.f32.mrb[0].mxu0
        %4155 = vmatprep.mubr.bf16.mxu0 %v3760
        %4156 = vmatmul.mubr.bf16.gmra.mrb[0].mxu0 %v3759
        %v4157 = vpop.f32.mrb[0].mxu0
        %v4158 = vadd.f32 0.0, %v4157
        %v4159 = vpop.f32.mrb[0].mxu0
        %v4160 = vpop.f32.mrb[0].mxu0
        %v4161 = vadd.f32 0.0, %v4160
        %v4162 = vpop.f32.mrb[0].mxu0
        %4163 = vmatprep.mubr.bf16.mxu0 %v3764
        %4164 = vmatmul.mubr.bf16.gmra.mrb[0].mxu0 %v3763
        %v4165 = vpop.f32.mrb[0].mxu0
        %v4166 = vadd.f32 0.0, %v4165
        %v4167 = vpop.f32.mrb[0].mxu0
        %v4168 = vpop.f32.mrb[0].mxu0
        %v4169 = vadd.f32 0.0, %v4168
        %v4170 = vpop.f32.mrb[0].mxu0
        %4171 = vmatprep.mubr.bf16.mxu0 %v3768
        %4172 = vmatmul.mubr.bf16.gmra.mrb[0].mxu0 %v3767
        %v4173 = vpop.f32.mrb[0].mxu0
        %v4174 = vadd.f32 0.0, %v4173
        %v4175 = vpop.f32.mrb[0].mxu0
        %v4176 = vpop.f32.mrb[0].mxu0
        %v4177 = vadd.f32 0.0, %v4176
        %v4178 = vpop.f32.mrb[0].mxu0
        %4179 = vmatprep.mubr.bf16.mxu0 %v3772
        %4180 = vmatmul.mubr.bf16.gmra.mrb[0].mxu0 %v3771
        %v4181 = vpop.f32.mrb[0].mxu0
        %v4182 = vadd.f32 0.0, %v4181
        %v4183 = vpop.f32.mrb[0].mxu0
        %v4184 = vpop.f32.mrb[0].mxu0
        %v4185 = vadd.f32 0.0, %v4184
        %v4186 = vpop.f32.mrb[0].mxu0
        %4187 = vmatprep.mubr.bf16.mxu0 %v3776
        %4188 = vmatmul.mubr.bf16.gmra.mrb[0].mxu0 %v3775
        %v4189 = vpop.f32.mrb[0].mxu0
        %v4190 = vadd.f32 0.0, %v4189
        %v4191 = vpop.f32.mrb[0].mxu0
        %v4192 = vpop.f32.mrb[0].mxu0
        %v4193 = vadd.f32 0.0, %v4192
        %v4194 = vpop.f32.mrb[0].mxu0
        %4195 = vmatprep.mubr.bf16.mxu0 %v3780
        %4196 = vmatmul.mubr.bf16.gmra.mrb[0].mxu0 %v3779
        %v4197 = vpop.f32.mrb[0].mxu0
        %v4198 = vadd.f32 0.0, %v4197
        %v4199 = vpop.f32.mrb[0].mxu0
        %v4200 = vpop.f32.mrb[0].mxu0
        %v4201 = vadd.f32 0.0, %v4200
        %v4202 = vpop.f32.mrb[0].mxu0
        %4203 = vmatprep.mubr.bf16.mxu0 %v3784
        %4204 = vmatmul.mubr.bf16.gmra.mrb[0].mxu0 %v3783
        %v4205 = vpop.f32.mrb[0].mxu0
        %v4206 = vadd.f32 0.0, %v4205
        %v4207 = vpop.f32.mrb[0].mxu0
        %v4208 = vpop.f32.mrb[0].mxu0
        %v4209 = vadd.f32 0.0, %v4208
        %v4210 = vpop.f32.mrb[0].mxu0
        %4211 = vmatprep.mubr.bf16.mxu0 %v3788
        %4212 = vmatmul.mubr.bf16.gmra.mrb[0].mxu0 %v3787
        %v4213 = vpop.f32.mrb[0].mxu0
        %v4214 = vadd.f32 0.0, %v4213
        %v4215 = vpop.f32.mrb[0].mxu0
        %v4216 = vpop.f32.mrb[0].mxu0
        %v4217 = vadd.f32 0.0, %v4216
        %v4218 = vpop.f32.mrb[0].mxu0
        %4219 = vmatprep.mubr.bf16.mxu0 %v3792
        %4220 = vmatmul.mubr.bf16.gmra.mrb[0].mxu0 %v3791
        %v4221 = vpop.f32.mrb[0].mxu0
        %v4222 = vadd.f32 0.0, %v4221
        %v4223 = vpop.f32.mrb[0].mxu0
        %v4224 = vpop.f32.mrb[0].mxu0
        %v4225 = vadd.f32 0.0, %v4224
        %v4226 = vpop.f32.mrb[0].mxu0
        %4227 = vmatprep.mubr.bf16.mxu0 %v3796
        %4228 = vmatmul.mubr.bf16.gmra.mrb[0].mxu0 %v3795
        %v4229 = vpop.f32.mrb[0].mxu0
        %v4230 = vadd.f32 0.0, %v4229
        %v4231 = vpop.f32.mrb[0].mxu0
        %v4232 = vpop.f32.mrb[0].mxu0
        %v4233 = vadd.f32 0.0, %v4232
        %v4234 = vpop.f32.mrb[0].mxu0
        %4235 = vmatprep.mubr.bf16.mxu0 %v3800
        %4236 = vmatmul.mubr.bf16.gmra.mrb[0].mxu0 %v3799
        %v4237 = vpop.f32.mrb[0].mxu0
        %v4238 = vadd.f32 0.0, %v4237
        %v4239 = vpop.f32.mrb[0].mxu0
        %v4240 = vpop.f32.mrb[0].mxu0
        %v4241 = vadd.f32 0.0, %v4240
        %v4242 = vpop.f32.mrb[0].mxu0
        %4243 = vmatprep.mubr.bf16.mxu0 %v3804
        %4244 = vmatmul.mubr.bf16.gmra.mrb[0].mxu0 %v3803
        %v4245 = vpop.f32.mrb[0].mxu0
        %v4246 = vadd.f32 0.0, %v4245
        %v4247 = vpop.f32.mrb[0].mxu0
        %v4248 = vpop.f32.mrb[0].mxu0
        %v4249 = vadd.f32 0.0, %v4248
        %v4250 = vpop.f32.mrb[0].mxu0
        %4251 = vmatprep.mubr.bf16.mxu0 %v3808
        %4252 = vmatmul.mubr.bf16.gmra.mrb[0].mxu0 %v3807
        %v4253 = vpop.f32.mrb[0].mxu0
        %v4254 = vadd.f32 0.0, %v4253
        %v4255 = vpop.f32.mrb[0].mxu0
        %v4256 = vpop.f32.mrb[0].mxu0
        %v4257 = vadd.f32 0.0, %v4256
        %v4258 = vpop.f32.mrb[0].mxu0
        %4259 = vdwg.mxu0
        %4260 = vmatprep.subr.bf16.mxu0 0
        %4261 = vmatpush1.bf16.msra.mxu0 %v3896
        %4262 = vmatprep.subr.bf16.mxu0 0
        %4263 = vmatpush1.bf16.msra.mxu0 %v3898
        %4264 = vmatprep.subr.bf16.mxu0 0
        %4265 = vmatpush1.bf16.msra.mxu0 %v3900
        %4266 = vmatprep.subr.bf16.mxu0 0
        %4267 = vmatpush1.bf16.msra.mxu0 %v3902
        %4268 = vmatprep.subr.bf16.mxu0 0
        %4269 = vmatpush1.bf16.msra.mxu0 %v3904
        %4270 = vmatprep.subr.bf16.mxu0 0
        %4271 = vmatpush1.bf16.msra.mxu0 %v3906
        %4272 = vmatprep.subr.bf16.mxu0 0
        %4273 = vmatpush1.bf16.msra.mxu0 %v3908
        %4274 = vmatprep.subr.bf16.mxu0 0
        %4275 = vmatpush1.bf16.msra.mxu0 %v3910
        %4276 = vmatprep.subr.bf16.mxu0 0
        %4277 = vmatpush1.bf16.msra.mxu0 %v3912
        %4278 = vmatprep.subr.bf16.mxu0 0
        %4279 = vmatpush1.bf16.msra.mxu0 %v3914
        %4280 = vmatprep.subr.bf16.mxu0 0
        %4281 = vmatpush1.bf16.msra.mxu0 0
        %4282 = vmatprep.subr.bf16.mxu0 0
        %4283 = vmatpush1.bf16.msra.mxu0 0
        %4284 = vmatprep.subr.bf16.mxu0 0
        %4285 = vmatpush1.bf16.msra.mxu0 0
        %4286 = vmatprep.subr.bf16.mxu0 0
        %4287 = vmatpush1.bf16.msra.mxu0 0
        %4288 = vmatprep.subr.bf16.mxu0 0
        %4289 = vmatpush1.bf16.msra.mxu0 0
        %4290 = vmatprep.subr.bf16.mxu0 0
        %4291 = vmatpush1.bf16.msra.mxu0 0
        %4292 = vmatprep.mubr.bf16.mxu0 %v3942
        %4293 = vmatmul.mubr.bf16.gmra.mrb[0].mxu0 %v3709
        %v4294 = vpop.f32.mrb[0].mxu0
        %v4295 = vadd.f32 %v4054, %v4294
        %v4296 = vpop.f32.mrb[0].mxu0
        %v4297 = vpop.f32.mrb[0].mxu0
        %v4298 = vadd.f32 %v4057, %v4297
        %v4299 = vpop.f32.mrb[0].mxu0
        %4300 = vmatprep.mubr.bf16.mxu0 %v3945
        %4301 = vmatmul.mubr.bf16.gmra.mrb[0].mxu0 %v3713
        %v4302 = vpop.f32.mrb[0].mxu0
        %v4303 = vadd.f32 %v4062, %v4302
        %v4304 = vpop.f32.mrb[0].mxu0
        %v4305 = vpop.f32.mrb[0].mxu0
        %v4306 = vadd.f32 %v4065, %v4305
        %v4307 = vpop.f32.mrb[0].mxu0
        %4308 = vmatprep.mubr.bf16.mxu0 %v3948
        %4309 = vmatmul.mubr.bf16.gmra.mrb[0].mxu0 %v3717
        %v4310 = vpop.f32.mrb[0].mxu0
        %v4311 = vadd.f32 %v4070, %v4310
        %v4312 = vpop.f32.mrb[0].mxu0
        %v4313 = vpop.f32.mrb[0].mxu0
        %v4314 = vadd.f32 %v4073, %v4313
        %v4315 = vpop.f32.mrb[0].mxu0
        %4316 = vmatprep.mubr.bf16.mxu0 %v3951
        %4317 = vmatmul.mubr.bf16.gmra.mrb[0].mxu0 %v3721
        %v4318 = vpop.f32.mrb[0].mxu0
        %v4319 = vadd.f32 %v4078, %v4318
        %v4320 = vpop.f32.mrb[0].mxu0
        %v4321 = vpop.f32.mrb[0].mxu0
        %v4322 = vadd.f32 %v4081, %v4321
        %v4323 = vpop.f32.mrb[0].mxu0
        %4324 = vmatprep.mubr.bf16.mxu0 %v3954
        %4325 = vmatmul.mubr.bf16.gmra.mrb[0].mxu0 %v3725
        %v4326 = vpop.f32.mrb[0].mxu0
        %v4327 = vadd.f32 %v4086, %v4326
        %v4328 = vpop.f32.mrb[0].mxu0
        %v4329 = vpop.f32.mrb[0].mxu0
        %v4330 = vadd.f32 %v4089, %v4329
        %v4331 = vpop.f32.mrb[0].mxu0
        %4332 = vmatprep.mubr.bf16.mxu0 %v3957
        %4333 = vmatmul.mubr.bf16.gmra.mrb[0].mxu0 %v3729
        %v4334 = vpop.f32.mrb[0].mxu0
        %v4335 = vadd.f32 %v4094, %v4334
        %v4336 = vpop.f32.mrb[0].mxu0
        %v4337 = vpop.f32.mrb[0].mxu0
        %v4338 = vadd.f32 %v4097, %v4337
        %v4339 = vpop.f32.mrb[0].mxu0
        %4340 = vmatprep.mubr.bf16.mxu0 %v3960
        %4341 = vmatmul.mubr.bf16.gmra.mrb[0].mxu0 %v3733
        %v4342 = vpop.f32.mrb[0].mxu0
        %v4343 = vadd.f32 %v4102, %v4342
        %v4344 = vpop.f32.mrb[0].mxu0
        %v4345 = vpop.f32.mrb[0].mxu0
        %v4346 = vadd.f32 %v4105, %v4345
        %v4347 = vpop.f32.mrb[0].mxu0
        %4348 = vmatprep.mubr.bf16.mxu0 %v3963
        %4349 = vmatmul.mubr.bf16.gmra.mrb[0].mxu0 %v3737
        %v4350 = vpop.f32.mrb[0].mxu0
        %v4351 = vadd.f32 %v4110, %v4350
        %v4352 = vpop.f32.mrb[0].mxu0
        %v4353 = vpop.f32.mrb[0].mxu0
        %v4354 = vadd.f32 %v4113, %v4353
        %v4355 = vpop.f32.mrb[0].mxu0
        %4356 = vmatprep.mubr.bf16.mxu0 %v3966
        %4357 = vmatmul.mubr.bf16.gmra.mrb[0].mxu0 %v3741
        %v4358 = vpop.f32.mrb[0].mxu0
        %v4359 = vadd.f32 %v4118, %v4358
        %v4360 = vpop.f32.mrb[0].mxu0
        %v4361 = vpop.f32.mrb[0].mxu0
        %v4362 = vadd.f32 %v4121, %v4361
        %v4363 = vpop.f32.mrb[0].mxu0
        %4364 = vmatprep.mubr.bf16.mxu0 %v3969
        %4365 = vmatmul.mubr.bf16.gmra.mrb[0].mxu0 %v3745
        %v4366 = vpop.f32.mrb[0].mxu0
        %v4367 = vadd.f32 %v4126, %v4366
        %v4368 = vpop.f32.mrb[0].mxu0
        %v4369 = vpop.f32.mrb[0].mxu0
        %v4370 = vadd.f32 %v4129, %v4369
        %v4371 = vpop.f32.mrb[0].mxu0
        %4372 = vmatprep.mubr.bf16.mxu0 %v3972
        %4373 = vmatmul.mubr.bf16.gmra.mrb[0].mxu0 %v3749
        %v4374 = vpop.f32.mrb[0].mxu0
        %v4375 = vadd.f32 %v4134, %v4374
        %v4376 = vpop.f32.mrb[0].mxu0
        %v4377 = vpop.f32.mrb[0].mxu0
        %v4378 = vadd.f32 %v4137, %v4377
        %v4379 = vpop.f32.mrb[0].mxu0
        %4380 = vmatprep.mubr.bf16.mxu0 %v3975
        %4381 = vmatmul.mubr.bf16.gmra.mrb[0].mxu0 %v3753
        %v4382 = vpop.f32.mrb[0].mxu0
        %v4383 = vadd.f32 %v4142, %v4382
        %v4384 = vpop.f32.mrb[0].mxu0
        %v4385 = vpop.f32.mrb[0].mxu0
        %v4386 = vadd.f32 %v4145, %v4385
        %v4387 = vpop.f32.mrb[0].mxu0
        %4388 = vmatprep.mubr.bf16.mxu0 %v3978
        %4389 = vmatmul.mubr.bf16.gmra.mrb[0].mxu0 %v3757
        %v4390 = vpop.f32.mrb[0].mxu0
        %v4391 = vadd.f32 %v4150, %v4390
        %v4392 = vpop.f32.mrb[0].mxu0
        %v4393 = vpop.f32.mrb[0].mxu0
        %v4394 = vadd.f32 %v4153, %v4393
        %v4395 = vpop.f32.mrb[0].mxu0
        %4396 = vmatprep.mubr.bf16.mxu0 %v3981
        %4397 = vmatmul.mubr.bf16.gmra.mrb[0].mxu0 %v3761
        %v4398 = vpop.f32.mrb[0].mxu0
        %v4399 = vadd.f32 %v4158, %v4398
        %v4400 = vpop.f32.mrb[0].mxu0
        %v4401 = vpop.f32.mrb[0].mxu0
        %v4402 = vadd.f32 %v4161, %v4401
        %v4403 = vpop.f32.mrb[0].mxu0
        %4404 = vmatprep.mubr.bf16.mxu0 %v3984
        %4405 = vmatmul.mubr.bf16.gmra.mrb[0].mxu0 %v3765
        %v4406 = vpop.f32.mrb[0].mxu0
        %v4407 = vadd.f32 %v4166, %v4406
        %v4408 = vpop.f32.mrb[0].mxu0
        %v4409 = vpop.f32.mrb[0].mxu0
        %v4410 = vadd.f32 %v4169, %v4409
        %v4411 = vpop.f32.mrb[0].mxu0
        %4412 = vmatprep.mubr.bf16.mxu0 %v3987
        %4413 = vmatmul.mubr.bf16.gmra.mrb[0].mxu0 %v3769
        %v4414 = vpop.f32.mrb[0].mxu0
        %v4415 = vadd.f32 %v4174, %v4414
        %v4416 = vpop.f32.mrb[0].mxu0
        %v4417 = vpop.f32.mrb[0].mxu0
        %v4418 = vadd.f32 %v4177, %v4417
        %v4419 = vpop.f32.mrb[0].mxu0
        %4420 = vmatprep.mubr.bf16.mxu0 %v3990
        %4421 = vmatmul.mubr.bf16.gmra.mrb[0].mxu0 %v3773
        %v4422 = vpop.f32.mrb[0].mxu0
        %v4423 = vadd.f32 %v4182, %v4422
        %v4424 = vpop.f32.mrb[0].mxu0
        %v4425 = vpop.f32.mrb[0].mxu0
        %v4426 = vadd.f32 %v4185, %v4425
        %v4427 = vpop.f32.mrb[0].mxu0
        %4428 = vmatprep.mubr.bf16.mxu0 %v3993
        %4429 = vmatmul.mubr.bf16.gmra.mrb[0].mxu0 %v3777
        %v4430 = vpop.f32.mrb[0].mxu0
        %v4431 = vadd.f32 %v4190, %v4430
        %v4432 = vpop.f32.mrb[0].mxu0
        %v4433 = vpop.f32.mrb[0].mxu0
        %v4434 = vadd.f32 %v4193, %v4433
        %v4435 = vpop.f32.mrb[0].mxu0
        %4436 = vmatprep.mubr.bf16.mxu0 %v3996
        %4437 = vmatmul.mubr.bf16.gmra.mrb[0].mxu0 %v3781
        %v4438 = vpop.f32.mrb[0].mxu0
        %v4439 = vadd.f32 %v4198, %v4438
        %v4440 = vpop.f32.mrb[0].mxu0
        %v4441 = vpop.f32.mrb[0].mxu0
        %v4442 = vadd.f32 %v4201, %v4441
        %v4443 = vpop.f32.mrb[0].mxu0
        %4444 = vmatprep.mubr.bf16.mxu0 %v3999
        %4445 = vmatmul.mubr.bf16.gmra.mrb[0].mxu0 %v3785
        %v4446 = vpop.f32.mrb[0].mxu0
        %v4447 = vadd.f32 %v4206, %v4446
        %v4448 = vpop.f32.mrb[0].mxu0
        %v4449 = vpop.f32.mrb[0].mxu0
        %v4450 = vadd.f32 %v4209, %v4449
        %v4451 = vpop.f32.mrb[0].mxu0
        %4452 = vmatprep.mubr.bf16.mxu0 %v4002
        %4453 = vmatmul.mubr.bf16.gmra.mrb[0].mxu0 %v3789
        %v4454 = vpop.f32.mrb[0].mxu0
        %v4455 = vadd.f32 %v4214, %v4454
        %v4456 = vpop.f32.mrb[0].mxu0
        %v4457 = vpop.f32.mrb[0].mxu0
        %v4458 = vadd.f32 %v4217, %v4457
        %v4459 = vpop.f32.mrb[0].mxu0
        %4460 = vmatprep.mubr.bf16.mxu0 %v4005
        %4461 = vmatmul.mubr.bf16.gmra.mrb[0].mxu0 %v3793
        %v4462 = vpop.f32.mrb[0].mxu0
        %v4463 = vadd.f32 %v4222, %v4462
        %v4464 = vpop.f32.mrb[0].mxu0
        %v4465 = vpop.f32.mrb[0].mxu0
        %v4466 = vadd.f32 %v4225, %v4465
        %v4467 = vpop.f32.mrb[0].mxu0
        %4468 = vmatprep.mubr.bf16.mxu0 %v4008
        %4469 = vmatmul.mubr.bf16.gmra.mrb[0].mxu0 %v3797
        %v4470 = vpop.f32.mrb[0].mxu0
        %v4471 = vadd.f32 %v4230, %v4470
        %v4472 = vpop.f32.mrb[0].mxu0
        %v4473 = vpop.f32.mrb[0].mxu0
        %v4474 = vadd.f32 %v4233, %v4473
        %v4475 = vpop.f32.mrb[0].mxu0
        %4476 = vmatprep.mubr.bf16.mxu0 %v4011
        %4477 = vmatmul.mubr.bf16.gmra.mrb[0].mxu0 %v3801
        %v4478 = vpop.f32.mrb[0].mxu0
        %v4479 = vadd.f32 %v4238, %v4478
        %v4480 = vpop.f32.mrb[0].mxu0
        %v4481 = vpop.f32.mrb[0].mxu0
        %v4482 = vadd.f32 %v4241, %v4481
        %v4483 = vpop.f32.mrb[0].mxu0
        %4484 = vmatprep.mubr.bf16.mxu0 %v4014
        %4485 = vmatmul.mubr.bf16.gmra.mrb[0].mxu0 %v3805
        %v4486 = vpop.f32.mrb[0].mxu0
        %v4487 = vadd.f32 %v4246, %v4486
        %v4488 = vpop.f32.mrb[0].mxu0
        %v4489 = vpop.f32.mrb[0].mxu0
        %v4490 = vadd.f32 %v4249, %v4489
        %v4491 = vpop.f32.mrb[0].mxu0
        %4492 = vmatprep.mubr.bf16.mxu0 %v4017
        %4493 = vmatmul.mubr.bf16.gmra.mrb[0].mxu0 %v3809
        %v4494 = vpop.f32.mrb[0].mxu0
        %v4495 = vadd.f32 %v4254, %v4494
        %v4496 = vpop.f32.mrb[0].mxu0
        %v4497 = vpop.f32.mrb[0].mxu0
        %v4498 = vadd.f32 %v4257, %v4497
        %v4499 = vpop.f32.mrb[0].mxu0
        %4500 = vdwg.mxu0
        %v4501 = vpack.c.bf16 %v4298, %v4295
        %v4502 = vpack.c.bf16 %v4306, %v4303
        %v4503 = vpack.c.bf16 %v4314, %v4311
        %v4504 = vpack.c.bf16 %v4322, %v4319
        %v4505 = vpack.c.bf16 %v4330, %v4327
        %v4506 = vpack.c.bf16 %v4338, %v4335
        %v4507 = vpack.c.bf16 %v4346, %v4343
        %v4508 = vpack.c.bf16 %v4354, %v4351
        %v4509 = vpack.c.bf16 %v4362, %v4359
        %v4510 = vpack.c.bf16 %v4370, %v4367
        %v4511 = vpack.c.bf16 %v4378, %v4375
        %v4512 = vpack.c.bf16 %v4386, %v4383
        %v4513 = vpack.c.bf16 %v4394, %v4391
        %v4514 = vpack.c.bf16 %v4402, %v4399
        %v4515 = vpack.c.bf16 %v4410, %v4407
        %v4516 = vpack.c.bf16 %v4418, %v4415
        %v4517 = vpack.c.bf16 %v4426, %v4423
        %v4518 = vpack.c.bf16 %v4434, %v4431
        %v4519 = vpack.c.bf16 %v4442, %v4439
        %v4520 = vpack.c.bf16 %v4450, %v4447
        %v4521 = vpack.c.bf16 %v4458, %v4455
        %v4522 = vpack.c.bf16 %v4466, %v4463
        %v4523 = vpack.c.bf16 %v4474, %v4471
        %v4524 = vpack.c.bf16 %v4482, %v4479
        %v4525 = vpack.c.bf16 %v4490, %v4487
        %v4526 = vpack.c.bf16 %v4498, %v4495
        %v4527 = vld [vmem:[%s292] sm:$0xf]
        %v4528 = vld [vmem:[%s292 + $0x4] sm:$0xf]
        %v4529 = vld [vmem:[%s292 + $0x8] sm:$0xf]
        %v4530 = vld [vmem:[%s292 + $0xc] sm:$0xf]
        %v4535 = vunpack.c.l.b16 %v4527
        %v4536 = vunpack.c.l.b16 %v4528
        %v4537 = vunpack.c.l.b16 %v4529
        %v4538 = vunpack.c.l.b16 %v4530
        %v4539 = vpack.c.b16 %v4536, %v4535
        %v4540 = vpack.c.b16 %v4538, %v4537
        %v4544 = vsel %vm1236, %v4501, 0
        %v4547 = vsel %vm1236, %v4502, 0
        %v4550 = vsel %vm1236, %v4503, 0
        %v4553 = vsel %vm1236, %v4504, 0
        %v4556 = vsel %vm1236, %v4505, 0
        %v4559 = vsel %vm1236, %v4506, 0
        %v4562 = vsel %vm1236, %v4507, 0
        %v4565 = vsel %vm1236, %v4508, 0
        %v4568 = vsel %vm1236, %v4509, 0
        %v4571 = vsel %vm1236, %v4510, 0
        %v4574 = vsel %vm1236, %v4511, 0
        %v4577 = vsel %vm1236, %v4512, 0
        %v4580 = vsel %vm1236, %v4513, 0
        %v4583 = vsel %vm1236, %v4514, 0
        %v4586 = vsel %vm1236, %v4515, 0
        %v4589 = vsel %vm1236, %v4516, 0
        %v4592 = vsel %vm1236, %v4517, 0
        %v4595 = vsel %vm1236, %v4518, 0
        %v4598 = vsel %vm1236, %v4519, 0
        %v4601 = vsel %vm1236, %v4520, 0
        %v4604 = vsel %vm1236, %v4521, 0
        %v4607 = vsel %vm1236, %v4522, 0
        %v4610 = vsel %vm1236, %v4523, 0
        %v4613 = vsel %vm1236, %v4524, 0
        %v4616 = vsel %vm1236, %v4525, 0
        %v4619 = vsel %vm1236, %v4526, 0
        %4621 = vmatprep.subr.bf16.mxu0 0
        %4622 = vmatpush1.bf16.msra.mxu0 %v4539
        %4623 = vmatprep.subr.bf16.mxu0 0
        %4624 = vmatpush1.bf16.msra.mxu0 %v4540
        %4625 = vmatprep.subr.bf16.mxu0 0
        %4626 = vmatpush1.bf16.msra.mxu0 0
        %4627 = vmatprep.subr.bf16.mxu0 0
        %4628 = vmatpush1.bf16.msra.mxu0 0
        %4629 = vmatprep.subr.bf16.mxu0 0
        %4630 = vmatpush1.bf16.msra.mxu0 0
        %4631 = vmatprep.subr.bf16.mxu0 0
        %4632 = vmatpush1.bf16.msra.mxu0 0
        %4633 = vmatprep.subr.bf16.mxu0 0
        %4634 = vmatpush1.bf16.msra.mxu0 0
        %4635 = vmatprep.subr.bf16.mxu0 0
        %4636 = vmatpush1.bf16.msra.mxu0 0
        %4637 = vmatprep.subr.bf16.mxu0 0
        %4638 = vmatpush1.bf16.msra.mxu0 0
        %4639 = vmatprep.subr.bf16.mxu0 0
        %4640 = vmatpush1.bf16.msra.mxu0 0
        %4641 = vmatprep.subr.bf16.mxu0 0
        %4642 = vmatpush1.bf16.msra.mxu0 0
        %4643 = vmatprep.subr.bf16.mxu0 0
        %4644 = vmatpush1.bf16.msra.mxu0 0
        %4645 = vmatprep.subr.bf16.mxu0 0
        %4646 = vmatpush1.bf16.msra.mxu0 0
        %4647 = vmatprep.subr.bf16.mxu0 0
        %4648 = vmatpush1.bf16.msra.mxu0 0
        %4649 = vmatprep.subr.bf16.mxu0 0
        %4650 = vmatpush1.bf16.msra.mxu0 0
        %4651 = vmatprep.subr.bf16.mxu0 0
        %4652 = vmatpush1.bf16.msra.mxu0 0
        %4653 = vmatprep.mubr.bf16.mxu0 0
        %4654 = vmatmul.mubr.bf16.gmra.mrb[0].mxu0 %v4544
        %v4655 = vpop.f32.mrb[0].mxu0
        %v4656 = vadd.f32 0.0, %v4655
        %v4657 = vpop.f32.mrb[0].mxu0
        %v4658 = vpop.f32.mrb[0].mxu0
        %v4659 = vadd.f32 0.0, %v4658
        %v4660 = vpop.f32.mrb[0].mxu0
        %4661 = vmatprep.mubr.bf16.mxu0 0
        %4662 = vmatmul.mubr.bf16.gmra.mrb[0].mxu0 %v4547
        %v4663 = vpop.f32.mrb[0].mxu0
        %v4664 = vadd.f32 0.0, %v4663
        %v4665 = vpop.f32.mrb[0].mxu0
        %v4666 = vpop.f32.mrb[0].mxu0
        %v4667 = vadd.f32 0.0, %v4666
        %v4668 = vpop.f32.mrb[0].mxu0
        %4669 = vmatprep.mubr.bf16.mxu0 0
        %4670 = vmatmul.mubr.bf16.gmra.mrb[0].mxu0 %v4550
        %v4671 = vpop.f32.mrb[0].mxu0
        %v4672 = vadd.f32 0.0, %v4671
        %v4673 = vpop.f32.mrb[0].mxu0
        %v4674 = vpop.f32.mrb[0].mxu0
        %v4675 = vadd.f32 0.0, %v4674
        %v4676 = vpop.f32.mrb[0].mxu0
        %4677 = vmatprep.mubr.bf16.mxu0 0
        %4678 = vmatmul.mubr.bf16.gmra.mrb[0].mxu0 %v4553
        %v4679 = vpop.f32.mrb[0].mxu0
        %v4680 = vadd.f32 0.0, %v4679
        %v4681 = vpop.f32.mrb[0].mxu0
        %v4682 = vpop.f32.mrb[0].mxu0
        %v4683 = vadd.f32 0.0, %v4682
        %v4684 = vpop.f32.mrb[0].mxu0
        %4685 = vmatprep.mubr.bf16.mxu0 0
        %4686 = vmatmul.mubr.bf16.gmra.mrb[0].mxu0 %v4556
        %v4687 = vpop.f32.mrb[0].mxu0
        %v4688 = vadd.f32 0.0, %v4687
        %v4689 = vpop.f32.mrb[0].mxu0
        %v4690 = vpop.f32.mrb[0].mxu0
        %v4691 = vadd.f32 0.0, %v4690
        %v4692 = vpop.f32.mrb[0].mxu0
        %4693 = vmatprep.mubr.bf16.mxu0 0
        %4694 = vmatmul.mubr.bf16.gmra.mrb[0].mxu0 %v4559
        %v4695 = vpop.f32.mrb[0].mxu0
        %v4696 = vadd.f32 0.0, %v4695
        %v4697 = vpop.f32.mrb[0].mxu0
        %v4698 = vpop.f32.mrb[0].mxu0
        %v4699 = vadd.f32 0.0, %v4698
        %v4700 = vpop.f32.mrb[0].mxu0
        %4701 = vmatprep.mubr.bf16.mxu0 0
        %4702 = vmatmul.mubr.bf16.gmra.mrb[0].mxu0 %v4562
        %v4703 = vpop.f32.mrb[0].mxu0
        %v4704 = vadd.f32 0.0, %v4703
        %v4705 = vpop.f32.mrb[0].mxu0
        %v4706 = vpop.f32.mrb[0].mxu0
        %v4707 = vadd.f32 0.0, %v4706
        %v4708 = vpop.f32.mrb[0].mxu0
        %4709 = vmatprep.mubr.bf16.mxu0 0
        %4710 = vmatmul.mubr.bf16.gmra.mrb[0].mxu0 %v4565
        %v4711 = vpop.f32.mrb[0].mxu0
        %v4712 = vadd.f32 0.0, %v4711
        %v4713 = vpop.f32.mrb[0].mxu0
        %v4714 = vpop.f32.mrb[0].mxu0
        %v4715 = vadd.f32 0.0, %v4714
        %v4716 = vpop.f32.mrb[0].mxu0
        %4717 = vmatprep.mubr.bf16.mxu0 0
        %4718 = vmatmul.mubr.bf16.gmra.mrb[0].mxu0 %v4568
        %v4719 = vpop.f32.mrb[0].mxu0
        %v4720 = vadd.f32 0.0, %v4719
        %v4721 = vpop.f32.mrb[0].mxu0
        %v4722 = vpop.f32.mrb[0].mxu0
        %v4723 = vadd.f32 0.0, %v4722
        %v4724 = vpop.f32.mrb[0].mxu0
        %4725 = vmatprep.mubr.bf16.mxu0 0
        %4726 = vmatmul.mubr.bf16.gmra.mrb[0].mxu0 %v4571
        %v4727 = vpop.f32.mrb[0].mxu0
        %v4728 = vadd.f32 0.0, %v4727
        %v4729 = vpop.f32.mrb[0].mxu0
        %v4730 = vpop.f32.mrb[0].mxu0
        %v4731 = vadd.f32 0.0, %v4730
        %v4732 = vpop.f32.mrb[0].mxu0
        %4733 = vmatprep.mubr.bf16.mxu0 0
        %4734 = vmatmul.mubr.bf16.gmra.mrb[0].mxu0 %v4574
        %v4735 = vpop.f32.mrb[0].mxu0
        %v4736 = vadd.f32 0.0, %v4735
        %v4737 = vpop.f32.mrb[0].mxu0
        %v4738 = vpop.f32.mrb[0].mxu0
        %v4739 = vadd.f32 0.0, %v4738
        %v4740 = vpop.f32.mrb[0].mxu0
        %4741 = vmatprep.mubr.bf16.mxu0 0
        %4742 = vmatmul.mubr.bf16.gmra.mrb[0].mxu0 %v4577
        %v4743 = vpop.f32.mrb[0].mxu0
        %v4744 = vadd.f32 0.0, %v4743
        %v4745 = vpop.f32.mrb[0].mxu0
        %v4746 = vpop.f32.mrb[0].mxu0
        %v4747 = vadd.f32 0.0, %v4746
        %v4748 = vpop.f32.mrb[0].mxu0
        %4749 = vmatprep.mubr.bf16.mxu0 0
        %4750 = vmatmul.mubr.bf16.gmra.mrb[0].mxu0 %v4580
        %v4751 = vpop.f32.mrb[0].mxu0
        %v4752 = vadd.f32 0.0, %v4751
        %v4753 = vpop.f32.mrb[0].mxu0
        %v4754 = vpop.f32.mrb[0].mxu0
        %v4755 = vadd.f32 0.0, %v4754
        %v4756 = vpop.f32.mrb[0].mxu0
        %4757 = vmatprep.mubr.bf16.mxu0 0
        %4758 = vmatmul.mubr.bf16.gmra.mrb[0].mxu0 %v4583
        %v4759 = vpop.f32.mrb[0].mxu0
        %v4760 = vadd.f32 0.0, %v4759
        %v4761 = vpop.f32.mrb[0].mxu0
        %v4762 = vpop.f32.mrb[0].mxu0
        %v4763 = vadd.f32 0.0, %v4762
        %v4764 = vpop.f32.mrb[0].mxu0
        %4765 = vmatprep.mubr.bf16.mxu0 0
        %4766 = vmatmul.mubr.bf16.gmra.mrb[0].mxu0 %v4586
        %v4767 = vpop.f32.mrb[0].mxu0
        %v4768 = vadd.f32 0.0, %v4767
        %v4769 = vpop.f32.mrb[0].mxu0
        %v4770 = vpop.f32.mrb[0].mxu0
        %v4771 = vadd.f32 0.0, %v4770
        %v4772 = vpop.f32.mrb[0].mxu0
        %4773 = vmatprep.mubr.bf16.mxu0 0
        %4774 = vmatmul.mubr.bf16.gmra.mrb[0].mxu0 %v4589
        %v4775 = vpop.f32.mrb[0].mxu0
        %v4776 = vadd.f32 0.0, %v4775
        %v4777 = vpop.f32.mrb[0].mxu0
        %v4778 = vpop.f32.mrb[0].mxu0
        %v4779 = vadd.f32 0.0, %v4778
        %v4780 = vpop.f32.mrb[0].mxu0
        %4781 = vmatprep.mubr.bf16.mxu0 0
        %4782 = vmatmul.mubr.bf16.gmra.mrb[0].mxu0 %v4592
        %v4783 = vpop.f32.mrb[0].mxu0
        %v4784 = vadd.f32 0.0, %v4783
        %v4785 = vpop.f32.mrb[0].mxu0
        %v4786 = vpop.f32.mrb[0].mxu0
        %v4787 = vadd.f32 0.0, %v4786
        %v4788 = vpop.f32.mrb[0].mxu0
        %4789 = vmatprep.mubr.bf16.mxu0 0
        %4790 = vmatmul.mubr.bf16.gmra.mrb[0].mxu0 %v4595
        %v4791 = vpop.f32.mrb[0].mxu0
        %v4792 = vadd.f32 0.0, %v4791
        %v4793 = vpop.f32.mrb[0].mxu0
        %v4794 = vpop.f32.mrb[0].mxu0
        %v4795 = vadd.f32 0.0, %v4794
        %v4796 = vpop.f32.mrb[0].mxu0
        %4797 = vmatprep.mubr.bf16.mxu0 0
        %4798 = vmatmul.mubr.bf16.gmra.mrb[0].mxu0 %v4598
        %v4799 = vpop.f32.mrb[0].mxu0
        %v4800 = vadd.f32 0.0, %v4799
        %v4801 = vpop.f32.mrb[0].mxu0
        %v4802 = vpop.f32.mrb[0].mxu0
        %v4803 = vadd.f32 0.0, %v4802
        %v4804 = vpop.f32.mrb[0].mxu0
        %4805 = vmatprep.mubr.bf16.mxu0 0
        %4806 = vmatmul.mubr.bf16.gmra.mrb[0].mxu0 %v4601
        %v4807 = vpop.f32.mrb[0].mxu0
        %v4808 = vadd.f32 0.0, %v4807
        %v4809 = vpop.f32.mrb[0].mxu0
        %v4810 = vpop.f32.mrb[0].mxu0
        %v4811 = vadd.f32 0.0, %v4810
        %v4812 = vpop.f32.mrb[0].mxu0
        %4813 = vmatprep.mubr.bf16.mxu0 0
        %4814 = vmatmul.mubr.bf16.gmra.mrb[0].mxu0 %v4604
        %v4815 = vpop.f32.mrb[0].mxu0
        %v4816 = vadd.f32 0.0, %v4815
        %v4817 = vpop.f32.mrb[0].mxu0
        %v4818 = vpop.f32.mrb[0].mxu0
        %v4819 = vadd.f32 0.0, %v4818
        %v4820 = vpop.f32.mrb[0].mxu0
        %4821 = vmatprep.mubr.bf16.mxu0 0
        %4822 = vmatmul.mubr.bf16.gmra.mrb[0].mxu0 %v4607
        %v4823 = vpop.f32.mrb[0].mxu0
        %v4824 = vadd.f32 0.0, %v4823
        %v4825 = vpop.f32.mrb[0].mxu0
        %v4826 = vpop.f32.mrb[0].mxu0
        %v4827 = vadd.f32 0.0, %v4826
        %v4828 = vpop.f32.mrb[0].mxu0
        %4829 = vmatprep.mubr.bf16.mxu0 0
        %4830 = vmatmul.mubr.bf16.gmra.mrb[0].mxu0 %v4610
        %v4831 = vpop.f32.mrb[0].mxu0
        %v4832 = vadd.f32 0.0, %v4831
        %v4833 = vpop.f32.mrb[0].mxu0
        %v4834 = vpop.f32.mrb[0].mxu0
        %v4835 = vadd.f32 0.0, %v4834
        %v4836 = vpop.f32.mrb[0].mxu0
        %4837 = vmatprep.mubr.bf16.mxu0 0
        %4838 = vmatmul.mubr.bf16.gmra.mrb[0].mxu0 %v4613
        %v4839 = vpop.f32.mrb[0].mxu0
        %v4840 = vadd.f32 0.0, %v4839
        %v4841 = vpop.f32.mrb[0].mxu0
        %v4842 = vpop.f32.mrb[0].mxu0
        %v4843 = vadd.f32 0.0, %v4842
        %v4844 = vpop.f32.mrb[0].mxu0
        %4845 = vmatprep.mubr.bf16.mxu0 0
        %4846 = vmatmul.mubr.bf16.gmra.mrb[0].mxu0 %v4616
        %v4847 = vpop.f32.mrb[0].mxu0
        %v4848 = vadd.f32 0.0, %v4847
        %v4849 = vpop.f32.mrb[0].mxu0
        %v4850 = vpop.f32.mrb[0].mxu0
        %v4851 = vadd.f32 0.0, %v4850
        %v4852 = vpop.f32.mrb[0].mxu0
        %4853 = vmatprep.mubr.bf16.mxu0 0
        %4854 = vmatmul.mubr.bf16.gmra.mrb[0].mxu0 %v4619
        %v4855 = vpop.f32.mrb[0].mxu0
        %v4856 = vadd.f32 0.0, %v4855
        %v4857 = vpop.f32.mrb[0].mxu0
        %v4858 = vpop.f32.mrb[0].mxu0
        %v4859 = vadd.f32 0.0, %v4858
        %v4860 = vpop.f32.mrb[0].mxu0
        %4861 = vdwg.mxu0
        %p4862 = scmp.eq.s32.totalorder %s29, 0
        // Predicated region
        $region53: #{tpu_custom_call.1} parent=43 // pred_check
          %p4863 = pneg %p4862
        $region54: #{tpu_custom_call.1} parent=43 // pred_check_branch
          %4865 = sbr.rel (%p4863) target = $region56
        $region55: #{tpu_custom_call.1} parent=43 // pred_region
          %v4866 = vld [vmem:[%s4] sm:$0x1]
          %v4868 = vlaneseq
          %v4869 = vshrl.u32 %v4868, 7
          %v4870 = vsub.s32 0, %v4869
          %v4871 = vrot.slane %v4866, %v4870
          %v4873 = vadd.f32 %v4656, %v4871
          %v4874 = vadd.f32 %v4659, %v4871
          %v4875 = vadd.f32 %v4664, %v4871
          %v4876 = vadd.f32 %v4667, %v4871
          %v4877 = vadd.f32 %v4672, %v4871
          %v4878 = vadd.f32 %v4675, %v4871
          %v4879 = vadd.f32 %v4680, %v4871
          %v4880 = vadd.f32 %v4683, %v4871
          %v4881 = vadd.f32 %v4688, %v4871
          %v4882 = vadd.f32 %v4691, %v4871
          %v4883 = vadd.f32 %v4696, %v4871
          %v4884 = vadd.f32 %v4699, %v4871
          %v4885 = vadd.f32 %v4704, %v4871
          %v4886 = vadd.f32 %v4707, %v4871
          %v4887 = vadd.f32 %v4712, %v4871
          %v4888 = vadd.f32 %v4715, %v4871
          %v4889 = vadd.f32 %v4720, %v4871
          %v4890 = vadd.f32 %v4723, %v4871
          %v4891 = vadd.f32 %v4728, %v4871
          %v4892 = vadd.f32 %v4731, %v4871
          %v4893 = vadd.f32 %v4736, %v4871
          %v4894 = vadd.f32 %v4739, %v4871
          %v4895 = vadd.f32 %v4744, %v4871
          %v4896 = vadd.f32 %v4747, %v4871
          %v4897 = vadd.f32 %v4752, %v4871
          %v4898 = vadd.f32 %v4755, %v4871
          %v4899 = vadd.f32 %v4760, %v4871
          %v4900 = vadd.f32 %v4763, %v4871
          %v4901 = vadd.f32 %v4768, %v4871
          %v4902 = vadd.f32 %v4771, %v4871
          %v4903 = vadd.f32 %v4776, %v4871
          %v4904 = vadd.f32 %v4779, %v4871
          %v4905 = vadd.f32 %v4784, %v4871
          %v4906 = vadd.f32 %v4787, %v4871
          %v4907 = vadd.f32 %v4792, %v4871
          %v4908 = vadd.f32 %v4795, %v4871
          %v4909 = vadd.f32 %v4800, %v4871
          %v4910 = vadd.f32 %v4803, %v4871
          %v4911 = vadd.f32 %v4808, %v4871
          %v4912 = vadd.f32 %v4811, %v4871
          %v4913 = vadd.f32 %v4816, %v4871
          %v4914 = vadd.f32 %v4819, %v4871
          %v4915 = vadd.f32 %v4824, %v4871
          %v4916 = vadd.f32 %v4827, %v4871
          %v4917 = vadd.f32 %v4832, %v4871
          %v4918 = vadd.f32 %v4835, %v4871
          %v4919 = vadd.f32 %v4840, %v4871
          %v4920 = vadd.f32 %v4843, %v4871
          %v4921 = vadd.f32 %v4848, %v4871
          %v4922 = vadd.f32 %v4851, %v4871
          %v4923 = vadd.f32 %v4856, %v4871
          %v4924 = vadd.f32 %v4859, %v4871
          %4925 = vst [vmem:[%s337] sm:$0xff] %v4873
          %4926 = vst [vmem:[%s337 + $0x8] sm:$0xff] %v4874
          %4927 = vst [vmem:[%s337 + $0x10] sm:$0xff] %v4875
          %4928 = vst [vmem:[%s337 + $0x18] sm:$0xff] %v4876
          %4929 = vst [vmem:[%s337 + $0x20] sm:$0xff] %v4877
          %4930 = vst [vmem:[%s337 + $0x28] sm:$0xff] %v4878
          %4931 = vst [vmem:[%s337 + $0x30] sm:$0xff] %v4879
          %4932 = vst [vmem:[%s337 + $0x38] sm:$0xff] %v4880
          %4933 = vst [vmem:[%s337 + $0x40] sm:$0xff] %v4881
          %4934 = vst [vmem:[%s337 + $0x48] sm:$0xff] %v4882
          %4935 = vst [vmem:[%s337 + $0x50] sm:$0xff] %v4883
          %4936 = vst [vmem:[%s337 + $0x58] sm:$0xff] %v4884
          %4937 = vst [vmem:[%s337 + $0x60] sm:$0xff] %v4885
          %4938 = vst [vmem:[%s337 + $0x68] sm:$0xff] %v4886
          %4939 = vst [vmem:[%s337 + $0x70] sm:$0xff] %v4887
          %4940 = vst [vmem:[%s337 + $0x78] sm:$0xff] %v4888
          %4941 = vst [vmem:[%s337 + $0x80] sm:$0xff] %v4889
          %4942 = vst [vmem:[%s337 + $0x88] sm:$0xff] %v4890
          %4943 = vst [vmem:[%s337 + $0x90] sm:$0xff] %v4891
          %4944 = vst [vmem:[%s337 + $0x98] sm:$0xff] %v4892
          %4945 = vst [vmem:[%s337 + $0xa0] sm:$0xff] %v4893
          %4946 = vst [vmem:[%s337 + $0xa8] sm:$0xff] %v4894
          %4947 = vst [vmem:[%s337 + $0xb0] sm:$0xff] %v4895
          %4948 = vst [vmem:[%s337 + $0xb8] sm:$0xff] %v4896
          %4949 = vst [vmem:[%s337 + $0xc0] sm:$0xff] %v4897
          %4950 = vst [vmem:[%s337 + $0xc8] sm:$0xff] %v4898
          %4951 = vst [vmem:[%s337 + $0xd0] sm:$0xff] %v4899
          %4952 = vst [vmem:[%s337 + $0xd8] sm:$0xff] %v4900
          %4953 = vst [vmem:[%s337 + $0xe0] sm:$0xff] %v4901
          %4954 = vst [vmem:[%s337 + $0xe8] sm:$0xff] %v4902
          %4955 = vst [vmem:[%s337 + $0xf0] sm:$0xff] %v4903
          %4956 = vst [vmem:[%s337 + $0xf8] sm:$0xff] %v4904
          %4957 = vst [vmem:[%s337 + $0x100] sm:$0xff] %v4905
          %4958 = vst [vmem:[%s337 + $0x108] sm:$0xff] %v4906
          %4959 = vst [vmem:[%s337 + $0x110] sm:$0xff] %v4907
          %4960 = vst [vmem:[%s337 + $0x118] sm:$0xff] %v4908
          %4961 = vst [vmem:[%s337 + $0x120] sm:$0xff] %v4909
          %4962 = vst [vmem:[%s337 + $0x128] sm:$0xff] %v4910
          %4963 = vst [vmem:[%s337 + $0x130] sm:$0xff] %v4911
          %4964 = vst [vmem:[%s337 + $0x138] sm:$0xff] %v4912
          %4965 = vst [vmem:[%s337 + $0x140] sm:$0xff] %v4913
          %4966 = vst [vmem:[%s337 + $0x148] sm:$0xff] %v4914
          %4967 = vst [vmem:[%s337 + $0x150] sm:$0xff] %v4915
          %4968 = vst [vmem:[%s337 + $0x158] sm:$0xff] %v4916
          %4969 = vst [vmem:[%s337 + $0x160] sm:$0xff] %v4917
          %4970 = vst [vmem:[%s337 + $0x168] sm:$0xff] %v4918
          %4971 = vst [vmem:[%s337 + $0x170] sm:$0xff] %v4919
          %4972 = vst [vmem:[%s337 + $0x178] sm:$0xff] %v4920
          %4973 = vst [vmem:[%s337 + $0x180] sm:$0xff] %v4921
          %4974 = vst [vmem:[%s337 + $0x188] sm:$0xff] %v4922
          %4975 = vst [vmem:[%s337 + $0x190] sm:$0xff] %v4923
          %4976 = vst [vmem:[%s337 + $0x198] sm:$0xff] %v4924
        $region56: #{tpu_custom_call.1} parent=43 // pred_fallthru
          _
        %p4977 = scmp.ne.s32.totalorder %s29, 0
        // Predicated region
        $region57: #{tpu_custom_call.1} parent=43 // pred_check
          %p4978 = pneg %p4977
        $region58: #{tpu_custom_call.1} parent=43 // pred_check_branch
          %4980 = sbr.rel (%p4978) target = $region60
        $region59: #{tpu_custom_call.1} parent=43 // pred_region
          %v4981 = vld [vmem:[%s337] sm:$0xff]
          %v4982 = vld [vmem:[%s337 + $0x8] sm:$0xff]
          %v4983 = vld [vmem:[%s337 + $0x10] sm:$0xff]
          %v4984 = vld [vmem:[%s337 + $0x18] sm:$0xff]
          %v4985 = vld [vmem:[%s337 + $0x20] sm:$0xff]
          %v4986 = vld [vmem:[%s337 + $0x28] sm:$0xff]
          %v4987 = vld [vmem:[%s337 + $0x30] sm:$0xff]
          %v4988 = vld [vmem:[%s337 + $0x38] sm:$0xff]
          %v4989 = vld [vmem:[%s337 + $0x40] sm:$0xff]
          %v4990 = vld [vmem:[%s337 + $0x48] sm:$0xff]
          %v4991 = vld [vmem:[%s337 + $0x50] sm:$0xff]
          %v4992 = vld [vmem:[%s337 + $0x58] sm:$0xff]
          %v4993 = vld [vmem:[%s337 + $0x60] sm:$0xff]
          %v4994 = vld [vmem:[%s337 + $0x68] sm:$0xff]
          %v4995 = vld [vmem:[%s337 + $0x70] sm:$0xff]
          %v4996 = vld [vmem:[%s337 + $0x78] sm:$0xff]
          %v4997 = vld [vmem:[%s337 + $0x80] sm:$0xff]
          %v4998 = vld [vmem:[%s337 + $0x88] sm:$0xff]
          %v4999 = vld [vmem:[%s337 + $0x90] sm:$0xff]
          %v5000 = vld [vmem:[%s337 + $0x98] sm:$0xff]
          %v5001 = vld [vmem:[%s337 + $0xa0] sm:$0xff]
          %v5002 = vld [vmem:[%s337 + $0xa8] sm:$0xff]
          %v5003 = vld [vmem:[%s337 + $0xb0] sm:$0xff]
          %v5004 = vld [vmem:[%s337 + $0xb8] sm:$0xff]
          %v5005 = vld [vmem:[%s337 + $0xc0] sm:$0xff]
          %v5006 = vld [vmem:[%s337 + $0xc8] sm:$0xff]
          %v5007 = vld [vmem:[%s337 + $0xd0] sm:$0xff]
          %v5008 = vld [vmem:[%s337 + $0xd8] sm:$0xff]
          %v5009 = vld [vmem:[%s337 + $0xe0] sm:$0xff]
          %v5010 = vld [vmem:[%s337 + $0xe8] sm:$0xff]
          %v5011 = vld [vmem:[%s337 + $0xf0] sm:$0xff]
          %v5012 = vld [vmem:[%s337 + $0xf8] sm:$0xff]
          %v5013 = vld [vmem:[%s337 + $0x100] sm:$0xff]
          %v5014 = vld [vmem:[%s337 + $0x108] sm:$0xff]
          %v5015 = vld [vmem:[%s337 + $0x110] sm:$0xff]
          %v5016 = vld [vmem:[%s337 + $0x118] sm:$0xff]
          %v5017 = vld [vmem:[%s337 + $0x120] sm:$0xff]
          %v5018 = vld [vmem:[%s337 + $0x128] sm:$0xff]
          %v5019 = vld [vmem:[%s337 + $0x130] sm:$0xff]
          %v5020 = vld [vmem:[%s337 + $0x138] sm:$0xff]
          %v5021 = vld [vmem:[%s337 + $0x140] sm:$0xff]
          %v5022 = vld [vmem:[%s337 + $0x148] sm:$0xff]
          %v5023 = vld [vmem:[%s337 + $0x150] sm:$0xff]
          %v5024 = vld [vmem:[%s337 + $0x158] sm:$0xff]
          %v5025 = vld [vmem:[%s337 + $0x160] sm:$0xff]
          %v5026 = vld [vmem:[%s337 + $0x168] sm:$0xff]
          %v5027 = vld [vmem:[%s337 + $0x170] sm:$0xff]
          %v5028 = vld [vmem:[%s337 + $0x178] sm:$0xff]
          %v5029 = vld [vmem:[%s337 + $0x180] sm:$0xff]
          %v5030 = vld [vmem:[%s337 + $0x188] sm:$0xff]
          %v5031 = vld [vmem:[%s337 + $0x190] sm:$0xff]
          %v5032 = vld [vmem:[%s337 + $0x198] sm:$0xff]
          %v5033 = vadd.f32 %v4981, %v4656
          %v5034 = vadd.f32 %v4982, %v4659
          %v5035 = vadd.f32 %v4983, %v4664
          %v5036 = vadd.f32 %v4984, %v4667
          %v5037 = vadd.f32 %v4985, %v4672
          %v5038 = vadd.f32 %v4986, %v4675
          %v5039 = vadd.f32 %v4987, %v4680
          %v5040 = vadd.f32 %v4988, %v4683
          %v5041 = vadd.f32 %v4989, %v4688
          %v5042 = vadd.f32 %v4990, %v4691
          %v5043 = vadd.f32 %v4991, %v4696
          %v5044 = vadd.f32 %v4992, %v4699
          %v5045 = vadd.f32 %v4993, %v4704
          %v5046 = vadd.f32 %v4994, %v4707
          %v5047 = vadd.f32 %v4995, %v4712
          %v5048 = vadd.f32 %v4996, %v4715
          %v5049 = vadd.f32 %v4997, %v4720
          %v5050 = vadd.f32 %v4998, %v4723
          %v5051 = vadd.f32 %v4999, %v4728
          %v5052 = vadd.f32 %v5000, %v4731
          %v5053 = vadd.f32 %v5001, %v4736
          %v5054 = vadd.f32 %v5002, %v4739
          %v5055 = vadd.f32 %v5003, %v4744
          %v5056 = vadd.f32 %v5004, %v4747
          %v5057 = vadd.f32 %v5005, %v4752
          %v5058 = vadd.f32 %v5006, %v4755
          %v5059 = vadd.f32 %v5007, %v4760
          %v5060 = vadd.f32 %v5008, %v4763
          %v5061 = vadd.f32 %v5009, %v4768
          %v5062 = vadd.f32 %v5010, %v4771
          %v5063 = vadd.f32 %v5011, %v4776
          %v5064 = vadd.f32 %v5012, %v4779
          %v5065 = vadd.f32 %v5013, %v4784
          %v5066 = vadd.f32 %v5014, %v4787
          %v5067 = vadd.f32 %v5015, %v4792
          %v5068 = vadd.f32 %v5016, %v4795
          %v5069 = vadd.f32 %v5017, %v4800
          %v5070 = vadd.f32 %v5018, %v4803
          %v5071 = vadd.f32 %v5019, %v4808
          %v5072 = vadd.f32 %v5020, %v4811
          %v5073 = vadd.f32 %v5021, %v4816
          %v5074 = vadd.f32 %v5022, %v4819
          %v5075 = vadd.f32 %v5023, %v4824
          %v5076 = vadd.f32 %v5024, %v4827
          %v5077 = vadd.f32 %v5025, %v4832
          %v5078 = vadd.f32 %v5026, %v4835
          %v5079 = vadd.f32 %v5027, %v4840
          %v5080 = vadd.f32 %v5028, %v4843
          %v5081 = vadd.f32 %v5029, %v4848
          %v5082 = vadd.f32 %v5030, %v4851
          %v5083 = vadd.f32 %v5031, %v4856
          %v5084 = vadd.f32 %v5032, %v4859
          %5085 = vst [vmem:[%s337] sm:$0xff] %v5033
          %5086 = vst [vmem:[%s337 + $0x8] sm:$0xff] %v5034
          %5087 = vst [vmem:[%s337 + $0x10] sm:$0xff] %v5035
          %5088 = vst [vmem:[%s337 + $0x18] sm:$0xff] %v5036
          %5089 = vst [vmem:[%s337 + $0x20] sm:$0xff] %v5037
          %5090 = vst [vmem:[%s337 + $0x28] sm:$0xff] %v5038
          %5091 = vst [vmem:[%s337 + $0x30] sm:$0xff] %v5039
          %5092 = vst [vmem:[%s337 + $0x38] sm:$0xff] %v5040
          %5093 = vst [vmem:[%s337 + $0x40] sm:$0xff] %v5041
          %5094 = vst [vmem:[%s337 + $0x48] sm:$0xff] %v5042
          %5095 = vst [vmem:[%s337 + $0x50] sm:$0xff] %v5043
          %5096 = vst [vmem:[%s337 + $0x58] sm:$0xff] %v5044
          %5097 = vst [vmem:[%s337 + $0x60] sm:$0xff] %v5045
          %5098 = vst [vmem:[%s337 + $0x68] sm:$0xff] %v5046
          %5099 = vst [vmem:[%s337 + $0x70] sm:$0xff] %v5047
          %5100 = vst [vmem:[%s337 + $0x78] sm:$0xff] %v5048
          %5101 = vst [vmem:[%s337 + $0x80] sm:$0xff] %v5049
          %5102 = vst [vmem:[%s337 + $0x88] sm:$0xff] %v5050
          %5103 = vst [vmem:[%s337 + $0x90] sm:$0xff] %v5051
          %5104 = vst [vmem:[%s337 + $0x98] sm:$0xff] %v5052
          %5105 = vst [vmem:[%s337 + $0xa0] sm:$0xff] %v5053
          %5106 = vst [vmem:[%s337 + $0xa8] sm:$0xff] %v5054
          %5107 = vst [vmem:[%s337 + $0xb0] sm:$0xff] %v5055
          %5108 = vst [vmem:[%s337 + $0xb8] sm:$0xff] %v5056
          %5109 = vst [vmem:[%s337 + $0xc0] sm:$0xff] %v5057
          %5110 = vst [vmem:[%s337 + $0xc8] sm:$0xff] %v5058
          %5111 = vst [vmem:[%s337 + $0xd0] sm:$0xff] %v5059
          %5112 = vst [vmem:[%s337 + $0xd8] sm:$0xff] %v5060
          %5113 = vst [vmem:[%s337 + $0xe0] sm:$0xff] %v5061
          %5114 = vst [vmem:[%s337 + $0xe8] sm:$0xff] %v5062
          %5115 = vst [vmem:[%s337 + $0xf0] sm:$0xff] %v5063
          %5116 = vst [vmem:[%s337 + $0xf8] sm:$0xff] %v5064
          %5117 = vst [vmem:[%s337 + $0x100] sm:$0xff] %v5065
          %5118 = vst [vmem:[%s337 + $0x108] sm:$0xff] %v5066
          %5119 = vst [vmem:[%s337 + $0x110] sm:$0xff] %v5067
          %5120 = vst [vmem:[%s337 + $0x118] sm:$0xff] %v5068
          %5121 = vst [vmem:[%s337 + $0x120] sm:$0xff] %v5069
          %5122 = vst [vmem:[%s337 + $0x128] sm:$0xff] %v5070
          %5123 = vst [vmem:[%s337 + $0x130] sm:$0xff] %v5071
          %5124 = vst [vmem:[%s337 + $0x138] sm:$0xff] %v5072
          %5125 = vst [vmem:[%s337 + $0x140] sm:$0xff] %v5073
          %5126 = vst [vmem:[%s337 + $0x148] sm:$0xff] %v5074
          %5127 = vst [vmem:[%s337 + $0x150] sm:$0xff] %v5075
          %5128 = vst [vmem:[%s337 + $0x158] sm:$0xff] %v5076
          %5129 = vst [vmem:[%s337 + $0x160] sm:$0xff] %v5077
          %5130 = vst [vmem:[%s337 + $0x168] sm:$0xff] %v5078
          %5131 = vst [vmem:[%s337 + $0x170] sm:$0xff] %v5079
          %5132 = vst [vmem:[%s337 + $0x178] sm:$0xff] %v5080
          %5133 = vst [vmem:[%s337 + $0x180] sm:$0xff] %v5081
          %5134 = vst [vmem:[%s337 + $0x188] sm:$0xff] %v5082
          %5135 = vst [vmem:[%s337 + $0x190] sm:$0xff] %v5083
          %5136 = vst [vmem:[%s337 + $0x198] sm:$0xff] %v5084
        $region60: #{tpu_custom_call.1} parent=43 // pred_fallthru
          _
        %s5137 = sand.u32 %s190, 1
        %s5138 = scalar_lea.sflag [#allocation4], %s5137
        %s5139 = sand.u32 %s190, 1
        %s5140 = smul.addr %s5139, 416
        %s5141 = scalar_lea.vmem [#allocation7], %s5140
        // Predicated region
        $region61: #{tpu_custom_call.1} parent=43 // pred_check
          %p5142 = pneg %p200
        $region62: #{tpu_custom_call.1} parent=43 // pred_check_branch
          %5144 = sbr.rel (%p5142) target = $region64
        $region63: #{tpu_custom_call.1} parent=43 // pred_region
          %s5146 = ssub.s32 6656, 6656
          %5147 = vsyncadd %s5138, %s5146
          %s5148 = smul.addr %s28, 52
          %s5149 = smul.addr %s5148, 128
          %s5150 = scalar_lea.hbm %s6, %s5149
          %s5151 = sshll.u32 %s5141, 4
          %s5152 = int_to_ptr.vmem [resolvable:$true] %s5151
          %5157 = dma.vmem_to_hbm [thread:$0]  %s5152, 6656, %s5150, %s5138, 128, 128, 8
        $region64: #{tpu_custom_call.1} parent=43 // pred_fallthru
          _
      $region44: #{tpu_custom_call.1} parent=5 // pred_fallthru
        _
      %p5158 = scmp.le.s32.totalorder 2, %s19
      // Predicated region
      $region65: #{tpu_custom_call.1} parent=5 // pred_check
        %p5159 = pneg %p5158
      $region66: #{tpu_custom_call.1} parent=5 // pred_check_branch
        %5161 = sbr.rel (%p5159) target = $region68
      $region67: #{tpu_custom_call.1} parent=5 // pred_region
        %s5162 = ssub.s32 %s19, 2
        // Predicated region
        $region69: #{tpu_custom_call.1} parent=67 // pred_check
          %p5163 = pneg %p206
        $region70: #{tpu_custom_call.1} parent=67 // pred_check_branch
          %5165 = sbr.rel (%p5163) target = $region72
        $region71: #{tpu_custom_call.1} parent=67 // pred_region
          %s5166 = sand.u32 %s191, 1
          %s5167 = scalar_lea.sflag [#allocation4], %s5166
          %s5168 = sand.u32 %s191, 1
          %s5169 = smul.addr %s5168, 416
          %s5170 = scalar_lea.vmem [#allocation7], %s5169
          %5171 = dma.done %s5167, 6656
        $region72: #{tpu_custom_call.1} parent=67 // pred_fallthru
          _
      $region68: #{tpu_custom_call.1} parent=5 // pred_fallthru
        _
    $region6: #{tpu_custom_call.1} parent=1 // loop_footer
      %s23 = sadd.s32 1, %s19
    $region7: #{tpu_custom_call.1} parent=1 // loop_footer_branch
      %18 = sbr.rel target = $region3
    $region8: #{tpu_custom_call.1} parent=1 // loop_exit
      _
    %5172 = vsyncpa [#allocation3], 1
    %s5173 = scalar_lea.sflag [#allocation3], 1
    %5174 = vsyncpa %s5173, 1
    %5175 = vsyncpa [#allocation6], 1
    %5176 = vsyncpa [#allocation4], 1
    %s5177 = scalar_lea.sflag [#allocation4], 1
    %5178 = vsyncpa %s5177, 1

</llo_original>
